<compile_context>
chip_gen: v6e
topology: v6e:2x2x1
jax: 0.10.0
libtpu: 0.0.40
codegen_flags: <defaults>
</compile_context>

<pallas_src>
import math

import jax
import jax.numpy as jnp
from jax import lax
from jax.experimental import pallas as pl
from jax.experimental.pallas import tpu as pltpu

# ---------------- config (small, consistent with the module) ----------------
B = 2          # batch
L = 8          # seq_len
N = 20         # enc_in / number of variates (classifier is Linear(seq_len*20, C))
NP = 24        # N padded up to a multiple of the 8-sublane tile
BNP = B * NP   # rows of the stacked activation
D = 32         # d_model
H = 4          # n_heads
DH = D // H    # head dim
F = 64         # d_ff
E = 2          # e_layers
C = 5          # num_classes
EPS = 1e-5     # LayerNorm eps (PyTorch default)
NEG = -1e30    # additive mask value

_MS = getattr(pltpu, "MemorySpace", None)
_VMEM_SPACE = _MS.VMEM if _MS is not None else pltpu.VMEM


def _layernorm(x, g, b):
    mu = jnp.mean(x, axis=-1, keepdims=True)
    var = jnp.mean((x - mu) ** 2, axis=-1, keepdims=True)
    return (x - mu) * lax.rsqrt(var + EPS) * g + b


def _bf16(x):
    return x.astype(jnp.bfloat16)


# ------------------------------ Pallas kernel -------------------------------
def itransformer_kernel(
    tok_ref,      # (B*NP, L)      f32  stacked, zero-padded variate tokens
    emb_ref,      # (L+1, D)       bf16 [emb_w ; emb_b]
    wqkv_ref,     # (E, D+1, 3D)   bf16 [Wq|Wk|Wv ; bq|bk|bv]
    wo_ref,       # (E, D, D)      bf16
    ffn1_ref,     # (E, D+1, F)    bf16 [conv1_w ; conv1_b]
    ffn2t_ref,    # (E, D, F)      bf16 conv2_w transposed
    lvec_ref,     # (E, 6, D)      f32  [bo, n1g, n1b, n2g, n2b, c2b]
    gvec_ref,     # (2, D)         f32  [final_norm_g ; final_norm_b]
    projw_ref,    # (D, L)         bf16 projector weight (bias folded into cb)
    cw_ref,       # (L, B*NP, C)   f32  classifier weight, tiled per row, pad rows zero
    cb_ref,       # (1, C)         f32  classifier bias (+ folded projector bias)
    out_ref,      # (B, C)         f32
):
    # ---- static additive attention mask over the merged [48, 48] scores ----
    # (comparison-only construction; assumes B == 2 batches stacked row-wise)
    row_i = lax.broadcasted_iota(jnp.int32, (BNP, BNP), 0)
    col_i = lax.broadcasted_iota(jnp.int32, (BNP, BNP), 1)
    same_b = (row_i < NP) == (col_i < NP)
    real_k = jnp.logical_or(col_i < N,
                            jnp.logical_and(col_i >= NP, col_i < NP + N))
    amask = jnp.where(jnp.logical_and(same_b, real_k), 0.0, NEG)   # [BNP, BNP] f32

    # per-head lane masks over the D=32 model width (hoisted out of the loops)
    lane = lax.broadcasted_iota(jnp.int32, (1, D), 1)
    head_masks = [(lane >= hh * DH) & (lane < (hh + 1) * DH) for hh in range(H)]

    # ----- DataEmbedding_inverted: Linear(seq_len -> d_model) -----
    emb = emb_ref[...]                                              # bf16 [L+1, D]
    h = jnp.dot(_bf16(tok_ref[...]), emb[:L],
                preferred_element_type=jnp.float32) + emb[L:L + 1]  # f32 [BNP, D]

    scale = 1.0 / math.sqrt(DH)
    for l in range(E):
        wqkvb = wqkv_ref[l]                                         # bf16 [D+1, 3D]
        lv = lvec_ref[l]                                            # f32  [6, D]

        # fused Q|K|V projection for the whole stacked batch
        qkv = jnp.dot(_bf16(h), wqkvb[:D],
                      preferred_element_type=jnp.float32) + wqkvb[D:D + 1]
        q_bf = _bf16(qkv[:, 0:D])                                   # [BNP, D]
        k = qkv[:, D:2 * D]
        v = qkv[:, 2 * D:3 * D]

        # ----- multi-head self attention, both batches merged per head -----
        attn_cat = None                                             # f32 [BNP, D]
        for hh in range(H):
            hm = head_masks[hh]
            k_h = _bf16(jnp.where(hm, k, 0.0))                      # only head lanes live
            # q @ k_h.T : contraction over the (masked) 32-lane width == head dot
            s = lax.dot_general(q_bf, k_h, (((1,), (1,)), ((), ())),
                                preferred_element_type=jnp.float32) * scale + amask
            s = s - jnp.max(s, axis=-1, keepdims=True)
            p = jnp.exp(s)
            p = p * pl.reciprocal(jnp.sum(p, axis=-1, keepdims=True), approx=True)
            v_h = _bf16(jnp.where(hm, v, 0.0))
            # PV lands directly in this head's columns of the concat buffer
            o = jnp.dot(_bf16(p), v_h, preferred_element_type=jnp.float32)
            attn_cat = o if attn_cat is None else attn_cat + o

        # single output projection per layer
        attn = jnp.dot(_bf16(attn_cat), wo_ref[l],
                       preferred_element_type=jnp.float32)

        # residual + norm1  (lv[0] is the output-projection bias)
        h1 = _layernorm(h + attn + lv[0:1], lv[1:2], lv[2:3])

        # ----- position-wise FFN (1x1 convs == linears), relu -----
        fw1 = ffn1_ref[l]                                           # bf16 [D+1, F]
        y = jnp.dot(_bf16(h1), fw1[:D],
                    preferred_element_type=jnp.float32) + fw1[D:D + 1]
        y = jnp.maximum(y, 0.0)
        y = lax.dot_general(_bf16(y), ffn2t_ref[l], (((1,), (1,)), ((), ())),
                            preferred_element_type=jnp.float32) + lv[5:6]
        h = _layernorm(h1 + y, lv[3:4], lv[4:5])

    # final encoder LayerNorm
    gv = gvec_ref[...]
    h = _layernorm(h, gv[0:1], gv[1:2])

    # projector: d_model -> seq_len (bias folded into classifier bias)
    dec = jnp.dot(_bf16(h), projw_ref[...],
                  preferred_element_type=jnp.float32)               # [BNP, L]

    # classifier: logits[b,c] = sum_{n,t} dec[b*NP+n, t] * cw[t, b*NP+n, c] + cb
    # (classifier weights are zero on the padded rows, so pad rows contribute 0)
    r = dec[:, 0:1] * cw_ref[0]
    for t in range(1, L):
        r = r + dec[:, t:t + 1] * cw_ref[t]                         # [BNP, C] f32
    logits = jnp.concatenate(
        [jnp.sum(r[b * NP:(b + 1) * NP], axis=0, keepdims=True) for b in range(B)],
        axis=0) + cb_ref[...]
    out_ref[...] = logits


# ---------------------- host-side weight packing (one-time) ------------------
def pack_params(p):
    bf = jnp.bfloat16
    emb = jnp.concatenate([p["emb_w"], p["emb_b"]], axis=0).astype(bf)           # (L+1, D)
    wqkv = jnp.concatenate([p["wq"], p["wk"], p["wv"]], axis=-1)                 # (E, D, 3D)
    bqkv = jnp.concatenate([p["bq"], p["bk"], p["bv"]], axis=-1)[:, None, :]     # (E, 1, 3D)
    wqkvb = jnp.concatenate([wqkv, bqkv], axis=1).astype(bf)                     # (E, D+1, 3D)
    wo = p["wo"].astype(bf)                                                      # (E, D, D)
    ffn1 = jnp.concatenate([p["c1w"], p["c1b"][:, None, :]], axis=1).astype(bf)  # (E, D+1, F)
    ffn2t = jnp.transpose(p["c2w"], (0, 2, 1)).astype(bf)                        # (E, D, F)
    lvec = jnp.stack([p["bo"], p["n1g"], p["n1b"], p["n2g"], p["n2b"], p["c2b"]],
                     axis=1)                                                     # (E, 6, D) f32
    gvec = jnp.concatenate([p["fng"], p["fnb"]], axis=0)                         # (2, D) f32
    projw = p["pw"].astype(bf)                                                   # (D, L)
    cw_pad = jnp.zeros((L, NP, C), jnp.float32).at[:, :N, :].set(p["cw3"])       # zero pad rows
    cw48 = jnp.tile(cw_pad, (1, B, 1))                                           # (L, B*NP, C)
    # fold the projector bias into the classifier bias: cb' = cb + sum_t pb[t] * cw[t,:,:]
    cb_eff = p["cb"] + jnp.einsum("t,tnc->c", p["pb"][0], p["cw3"])[None, :]     # (1, C)
    return (emb, wqkvb, wo, ffn1, ffn2t, lvec, gvec, projw, cw48, cb_eff)


# ------------------------------ wrapper (glue) -------------------------------
def _preprocess(x_enc):
    """use_norm preprocessing (exact PyTorch semantics incl. nan handling)."""
    x_nan = jnp.where(x_enc == 0.0, jnp.nan, x_enc)
    means = jnp.nanmean(x_nan, axis=1, keepdims=True)
    finite = jnp.isfinite(x_nan)
    diff = (x_nan - means) * finite
    var = jnp.sum(diff * diff, axis=1, keepdims=True) / jnp.sum(finite, axis=1, keepdims=True)
    stdev = jnp.sqrt(var + 1e-5)
    xn = (x_enc - means) / stdev
    return jnp.where(jnp.isnan(xn), 0.0, xn)


@jax.jit
def _forward_jit(x_enc, packed):
    xn = _preprocess(x_enc)
    tokens = jnp.transpose(xn, (0, 2, 1))                           # [B, N, L] variate tokens
    tok = jnp.pad(tokens, ((0, 0), (0, NP - N), (0, 0))).reshape(BNP, L)
    n_in = 1 + len(packed)
    return pl.pallas_call(
        itransformer_kernel,
        out_shape=jax.ShapeDtypeStruct((B, C), jnp.float32),
        in_specs=[pl.BlockSpec(memory_space=_VMEM_SPACE)] * n_in,
        out_specs=pl.BlockSpec(memory_space=_VMEM_SPACE),
    )(tok, *packed)


def model_forward(x_enc, x_mark_enc, x_dec, x_mark_dec, packed, mask=None):
    """Mirrors Model.forward. x_enc: [B, L, N] float32. Returns logits [B, C]."""
    del x_dec, x_mark_dec, mask  # unused (mask_flag=False attention; eval mode)
    # TODO(synk): x_mark_enc is assumed None (no time-mark tokens are concatenated).
    assert x_mark_enc is None
    return _forward_jit(x_enc, packed)                              # [B, C] (squeeze(-1) is a no-op)


# ------------------------- deterministic parameters --------------------------
def init_params(key):
    keys = iter(jax.random.split(key, 64))

    def rnd(shape, scale):
        return jax.random.normal(next(keys), shape, jnp.float32) * scale

    p = {}
    p["emb_w"] = rnd((L, D), 1.0 / math.sqrt(L))
    p["emb_b"] = rnd((1, D), 0.02)
    for name in ("wq", "wk", "wv", "wo"):
        p[name] = rnd((E, D, D), 1.0 / math.sqrt(D))
    for name in ("bq", "bk", "bv", "bo"):
        p[name] = rnd((E, D), 0.02)
    p["n1g"] = jnp.ones((E, D), jnp.float32)
    p["n1b"] = jnp.zeros((E, D), jnp.float32)
    p["n2g"] = jnp.ones((E, D), jnp.float32)
    p["n2b"] = jnp.zeros((E, D), jnp.float32)
    p["c1w"] = rnd((E, D, F), 1.0 / math.sqrt(D))
    p["c1b"] = rnd((E, F), 0.02)
    p["c2w"] = rnd((E, F, D), 1.0 / math.sqrt(F))
    p["c2b"] = rnd((E, D), 0.02)
    p["fng"] = jnp.ones((1, D), jnp.float32)
    p["fnb"] = jnp.zeros((1, D), jnp.float32)
    p["pw"] = rnd((D, L), 1.0 / math.sqrt(D))
    p["pb"] = rnd((1, L), 0.02)
    cls_w = rnd((L * N, C), 1.0 / math.sqrt(L * N))        # Linear(seq_len*20, C).weight.T
    p["cw3"] = cls_w.reshape(L, N, C)                      # flat index = t*N + n
    p["cb"] = rnd((1, C), 0.02)
    return p


# ------------------------------ pure-JAX reference ---------------------------
def reference_forward(x_enc, p):
    x_nan = jnp.where(x_enc == 0.0, jnp.nan, x_enc)
    means = jnp.nanmean(x_nan, axis=1, keepdims=True)
    finite = jnp.isfinite(x_nan)
    diff = (x_nan - means) * finite
    var = jnp.sum(diff * diff, axis=1, keepdims=True) / jnp.sum(finite, axis=1, keepdims=True)
    stdev = jnp.sqrt(var + 1e-5)
    xn = jnp.where(jnp.isnan((x_enc - means) / stdev), 0.0, (x_enc - means) / stdev)
    tokens = jnp.transpose(xn, (0, 2, 1))                  # [B, N, L]

    def ln(x, g, b):
        mu = x.mean(-1, keepdims=True)
        v = ((x - mu) ** 2).mean(-1, keepdims=True)
        return (x - mu) / jnp.sqrt(v + EPS) * g + b

    h = tokens @ p["emb_w"] + p["emb_b"]
    scale = 1.0 / math.sqrt(DH)
    for l in range(E):
        q = (h @ p["wq"][l] + p["bq"][l]).reshape(B, N, H, DH)
        k = (h @ p["wk"][l] + p["bk"][l]).reshape(B, N, H, DH)
        v = (h @ p["wv"][l] + p["bv"][l]).reshape(B, N, H, DH)
        s = jnp.einsum("bnhd,bmhd->bhnm", q, k) * scale
        a = jax.nn.softmax(s, axis=-1)
        o = jnp.einsum("bhnm,bmhd->bnhd", a, v).reshape(B, N, D)
        o = o @ p["wo"][l] + p["bo"][l]
        h1 = ln(h + o, p["n1g"][l], p["n1b"][l])
        y = jnp.maximum(h1 @ p["c1w"][l] + p["c1b"][l], 0.0)
        y = y @ p["c2w"][l] + p["c2b"][l]
        h = ln(h1 + y, p["n2g"][l], p["n2b"][l])
    h = ln(h, p["fng"], p["fnb"])
    dec = h @ p["pw"] + p["pb"]                            # [B, N, L]
    flat = jnp.transpose(dec, (0, 2, 1)).reshape(B, L * N)
    return flat @ p["cw3"].reshape(L * N, C) + p["cb"]


# ----------------------------------- main ------------------------------------
if __name__ == "__main__":
    key = jax.random.PRNGKey(0)
    k_x, k_p = jax.random.split(key)
    x_enc = jax.random.normal(k_x, (B, L, N), jnp.float32)
    params = init_params(k_p)

    # one-time packing (hoisted out of the forward path)
    packed = pack_params(params)
    packed = tuple(jax.block_until_ready(a) for a in packed)

    logits = model_forward(x_enc, None, None, None, packed, mask=None)
    logits = jax.block_until_ready(logits)

    ref = jax.block_until_ready(reference_forward(x_enc, params))
    assert logits.shape == (B, C), logits.shape
    assert bool(jnp.all(jnp.isfinite(logits)))
    # bf16 MXU operands + approx softmax reciprocal vs. an f32 reference:
    # tolerance loosened accordingly (still far below any wiring-bug-sized error).
    assert bool(jnp.allclose(logits, ref, atol=1e-1, rtol=1e-1)), (logits, ref)

    print("KERNEL_OK")
</pallas_src>

<mosaic_0001>
module attributes {stable_mosaic.version = 11 : i64} {
  func.func @itransformer_kernel(%arg0: memref<48x8xf32, #tpu.memory_space<vmem>>, %arg1: memref<9x32xbf16, #tpu.memory_space<vmem>>, %arg2: memref<2x33x96xbf16, #tpu.memory_space<vmem>>, %arg3: memref<2x32x32xbf16, #tpu.memory_space<vmem>>, %arg4: memref<2x33x64xbf16, #tpu.memory_space<vmem>>, %arg5: memref<2x32x64xbf16, #tpu.memory_space<vmem>>, %arg6: memref<2x6x32xf32, #tpu.memory_space<vmem>>, %arg7: memref<2x32xf32, #tpu.memory_space<vmem>>, %arg8: memref<32x8xbf16, #tpu.memory_space<vmem>>, %arg9: memref<8x48x5xf32, #tpu.memory_space<vmem>>, %arg10: memref<1x5xf32, #tpu.memory_space<vmem>>, %arg11: memref<2x5xf32, #tpu.memory_space<vmem>>) attributes {dimension_semantics = [], scalar_prefetch = 0 : i64, scratch_operands = 0 : i64, tpu.core_type = #tpu.core_type<tc>} {
    %0 = tpu.iota {dimensions = array<i32: 0>} : vector<48x48xi32>
    %1 = tpu.iota {dimensions = array<i32: 1>} : vector<48x48xi32>
    %c24_i32 = arith.constant 24 : i32
    %2 = vector.broadcast %c24_i32 : i32 to vector<48x48xi32>
    %3 = arith.cmpi slt, %0, %2 : vector<48x48xi32>
    %c24_i32_0 = arith.constant 24 : i32
    %4 = vector.broadcast %c24_i32_0 : i32 to vector<48x48xi32>
    %5 = arith.cmpi slt, %1, %4 : vector<48x48xi32>
    %6 = arith.xori %3, %5 : vector<48x48xi1>
    %cst = arith.constant dense<true> : vector<48x48xi1>
    %7 = arith.xori %6, %cst : vector<48x48xi1>
    %c20_i32 = arith.constant 20 : i32
    %8 = vector.broadcast %c20_i32 : i32 to vector<48x48xi32>
    %9 = arith.cmpi slt, %1, %8 : vector<48x48xi32>
    %c24_i32_1 = arith.constant 24 : i32
    %10 = vector.broadcast %c24_i32_1 : i32 to vector<48x48xi32>
    %11 = arith.cmpi sge, %1, %10 : vector<48x48xi32>
    %c44_i32 = arith.constant 44 : i32
    %12 = vector.broadcast %c44_i32 : i32 to vector<48x48xi32>
    %13 = arith.cmpi slt, %1, %12 : vector<48x48xi32>
    %14 = arith.andi %11, %13 : vector<48x48xi1>
    %15 = arith.ori %9, %14 : vector<48x48xi1>
    %16 = arith.andi %7, %15 : vector<48x48xi1>
    %cst_2 = arith.constant 0.000000e+00 : f32
    %cst_3 = arith.constant -1.000000e+30 : f32
    %17 = vector.broadcast %cst_2 : f32 to vector<48x48xf32>
    %18 = vector.broadcast %cst_3 : f32 to vector<48x48xf32>
    %19 = arith.select %16, %17, %18 : vector<48x48xi1>, vector<48x48xf32>
    %20 = tpu.iota {dimensions = array<i32: 1>} : vector<1x32xi32>
    %c0_i32 = arith.constant 0 : i32
    %21 = vector.broadcast %c0_i32 : i32 to vector<1x32xi32>
    %22 = arith.cmpi sge, %20, %21 : vector<1x32xi32>
    %c8_i32 = arith.constant 8 : i32
    %23 = vector.broadcast %c8_i32 : i32 to vector<1x32xi32>
    %24 = arith.cmpi slt, %20, %23 : vector<1x32xi32>
    %25 = arith.andi %22, %24 : vector<1x32xi1>
    %c8_i32_4 = arith.constant 8 : i32
    %26 = vector.broadcast %c8_i32_4 : i32 to vector<1x32xi32>
    %27 = arith.cmpi sge, %20, %26 : vector<1x32xi32>
    %c16_i32 = arith.constant 16 : i32
    %28 = vector.broadcast %c16_i32 : i32 to vector<1x32xi32>
    %29 = arith.cmpi slt, %20, %28 : vector<1x32xi32>
    %30 = arith.andi %27, %29 : vector<1x32xi1>
    %c16_i32_5 = arith.constant 16 : i32
    %31 = vector.broadcast %c16_i32_5 : i32 to vector<1x32xi32>
    %32 = arith.cmpi sge, %20, %31 : vector<1x32xi32>
    %c24_i32_6 = arith.constant 24 : i32
    %33 = vector.broadcast %c24_i32_6 : i32 to vector<1x32xi32>
    %34 = arith.cmpi slt, %20, %33 : vector<1x32xi32>
    %35 = arith.andi %32, %34 : vector<1x32xi1>
    %c24_i32_7 = arith.constant 24 : i32
    %36 = vector.broadcast %c24_i32_7 : i32 to vector<1x32xi32>
    %37 = arith.cmpi sge, %20, %36 : vector<1x32xi32>
    %c32_i32 = arith.constant 32 : i32
    %38 = vector.broadcast %c32_i32 : i32 to vector<1x32xi32>
    %39 = arith.cmpi slt, %20, %38 : vector<1x32xi32>
    %40 = arith.andi %37, %39 : vector<1x32xi1>
    %c0 = arith.constant 0 : index
    %c0_8 = arith.constant 0 : index
    %41 = vector.load %arg1[%c0, %c0_8] : memref<9x32xbf16, #tpu.memory_space<vmem>>, vector<9x32xbf16>
    %c0_9 = arith.constant 0 : index
    %c0_10 = arith.constant 0 : index
    %42 = vector.load %arg0[%c0_9, %c0_10] : memref<48x8xf32, #tpu.memory_space<vmem>>, vector<48x8xf32>
    %43 = arith.truncf %42 : vector<48x8xf32> to vector<48x8xbf16>
    %44 = vector.extract_strided_slice %41 {offsets = [0, 0], sizes = [8, 32], strides = [1, 1]} : vector<9x32xbf16> to vector<8x32xbf16>
    %cst_11 = arith.constant dense<0.000000e+00> : vector<48x32xf32>
    %45 = tpu.matmul %43, %44, %cst_11 {dimension_numbers = #tpu.dot_dimension_numbers<[1], [0], [0], [1], [0, 0, 1, 1], [], []>} : vector<48x8xbf16>, vector<8x32xbf16>, vector<48x32xf32> -> vector<48x32xf32>
    %46 = vector.extract_strided_slice %41 {offsets = [8, 0], sizes = [1, 32], strides = [1, 1]} : vector<9x32xbf16> to vector<1x32xbf16>
    %47 = arith.extf %46 : vector<1x32xbf16> to vector<1x32xf32>
    %48 = vector.broadcast %47 : vector<1x32xf32> to vector<48x32xf32>
    %49 = arith.addf %45, %48 : vector<48x32xf32>
    %c0_12 = arith.constant 0 : index
    %c0_13 = arith.constant 0 : index
    %c0_14 = arith.constant 0 : index
    %50 = vector.load %arg2[%c0_12, %c0_13, %c0_14] : memref<2x33x96xbf16, #tpu.memory_space<vmem>>, vector<1x33x96xbf16>
    %51 = vector.shape_cast %50 : vector<1x33x96xbf16> to vector<33x96xbf16>
    %c0_15 = arith.constant 0 : index
    %c0_16 = arith.constant 0 : index
    %c0_17 = arith.constant 0 : index
    %52 = vector.load %arg6[%c0_15, %c0_16, %c0_17] : memref<2x6x32xf32, #tpu.memory_space<vmem>>, vector<1x6x32xf32>
    %53 = vector.shape_cast %52 : vector<1x6x32xf32> to vector<6x32xf32>
    %54 = arith.truncf %49 : vector<48x32xf32> to vector<48x32xbf16>
    %55 = vector.extract_strided_slice %51 {offsets = [0, 0], sizes = [32, 96], strides = [1, 1]} : vector<33x96xbf16> to vector<32x96xbf16>
    %cst_18 = arith.constant dense<0.000000e+00> : vector<48x96xf32>
    %56 = tpu.matmul %54, %55, %cst_18 {dimension_numbers = #tpu.dot_dimension_numbers<[1], [0], [0], [1], [0, 0, 1, 1], [], []>} : vector<48x32xbf16>, vector<32x96xbf16>, vector<48x96xf32> -> vector<48x96xf32>
    %57 = vector.extract_strided_slice %51 {offsets = [32, 0], sizes = [1, 96], strides = [1, 1]} : vector<33x96xbf16> to vector<1x96xbf16>
    %58 = arith.extf %57 : vector<1x96xbf16> to vector<1x96xf32>
    %59 = vector.broadcast %58 : vector<1x96xf32> to vector<48x96xf32>
    %60 = arith.addf %56, %59 : vector<48x96xf32>
    %61 = vector.extract_strided_slice %60 {offsets = [0, 0], sizes = [48, 32], strides = [1, 1]} : vector<48x96xf32> to vector<48x32xf32>
    %62 = arith.truncf %61 : vector<48x32xf32> to vector<48x32xbf16>
    %63 = vector.extract_strided_slice %60 {offsets = [0, 32], sizes = [48, 32], strides = [1, 1]} : vector<48x96xf32> to vector<48x32xf32>
    %64 = vector.extract_strided_slice %60 {offsets = [0, 64], sizes = [48, 32], strides = [1, 1]} : vector<48x96xf32> to vector<48x32xf32>
    %cst_19 = arith.constant 0.000000e+00 : f32
    %65 = vector.shape_cast %25 : vector<1x32xi1> to vector<1x32xi1>
    %66 = vector.broadcast %65 : vector<1x32xi1> to vector<48x32xi1>
    %67 = vector.broadcast %cst_19 : f32 to vector<48x32xf32>
    %68 = arith.select %66, %63, %67 : vector<48x32xi1>, vector<48x32xf32>
    %69 = arith.truncf %68 : vector<48x32xf32> to vector<48x32xbf16>
    %cst_20 = arith.constant dense<0.000000e+00> : vector<48x48xf32>
    %70 = tpu.matmul %62, %69, %cst_20 {dimension_numbers = #tpu.dot_dimension_numbers<[1], [1], [0], [0], [0, 0, 1, 0], [], []>} : vector<48x32xbf16>, vector<48x32xbf16>, vector<48x48xf32> -> vector<48x48xf32>
    %cst_21 = arith.constant 0.353553385 : f32
    %71 = vector.broadcast %cst_21 : f32 to vector<48x48xf32>
    %72 = arith.mulf %70, %71 : vector<48x48xf32>
    %73 = arith.addf %72, %19 : vector<48x48xf32>
    %cst_22 = arith.constant dense<0xFF800000> : vector<48xf32>
    %74 = vector.multi_reduction <maximumf>, %73, %cst_22 [1] : vector<48x48xf32> to vector<48xf32>
    %75 = vector.shape_cast %74 : vector<48xf32> to vector<48x1xf32>
    %76 = vector.broadcast %75 : vector<48x1xf32> to vector<48x48xf32>
    %77 = arith.subf %73, %76 : vector<48x48xf32>
    %78 = math.exp %77 : vector<48x48xf32>
    %cst_23 = arith.constant dense<0.000000e+00> : vector<48xf32>
    %79 = vector.multi_reduction <add>, %78, %cst_23 [1] : vector<48x48xf32> to vector<48xf32>
    %80 = vector.shape_cast %79 : vector<48xf32> to vector<48x1xf32>
    %81 = tpu.reciprocal %80 {approx = true} : vector<48x1xf32> -> vector<48x1xf32>
    %82 = vector.broadcast %81 : vector<48x1xf32> to vector<48x48xf32>
    %83 = arith.mulf %78, %82 : vector<48x48xf32>
    %cst_24 = arith.constant 0.000000e+00 : f32
    %84 = vector.shape_cast %25 : vector<1x32xi1> to vector<1x32xi1>
    %85 = vector.broadcast %84 : vector<1x32xi1> to vector<48x32xi1>
    %86 = vector.broadcast %cst_24 : f32 to vector<48x32xf32>
    %87 = arith.select %85, %64, %86 : vector<48x32xi1>, vector<48x32xf32>
    %88 = arith.truncf %87 : vector<48x32xf32> to vector<48x32xbf16>
    %89 = arith.truncf %83 : vector<48x48xf32> to vector<48x48xbf16>
    %cst_25 = arith.constant dense<0.000000e+00> : vector<48x32xf32>
    %90 = tpu.matmul %89, %88, %cst_25 {dimension_numbers = #tpu.dot_dimension_numbers<[1], [0], [0], [1], [0, 0, 1, 1], [], []>} : vector<48x48xbf16>, vector<48x32xbf16>, vector<48x32xf32> -> vector<48x32xf32>
    %cst_26 = arith.constant 0.000000e+00 : f32
    %91 = vector.shape_cast %30 : vector<1x32xi1> to vector<1x32xi1>
    %92 = vector.broadcast %91 : vector<1x32xi1> to vector<48x32xi1>
    %93 = vector.broadcast %cst_26 : f32 to vector<48x32xf32>
    %94 = arith.select %92, %63, %93 : vector<48x32xi1>, vector<48x32xf32>
    %95 = arith.truncf %94 : vector<48x32xf32> to vector<48x32xbf16>
    %cst_27 = arith.constant dense<0.000000e+00> : vector<48x48xf32>
    %96 = tpu.matmul %62, %95, %cst_27 {dimension_numbers = #tpu.dot_dimension_numbers<[1], [1], [0], [0], [0, 0, 1, 0], [], []>} : vector<48x32xbf16>, vector<48x32xbf16>, vector<48x48xf32> -> vector<48x48xf32>
    %cst_28 = arith.constant 0.353553385 : f32
    %97 = vector.broadcast %cst_28 : f32 to vector<48x48xf32>
    %98 = arith.mulf %96, %97 : vector<48x48xf32>
    %99 = arith.addf %98, %19 : vector<48x48xf32>
    %cst_29 = arith.constant dense<0xFF800000> : vector<48xf32>
    %100 = vector.multi_reduction <maximumf>, %99, %cst_29 [1] : vector<48x48xf32> to vector<48xf32>
    %101 = vector.shape_cast %100 : vector<48xf32> to vector<48x1xf32>
    %102 = vector.broadcast %101 : vector<48x1xf32> to vector<48x48xf32>
    %103 = arith.subf %99, %102 : vector<48x48xf32>
    %104 = math.exp %103 : vector<48x48xf32>
    %cst_30 = arith.constant dense<0.000000e+00> : vector<48xf32>
    %105 = vector.multi_reduction <add>, %104, %cst_30 [1] : vector<48x48xf32> to vector<48xf32>
    %106 = vector.shape_cast %105 : vector<48xf32> to vector<48x1xf32>
    %107 = tpu.reciprocal %106 {approx = true} : vector<48x1xf32> -> vector<48x1xf32>
    %108 = vector.broadcast %107 : vector<48x1xf32> to vector<48x48xf32>
    %109 = arith.mulf %104, %108 : vector<48x48xf32>
    %cst_31 = arith.constant 0.000000e+00 : f32
    %110 = vector.shape_cast %30 : vector<1x32xi1> to vector<1x32xi1>
    %111 = vector.broadcast %110 : vector<1x32xi1> to vector<48x32xi1>
    %112 = vector.broadcast %cst_31 : f32 to vector<48x32xf32>
    %113 = arith.select %111, %64, %112 : vector<48x32xi1>, vector<48x32xf32>
    %114 = arith.truncf %113 : vector<48x32xf32> to vector<48x32xbf16>
    %115 = arith.truncf %109 : vector<48x48xf32> to vector<48x48xbf16>
    %cst_32 = arith.constant dense<0.000000e+00> : vector<48x32xf32>
    %116 = tpu.matmul %115, %114, %cst_32 {dimension_numbers = #tpu.dot_dimension_numbers<[1], [0], [0], [1], [0, 0, 1, 1], [], []>} : vector<48x48xbf16>, vector<48x32xbf16>, vector<48x32xf32> -> vector<48x32xf32>
    %117 = arith.addf %90, %116 : vector<48x32xf32>
    %cst_33 = arith.constant 0.000000e+00 : f32
    %118 = vector.shape_cast %35 : vector<1x32xi1> to vector<1x32xi1>
    %119 = vector.broadcast %118 : vector<1x32xi1> to vector<48x32xi1>
    %120 = vector.broadcast %cst_33 : f32 to vector<48x32xf32>
    %121 = arith.select %119, %63, %120 : vector<48x32xi1>, vector<48x32xf32>
    %122 = arith.truncf %121 : vector<48x32xf32> to vector<48x32xbf16>
    %cst_34 = arith.constant dense<0.000000e+00> : vector<48x48xf32>
    %123 = tpu.matmul %62, %122, %cst_34 {dimension_numbers = #tpu.dot_dimension_numbers<[1], [1], [0], [0], [0, 0, 1, 0], [], []>} : vector<48x32xbf16>, vector<48x32xbf16>, vector<48x48xf32> -> vector<48x48xf32>
    %cst_35 = arith.constant 0.353553385 : f32
    %124 = vector.broadcast %cst_35 : f32 to vector<48x48xf32>
    %125 = arith.mulf %123, %124 : vector<48x48xf32>
    %126 = arith.addf %125, %19 : vector<48x48xf32>
    %cst_36 = arith.constant dense<0xFF800000> : vector<48xf32>
    %127 = vector.multi_reduction <maximumf>, %126, %cst_36 [1] : vector<48x48xf32> to vector<48xf32>
    %128 = vector.shape_cast %127 : vector<48xf32> to vector<48x1xf32>
    %129 = vector.broadcast %128 : vector<48x1xf32> to vector<48x48xf32>
    %130 = arith.subf %126, %129 : vector<48x48xf32>
    %131 = math.exp %130 : vector<48x48xf32>
    %cst_37 = arith.constant dense<0.000000e+00> : vector<48xf32>
    %132 = vector.multi_reduction <add>, %131, %cst_37 [1] : vector<48x48xf32> to vector<48xf32>
    %133 = vector.shape_cast %132 : vector<48xf32> to vector<48x1xf32>
    %134 = tpu.reciprocal %133 {approx = true} : vector<48x1xf32> -> vector<48x1xf32>
    %135 = vector.broadcast %134 : vector<48x1xf32> to vector<48x48xf32>
    %136 = arith.mulf %131, %135 : vector<48x48xf32>
    %cst_38 = arith.constant 0.000000e+00 : f32
    %137 = vector.shape_cast %35 : vector<1x32xi1> to vector<1x32xi1>
    %138 = vector.broadcast %137 : vector<1x32xi1> to vector<48x32xi1>
    %139 = vector.broadcast %cst_38 : f32 to vector<48x32xf32>
    %140 = arith.select %138, %64, %139 : vector<48x32xi1>, vector<48x32xf32>
    %141 = arith.truncf %140 : vector<48x32xf32> to vector<48x32xbf16>
    %142 = arith.truncf %136 : vector<48x48xf32> to vector<48x48xbf16>
    %cst_39 = arith.constant dense<0.000000e+00> : vector<48x32xf32>
    %143 = tpu.matmul %142, %141, %cst_39 {dimension_numbers = #tpu.dot_dimension_numbers<[1], [0], [0], [1], [0, 0, 1, 1], [], []>} : vector<48x48xbf16>, vector<48x32xbf16>, vector<48x32xf32> -> vector<48x32xf32>
    %144 = arith.addf %117, %143 : vector<48x32xf32>
    %cst_40 = arith.constant 0.000000e+00 : f32
    %145 = vector.shape_cast %40 : vector<1x32xi1> to vector<1x32xi1>
    %146 = vector.broadcast %145 : vector<1x32xi1> to vector<48x32xi1>
    %147 = vector.broadcast %cst_40 : f32 to vector<48x32xf32>
    %148 = arith.select %146, %63, %147 : vector<48x32xi1>, vector<48x32xf32>
    %149 = arith.truncf %148 : vector<48x32xf32> to vector<48x32xbf16>
    %cst_41 = arith.constant dense<0.000000e+00> : vector<48x48xf32>
    %150 = tpu.matmul %62, %149, %cst_41 {dimension_numbers = #tpu.dot_dimension_numbers<[1], [1], [0], [0], [0, 0, 1, 0], [], []>} : vector<48x32xbf16>, vector<48x32xbf16>, vector<48x48xf32> -> vector<48x48xf32>
    %cst_42 = arith.constant 0.353553385 : f32
    %151 = vector.broadcast %cst_42 : f32 to vector<48x48xf32>
    %152 = arith.mulf %150, %151 : vector<48x48xf32>
    %153 = arith.addf %152, %19 : vector<48x48xf32>
    %cst_43 = arith.constant dense<0xFF800000> : vector<48xf32>
    %154 = vector.multi_reduction <maximumf>, %153, %cst_43 [1] : vector<48x48xf32> to vector<48xf32>
    %155 = vector.shape_cast %154 : vector<48xf32> to vector<48x1xf32>
    %156 = vector.broadcast %155 : vector<48x1xf32> to vector<48x48xf32>
    %157 = arith.subf %153, %156 : vector<48x48xf32>
    %158 = math.exp %157 : vector<48x48xf32>
    %cst_44 = arith.constant dense<0.000000e+00> : vector<48xf32>
    %159 = vector.multi_reduction <add>, %158, %cst_44 [1] : vector<48x48xf32> to vector<48xf32>
    %160 = vector.shape_cast %159 : vector<48xf32> to vector<48x1xf32>
    %161 = tpu.reciprocal %160 {approx = true} : vector<48x1xf32> -> vector<48x1xf32>
    %162 = vector.broadcast %161 : vector<48x1xf32> to vector<48x48xf32>
    %163 = arith.mulf %158, %162 : vector<48x48xf32>
    %cst_45 = arith.constant 0.000000e+00 : f32
    %164 = vector.shape_cast %40 : vector<1x32xi1> to vector<1x32xi1>
    %165 = vector.broadcast %164 : vector<1x32xi1> to vector<48x32xi1>
    %166 = vector.broadcast %cst_45 : f32 to vector<48x32xf32>
    %167 = arith.select %165, %64, %166 : vector<48x32xi1>, vector<48x32xf32>
    %168 = arith.truncf %167 : vector<48x32xf32> to vector<48x32xbf16>
    %169 = arith.truncf %163 : vector<48x48xf32> to vector<48x48xbf16>
    %cst_46 = arith.constant dense<0.000000e+00> : vector<48x32xf32>
    %170 = tpu.matmul %169, %168, %cst_46 {dimension_numbers = #tpu.dot_dimension_numbers<[1], [0], [0], [1], [0, 0, 1, 1], [], []>} : vector<48x48xbf16>, vector<48x32xbf16>, vector<48x32xf32> -> vector<48x32xf32>
    %171 = arith.addf %144, %170 : vector<48x32xf32>
    %172 = arith.truncf %171 : vector<48x32xf32> to vector<48x32xbf16>
    %c0_47 = arith.constant 0 : index
    %c0_48 = arith.constant 0 : index
    %c0_49 = arith.constant 0 : index
    %173 = vector.load %arg3[%c0_47, %c0_48, %c0_49] : memref<2x32x32xbf16, #tpu.memory_space<vmem>>, vector<1x32x32xbf16>
    %174 = vector.shape_cast %173 : vector<1x32x32xbf16> to vector<32x32xbf16>
    %cst_50 = arith.constant dense<0.000000e+00> : vector<48x32xf32>
    %175 = tpu.matmul %172, %174, %cst_50 {dimension_numbers = #tpu.dot_dimension_numbers<[1], [0], [0], [1], [0, 0, 1, 1], [], []>} : vector<48x32xbf16>, vector<32x32xbf16>, vector<48x32xf32> -> vector<48x32xf32>
    %176 = arith.addf %49, %175 : vector<48x32xf32>
    %177 = vector.extract_strided_slice %53 {offsets = [0, 0], sizes = [1, 32], strides = [1, 1]} : vector<6x32xf32> to vector<1x32xf32>
    %178 = vector.broadcast %177 : vector<1x32xf32> to vector<48x32xf32>
    %179 = arith.addf %176, %178 : vector<48x32xf32>
    %180 = vector.extract_strided_slice %53 {offsets = [1, 0], sizes = [1, 32], strides = [1, 1]} : vector<6x32xf32> to vector<1x32xf32>
    %181 = vector.extract_strided_slice %53 {offsets = [2, 0], sizes = [1, 32], strides = [1, 1]} : vector<6x32xf32> to vector<1x32xf32>
    %cst_51 = arith.constant dense<0.000000e+00> : vector<48xf32>
    %182 = vector.multi_reduction <add>, %179, %cst_51 [1] : vector<48x32xf32> to vector<48xf32>
    %183 = vector.shape_cast %182 : vector<48xf32> to vector<48x1xf32>
    %cst_52 = arith.constant 3.200000e+01 : f32
    %184 = vector.broadcast %cst_52 : f32 to vector<48x1xf32>
    %185 = arith.divf %183, %184 : vector<48x1xf32>
    %186 = vector.broadcast %185 : vector<48x1xf32> to vector<48x32xf32>
    %187 = arith.subf %179, %186 : vector<48x32xf32>
    %188 = arith.mulf %187, %187 : vector<48x32xf32>
    %cst_53 = arith.constant dense<0.000000e+00> : vector<48xf32>
    %189 = vector.multi_reduction <add>, %188, %cst_53 [1] : vector<48x32xf32> to vector<48xf32>
    %190 = vector.shape_cast %189 : vector<48xf32> to vector<48x1xf32>
    %cst_54 = arith.constant 3.200000e+01 : f32
    %191 = vector.broadcast %cst_54 : f32 to vector<48x1xf32>
    %192 = arith.divf %190, %191 : vector<48x1xf32>
    %193 = vector.broadcast %185 : vector<48x1xf32> to vector<48x32xf32>
    %194 = arith.subf %179, %193 : vector<48x32xf32>
    %cst_55 = arith.constant 9.99999974E-6 : f32
    %195 = vector.broadcast %cst_55 : f32 to vector<48x1xf32>
    %196 = arith.addf %192, %195 : vector<48x1xf32>
    %197 = math.rsqrt %196 : vector<48x1xf32>
    %198 = vector.broadcast %197 : vector<48x1xf32> to vector<48x32xf32>
    %199 = arith.mulf %194, %198 : vector<48x32xf32>
    %200 = vector.broadcast %180 : vector<1x32xf32> to vector<48x32xf32>
    %201 = arith.mulf %199, %200 : vector<48x32xf32>
    %202 = vector.broadcast %181 : vector<1x32xf32> to vector<48x32xf32>
    %203 = arith.addf %201, %202 : vector<48x32xf32>
    %c0_56 = arith.constant 0 : index
    %c0_57 = arith.constant 0 : index
    %c0_58 = arith.constant 0 : index
    %204 = vector.load %arg4[%c0_56, %c0_57, %c0_58] : memref<2x33x64xbf16, #tpu.memory_space<vmem>>, vector<1x33x64xbf16>
    %205 = vector.shape_cast %204 : vector<1x33x64xbf16> to vector<33x64xbf16>
    %206 = arith.truncf %203 : vector<48x32xf32> to vector<48x32xbf16>
    %207 = vector.extract_strided_slice %205 {offsets = [0, 0], sizes = [32, 64], strides = [1, 1]} : vector<33x64xbf16> to vector<32x64xbf16>
    %cst_59 = arith.constant dense<0.000000e+00> : vector<48x64xf32>
    %208 = tpu.matmul %206, %207, %cst_59 {dimension_numbers = #tpu.dot_dimension_numbers<[1], [0], [0], [1], [0, 0, 1, 1], [], []>} : vector<48x32xbf16>, vector<32x64xbf16>, vector<48x64xf32> -> vector<48x64xf32>
    %209 = vector.extract_strided_slice %205 {offsets = [32, 0], sizes = [1, 64], strides = [1, 1]} : vector<33x64xbf16> to vector<1x64xbf16>
    %210 = arith.extf %209 : vector<1x64xbf16> to vector<1x64xf32>
    %211 = vector.broadcast %210 : vector<1x64xf32> to vector<48x64xf32>
    %212 = arith.addf %208, %211 : vector<48x64xf32>
    %cst_60 = arith.constant 0.000000e+00 : f32
    %213 = vector.broadcast %cst_60 : f32 to vector<48x64xf32>
    %214 = arith.maximumf %212, %213 : vector<48x64xf32>
    %215 = arith.truncf %214 : vector<48x64xf32> to vector<48x64xbf16>
    %c0_61 = arith.constant 0 : index
    %c0_62 = arith.constant 0 : index
    %c0_63 = arith.constant 0 : index
    %216 = vector.load %arg5[%c0_61, %c0_62, %c0_63] : memref<2x32x64xbf16, #tpu.memory_space<vmem>>, vector<1x32x64xbf16>
    %217 = vector.shape_cast %216 : vector<1x32x64xbf16> to vector<32x64xbf16>
    %cst_64 = arith.constant dense<0.000000e+00> : vector<48x32xf32>
    %218 = tpu.matmul %215, %217, %cst_64 {dimension_numbers = #tpu.dot_dimension_numbers<[1], [1], [0], [0], [0, 0, 1, 0], [], []>} : vector<48x64xbf16>, vector<32x64xbf16>, vector<48x32xf32> -> vector<48x32xf32>
    %219 = vector.extract_strided_slice %53 {offsets = [5, 0], sizes = [1, 32], strides = [1, 1]} : vector<6x32xf32> to vector<1x32xf32>
    %220 = vector.broadcast %219 : vector<1x32xf32> to vector<48x32xf32>
    %221 = arith.addf %218, %220 : vector<48x32xf32>
    %222 = arith.addf %203, %221 : vector<48x32xf32>
    %223 = vector.extract_strided_slice %53 {offsets = [3, 0], sizes = [1, 32], strides = [1, 1]} : vector<6x32xf32> to vector<1x32xf32>
    %224 = vector.extract_strided_slice %53 {offsets = [4, 0], sizes = [1, 32], strides = [1, 1]} : vector<6x32xf32> to vector<1x32xf32>
    %cst_65 = arith.constant dense<0.000000e+00> : vector<48xf32>
    %225 = vector.multi_reduction <add>, %222, %cst_65 [1] : vector<48x32xf32> to vector<48xf32>
    %226 = vector.shape_cast %225 : vector<48xf32> to vector<48x1xf32>
    %cst_66 = arith.constant 3.200000e+01 : f32
    %227 = vector.broadcast %cst_66 : f32 to vector<48x1xf32>
    %228 = arith.divf %226, %227 : vector<48x1xf32>
    %229 = vector.broadcast %228 : vector<48x1xf32> to vector<48x32xf32>
    %230 = arith.subf %222, %229 : vector<48x32xf32>
    %231 = arith.mulf %230, %230 : vector<48x32xf32>
    %cst_67 = arith.constant dense<0.000000e+00> : vector<48xf32>
    %232 = vector.multi_reduction <add>, %231, %cst_67 [1] : vector<48x32xf32> to vector<48xf32>
    %233 = vector.shape_cast %232 : vector<48xf32> to vector<48x1xf32>
    %cst_68 = arith.constant 3.200000e+01 : f32
    %234 = vector.broadcast %cst_68 : f32 to vector<48x1xf32>
    %235 = arith.divf %233, %234 : vector<48x1xf32>
    %236 = vector.broadcast %228 : vector<48x1xf32> to vector<48x32xf32>
    %237 = arith.subf %222, %236 : vector<48x32xf32>
    %cst_69 = arith.constant 9.99999974E-6 : f32
    %238 = vector.broadcast %cst_69 : f32 to vector<48x1xf32>
    %239 = arith.addf %235, %238 : vector<48x1xf32>
    %240 = math.rsqrt %239 : vector<48x1xf32>
    %241 = vector.broadcast %240 : vector<48x1xf32> to vector<48x32xf32>
    %242 = arith.mulf %237, %241 : vector<48x32xf32>
    %243 = vector.broadcast %223 : vector<1x32xf32> to vector<48x32xf32>
    %244 = arith.mulf %242, %243 : vector<48x32xf32>
    %245 = vector.broadcast %224 : vector<1x32xf32> to vector<48x32xf32>
    %246 = arith.addf %244, %245 : vector<48x32xf32>
    %c1 = arith.constant 1 : index
    %c0_70 = arith.constant 0 : index
    %c0_71 = arith.constant 0 : index
    %247 = vector.load %arg2[%c1, %c0_70, %c0_71] : memref<2x33x96xbf16, #tpu.memory_space<vmem>>, vector<1x33x96xbf16>
    %248 = vector.shape_cast %247 : vector<1x33x96xbf16> to vector<33x96xbf16>
    %c1_72 = arith.constant 1 : index
    %c0_73 = arith.constant 0 : index
    %c0_74 = arith.constant 0 : index
    %249 = vector.load %arg6[%c1_72, %c0_73, %c0_74] : memref<2x6x32xf32, #tpu.memory_space<vmem>>, vector<1x6x32xf32>
    %250 = vector.shape_cast %249 : vector<1x6x32xf32> to vector<6x32xf32>
    %251 = arith.truncf %246 : vector<48x32xf32> to vector<48x32xbf16>
    %252 = vector.extract_strided_slice %248 {offsets = [0, 0], sizes = [32, 96], strides = [1, 1]} : vector<33x96xbf16> to vector<32x96xbf16>
    %cst_75 = arith.constant dense<0.000000e+00> : vector<48x96xf32>
    %253 = tpu.matmul %251, %252, %cst_75 {dimension_numbers = #tpu.dot_dimension_numbers<[1], [0], [0], [1], [0, 0, 1, 1], [], []>} : vector<48x32xbf16>, vector<32x96xbf16>, vector<48x96xf32> -> vector<48x96xf32>
    %254 = vector.extract_strided_slice %248 {offsets = [32, 0], sizes = [1, 96], strides = [1, 1]} : vector<33x96xbf16> to vector<1x96xbf16>
    %255 = arith.extf %254 : vector<1x96xbf16> to vector<1x96xf32>
    %256 = vector.broadcast %255 : vector<1x96xf32> to vector<48x96xf32>
    %257 = arith.addf %253, %256 : vector<48x96xf32>
    %258 = vector.extract_strided_slice %257 {offsets = [0, 0], sizes = [48, 32], strides = [1, 1]} : vector<48x96xf32> to vector<48x32xf32>
    %259 = arith.truncf %258 : vector<48x32xf32> to vector<48x32xbf16>
    %260 = vector.extract_strided_slice %257 {offsets = [0, 32], sizes = [48, 32], strides = [1, 1]} : vector<48x96xf32> to vector<48x32xf32>
    %261 = vector.extract_strided_slice %257 {offsets = [0, 64], sizes = [48, 32], strides = [1, 1]} : vector<48x96xf32> to vector<48x32xf32>
    %cst_76 = arith.constant 0.000000e+00 : f32
    %262 = vector.shape_cast %25 : vector<1x32xi1> to vector<1x32xi1>
    %263 = vector.broadcast %262 : vector<1x32xi1> to vector<48x32xi1>
    %264 = vector.broadcast %cst_76 : f32 to vector<48x32xf32>
    %265 = arith.select %263, %260, %264 : vector<48x32xi1>, vector<48x32xf32>
    %266 = arith.truncf %265 : vector<48x32xf32> to vector<48x32xbf16>
    %cst_77 = arith.constant dense<0.000000e+00> : vector<48x48xf32>
    %267 = tpu.matmul %259, %266, %cst_77 {dimension_numbers = #tpu.dot_dimension_numbers<[1], [1], [0], [0], [0, 0, 1, 0], [], []>} : vector<48x32xbf16>, vector<48x32xbf16>, vector<48x48xf32> -> vector<48x48xf32>
    %cst_78 = arith.constant 0.353553385 : f32
    %268 = vector.broadcast %cst_78 : f32 to vector<48x48xf32>
    %269 = arith.mulf %267, %268 : vector<48x48xf32>
    %270 = arith.addf %269, %19 : vector<48x48xf32>
    %cst_79 = arith.constant dense<0xFF800000> : vector<48xf32>
    %271 = vector.multi_reduction <maximumf>, %270, %cst_79 [1] : vector<48x48xf32> to vector<48xf32>
    %272 = vector.shape_cast %271 : vector<48xf32> to vector<48x1xf32>
    %273 = vector.broadcast %272 : vector<48x1xf32> to vector<48x48xf32>
    %274 = arith.subf %270, %273 : vector<48x48xf32>
    %275 = math.exp %274 : vector<48x48xf32>
    %cst_80 = arith.constant dense<0.000000e+00> : vector<48xf32>
    %276 = vector.multi_reduction <add>, %275, %cst_80 [1] : vector<48x48xf32> to vector<48xf32>
    %277 = vector.shape_cast %276 : vector<48xf32> to vector<48x1xf32>
    %278 = tpu.reciprocal %277 {approx = true} : vector<48x1xf32> -> vector<48x1xf32>
    %279 = vector.broadcast %278 : vector<48x1xf32> to vector<48x48xf32>
    %280 = arith.mulf %275, %279 : vector<48x48xf32>
    %cst_81 = arith.constant 0.000000e+00 : f32
    %281 = vector.shape_cast %25 : vector<1x32xi1> to vector<1x32xi1>
    %282 = vector.broadcast %281 : vector<1x32xi1> to vector<48x32xi1>
    %283 = vector.broadcast %cst_81 : f32 to vector<48x32xf32>
    %284 = arith.select %282, %261, %283 : vector<48x32xi1>, vector<48x32xf32>
    %285 = arith.truncf %284 : vector<48x32xf32> to vector<48x32xbf16>
    %286 = arith.truncf %280 : vector<48x48xf32> to vector<48x48xbf16>
    %cst_82 = arith.constant dense<0.000000e+00> : vector<48x32xf32>
    %287 = tpu.matmul %286, %285, %cst_82 {dimension_numbers = #tpu.dot_dimension_numbers<[1], [0], [0], [1], [0, 0, 1, 1], [], []>} : vector<48x48xbf16>, vector<48x32xbf16>, vector<48x32xf32> -> vector<48x32xf32>
    %cst_83 = arith.constant 0.000000e+00 : f32
    %288 = vector.shape_cast %30 : vector<1x32xi1> to vector<1x32xi1>
    %289 = vector.broadcast %288 : vector<1x32xi1> to vector<48x32xi1>
    %290 = vector.broadcast %cst_83 : f32 to vector<48x32xf32>
    %291 = arith.select %289, %260, %290 : vector<48x32xi1>, vector<48x32xf32>
    %292 = arith.truncf %291 : vector<48x32xf32> to vector<48x32xbf16>
    %cst_84 = arith.constant dense<0.000000e+00> : vector<48x48xf32>
    %293 = tpu.matmul %259, %292, %cst_84 {dimension_numbers = #tpu.dot_dimension_numbers<[1], [1], [0], [0], [0, 0, 1, 0], [], []>} : vector<48x32xbf16>, vector<48x32xbf16>, vector<48x48xf32> -> vector<48x48xf32>
    %cst_85 = arith.constant 0.353553385 : f32
    %294 = vector.broadcast %cst_85 : f32 to vector<48x48xf32>
    %295 = arith.mulf %293, %294 : vector<48x48xf32>
    %296 = arith.addf %295, %19 : vector<48x48xf32>
    %cst_86 = arith.constant dense<0xFF800000> : vector<48xf32>
    %297 = vector.multi_reduction <maximumf>, %296, %cst_86 [1] : vector<48x48xf32> to vector<48xf32>
    %298 = vector.shape_cast %297 : vector<48xf32> to vector<48x1xf32>
    %299 = vector.broadcast %298 : vector<48x1xf32> to vector<48x48xf32>
    %300 = arith.subf %296, %299 : vector<48x48xf32>
    %301 = math.exp %300 : vector<48x48xf32>
    %cst_87 = arith.constant dense<0.000000e+00> : vector<48xf32>
    %302 = vector.multi_reduction <add>, %301, %cst_87 [1] : vector<48x48xf32> to vector<48xf32>
    %303 = vector.shape_cast %302 : vector<48xf32> to vector<48x1xf32>
    %304 = tpu.reciprocal %303 {approx = true} : vector<48x1xf32> -> vector<48x1xf32>
    %305 = vector.broadcast %304 : vector<48x1xf32> to vector<48x48xf32>
    %306 = arith.mulf %301, %305 : vector<48x48xf32>
    %cst_88 = arith.constant 0.000000e+00 : f32
    %307 = vector.shape_cast %30 : vector<1x32xi1> to vector<1x32xi1>
    %308 = vector.broadcast %307 : vector<1x32xi1> to vector<48x32xi1>
    %309 = vector.broadcast %cst_88 : f32 to vector<48x32xf32>
    %310 = arith.select %308, %261, %309 : vector<48x32xi1>, vector<48x32xf32>
    %311 = arith.truncf %310 : vector<48x32xf32> to vector<48x32xbf16>
    %312 = arith.truncf %306 : vector<48x48xf32> to vector<48x48xbf16>
    %cst_89 = arith.constant dense<0.000000e+00> : vector<48x32xf32>
    %313 = tpu.matmul %312, %311, %cst_89 {dimension_numbers = #tpu.dot_dimension_numbers<[1], [0], [0], [1], [0, 0, 1, 1], [], []>} : vector<48x48xbf16>, vector<48x32xbf16>, vector<48x32xf32> -> vector<48x32xf32>
    %314 = arith.addf %287, %313 : vector<48x32xf32>
    %cst_90 = arith.constant 0.000000e+00 : f32
    %315 = vector.shape_cast %35 : vector<1x32xi1> to vector<1x32xi1>
    %316 = vector.broadcast %315 : vector<1x32xi1> to vector<48x32xi1>
    %317 = vector.broadcast %cst_90 : f32 to vector<48x32xf32>
    %318 = arith.select %316, %260, %317 : vector<48x32xi1>, vector<48x32xf32>
    %319 = arith.truncf %318 : vector<48x32xf32> to vector<48x32xbf16>
    %cst_91 = arith.constant dense<0.000000e+00> : vector<48x48xf32>
    %320 = tpu.matmul %259, %319, %cst_91 {dimension_numbers = #tpu.dot_dimension_numbers<[1], [1], [0], [0], [0, 0, 1, 0], [], []>} : vector<48x32xbf16>, vector<48x32xbf16>, vector<48x48xf32> -> vector<48x48xf32>
    %cst_92 = arith.constant 0.353553385 : f32
    %321 = vector.broadcast %cst_92 : f32 to vector<48x48xf32>
    %322 = arith.mulf %320, %321 : vector<48x48xf32>
    %323 = arith.addf %322, %19 : vector<48x48xf32>
    %cst_93 = arith.constant dense<0xFF800000> : vector<48xf32>
    %324 = vector.multi_reduction <maximumf>, %323, %cst_93 [1] : vector<48x48xf32> to vector<48xf32>
    %325 = vector.shape_cast %324 : vector<48xf32> to vector<48x1xf32>
    %326 = vector.broadcast %325 : vector<48x1xf32> to vector<48x48xf32>
    %327 = arith.subf %323, %326 : vector<48x48xf32>
    %328 = math.exp %327 : vector<48x48xf32>
    %cst_94 = arith.constant dense<0.000000e+00> : vector<48xf32>
    %329 = vector.multi_reduction <add>, %328, %cst_94 [1] : vector<48x48xf32> to vector<48xf32>
    %330 = vector.shape_cast %329 : vector<48xf32> to vector<48x1xf32>
    %331 = tpu.reciprocal %330 {approx = true} : vector<48x1xf32> -> vector<48x1xf32>
    %332 = vector.broadcast %331 : vector<48x1xf32> to vector<48x48xf32>
    %333 = arith.mulf %328, %332 : vector<48x48xf32>
    %cst_95 = arith.constant 0.000000e+00 : f32
    %334 = vector.shape_cast %35 : vector<1x32xi1> to vector<1x32xi1>
    %335 = vector.broadcast %334 : vector<1x32xi1> to vector<48x32xi1>
    %336 = vector.broadcast %cst_95 : f32 to vector<48x32xf32>
    %337 = arith.select %335, %261, %336 : vector<48x32xi1>, vector<48x32xf32>
    %338 = arith.truncf %337 : vector<48x32xf32> to vector<48x32xbf16>
    %339 = arith.truncf %333 : vector<48x48xf32> to vector<48x48xbf16>
    %cst_96 = arith.constant dense<0.000000e+00> : vector<48x32xf32>
    %340 = tpu.matmul %339, %338, %cst_96 {dimension_numbers = #tpu.dot_dimension_numbers<[1], [0], [0], [1], [0, 0, 1, 1], [], []>} : vector<48x48xbf16>, vector<48x32xbf16>, vector<48x32xf32> -> vector<48x32xf32>
    %341 = arith.addf %314, %340 : vector<48x32xf32>
    %cst_97 = arith.constant 0.000000e+00 : f32
    %342 = vector.shape_cast %40 : vector<1x32xi1> to vector<1x32xi1>
    %343 = vector.broadcast %342 : vector<1x32xi1> to vector<48x32xi1>
    %344 = vector.broadcast %cst_97 : f32 to vector<48x32xf32>
    %345 = arith.select %343, %260, %344 : vector<48x32xi1>, vector<48x32xf32>
    %346 = arith.truncf %345 : vector<48x32xf32> to vector<48x32xbf16>
    %cst_98 = arith.constant dense<0.000000e+00> : vector<48x48xf32>
    %347 = tpu.matmul %259, %346, %cst_98 {dimension_numbers = #tpu.dot_dimension_numbers<[1], [1], [0], [0], [0, 0, 1, 0], [], []>} : vector<48x32xbf16>, vector<48x32xbf16>, vector<48x48xf32> -> vector<48x48xf32>
    %cst_99 = arith.constant 0.353553385 : f32
    %348 = vector.broadcast %cst_99 : f32 to vector<48x48xf32>
    %349 = arith.mulf %347, %348 : vector<48x48xf32>
    %350 = arith.addf %349, %19 : vector<48x48xf32>
    %cst_100 = arith.constant dense<0xFF800000> : vector<48xf32>
    %351 = vector.multi_reduction <maximumf>, %350, %cst_100 [1] : vector<48x48xf32> to vector<48xf32>
    %352 = vector.shape_cast %351 : vector<48xf32> to vector<48x1xf32>
    %353 = vector.broadcast %352 : vector<48x1xf32> to vector<48x48xf32>
    %354 = arith.subf %350, %353 : vector<48x48xf32>
    %355 = math.exp %354 : vector<48x48xf32>
    %cst_101 = arith.constant dense<0.000000e+00> : vector<48xf32>
    %356 = vector.multi_reduction <add>, %355, %cst_101 [1] : vector<48x48xf32> to vector<48xf32>
    %357 = vector.shape_cast %356 : vector<48xf32> to vector<48x1xf32>
    %358 = tpu.reciprocal %357 {approx = true} : vector<48x1xf32> -> vector<48x1xf32>
    %359 = vector.broadcast %358 : vector<48x1xf32> to vector<48x48xf32>
    %360 = arith.mulf %355, %359 : vector<48x48xf32>
    %cst_102 = arith.constant 0.000000e+00 : f32
    %361 = vector.shape_cast %40 : vector<1x32xi1> to vector<1x32xi1>
    %362 = vector.broadcast %361 : vector<1x32xi1> to vector<48x32xi1>
    %363 = vector.broadcast %cst_102 : f32 to vector<48x32xf32>
    %364 = arith.select %362, %261, %363 : vector<48x32xi1>, vector<48x32xf32>
    %365 = arith.truncf %364 : vector<48x32xf32> to vector<48x32xbf16>
    %366 = arith.truncf %360 : vector<48x48xf32> to vector<48x48xbf16>
    %cst_103 = arith.constant dense<0.000000e+00> : vector<48x32xf32>
    %367 = tpu.matmul %366, %365, %cst_103 {dimension_numbers = #tpu.dot_dimension_numbers<[1], [0], [0], [1], [0, 0, 1, 1], [], []>} : vector<48x48xbf16>, vector<48x32xbf16>, vector<48x32xf32> -> vector<48x32xf32>
    %368 = arith.addf %341, %367 : vector<48x32xf32>
    %369 = arith.truncf %368 : vector<48x32xf32> to vector<48x32xbf16>
    %c1_104 = arith.constant 1 : index
    %c0_105 = arith.constant 0 : index
    %c0_106 = arith.constant 0 : index
    %370 = vector.load %arg3[%c1_104, %c0_105, %c0_106] : memref<2x32x32xbf16, #tpu.memory_space<vmem>>, vector<1x32x32xbf16>
    %371 = vector.shape_cast %370 : vector<1x32x32xbf16> to vector<32x32xbf16>
    %cst_107 = arith.constant dense<0.000000e+00> : vector<48x32xf32>
    %372 = tpu.matmul %369, %371, %cst_107 {dimension_numbers = #tpu.dot_dimension_numbers<[1], [0], [0], [1], [0, 0, 1, 1], [], []>} : vector<48x32xbf16>, vector<32x32xbf16>, vector<48x32xf32> -> vector<48x32xf32>
    %373 = arith.addf %246, %372 : vector<48x32xf32>
    %374 = vector.extract_strided_slice %250 {offsets = [0, 0], sizes = [1, 32], strides = [1, 1]} : vector<6x32xf32> to vector<1x32xf32>
    %375 = vector.broadcast %374 : vector<1x32xf32> to vector<48x32xf32>
    %376 = arith.addf %373, %375 : vector<48x32xf32>
    %377 = vector.extract_strided_slice %250 {offsets = [1, 0], sizes = [1, 32], strides = [1, 1]} : vector<6x32xf32> to vector<1x32xf32>
    %378 = vector.extract_strided_slice %250 {offsets = [2, 0], sizes = [1, 32], strides = [1, 1]} : vector<6x32xf32> to vector<1x32xf32>
    %cst_108 = arith.constant dense<0.000000e+00> : vector<48xf32>
    %379 = vector.multi_reduction <add>, %376, %cst_108 [1] : vector<48x32xf32> to vector<48xf32>
    %380 = vector.shape_cast %379 : vector<48xf32> to vector<48x1xf32>
    %cst_109 = arith.constant 3.200000e+01 : f32
    %381 = vector.broadcast %cst_109 : f32 to vector<48x1xf32>
    %382 = arith.divf %380, %381 : vector<48x1xf32>
    %383 = vector.broadcast %382 : vector<48x1xf32> to vector<48x32xf32>
    %384 = arith.subf %376, %383 : vector<48x32xf32>
    %385 = arith.mulf %384, %384 : vector<48x32xf32>
    %cst_110 = arith.constant dense<0.000000e+00> : vector<48xf32>
    %386 = vector.multi_reduction <add>, %385, %cst_110 [1] : vector<48x32xf32> to vector<48xf32>
    %387 = vector.shape_cast %386 : vector<48xf32> to vector<48x1xf32>
    %cst_111 = arith.constant 3.200000e+01 : f32
    %388 = vector.broadcast %cst_111 : f32 to vector<48x1xf32>
    %389 = arith.divf %387, %388 : vector<48x1xf32>
    %390 = vector.broadcast %382 : vector<48x1xf32> to vector<48x32xf32>
    %391 = arith.subf %376, %390 : vector<48x32xf32>
    %cst_112 = arith.constant 9.99999974E-6 : f32
    %392 = vector.broadcast %cst_112 : f32 to vector<48x1xf32>
    %393 = arith.addf %389, %392 : vector<48x1xf32>
    %394 = math.rsqrt %393 : vector<48x1xf32>
    %395 = vector.broadcast %394 : vector<48x1xf32> to vector<48x32xf32>
    %396 = arith.mulf %391, %395 : vector<48x32xf32>
    %397 = vector.broadcast %377 : vector<1x32xf32> to vector<48x32xf32>
    %398 = arith.mulf %396, %397 : vector<48x32xf32>
    %399 = vector.broadcast %378 : vector<1x32xf32> to vector<48x32xf32>
    %400 = arith.addf %398, %399 : vector<48x32xf32>
    %c1_113 = arith.constant 1 : index
    %c0_114 = arith.constant 0 : index
    %c0_115 = arith.constant 0 : index
    %401 = vector.load %arg4[%c1_113, %c0_114, %c0_115] : memref<2x33x64xbf16, #tpu.memory_space<vmem>>, vector<1x33x64xbf16>
    %402 = vector.shape_cast %401 : vector<1x33x64xbf16> to vector<33x64xbf16>
    %403 = arith.truncf %400 : vector<48x32xf32> to vector<48x32xbf16>
    %404 = vector.extract_strided_slice %402 {offsets = [0, 0], sizes = [32, 64], strides = [1, 1]} : vector<33x64xbf16> to vector<32x64xbf16>
    %cst_116 = arith.constant dense<0.000000e+00> : vector<48x64xf32>
    %405 = tpu.matmul %403, %404, %cst_116 {dimension_numbers = #tpu.dot_dimension_numbers<[1], [0], [0], [1], [0, 0, 1, 1], [], []>} : vector<48x32xbf16>, vector<32x64xbf16>, vector<48x64xf32> -> vector<48x64xf32>
    %406 = vector.extract_strided_slice %402 {offsets = [32, 0], sizes = [1, 64], strides = [1, 1]} : vector<33x64xbf16> to vector<1x64xbf16>
    %407 = arith.extf %406 : vector<1x64xbf16> to vector<1x64xf32>
    %408 = vector.broadcast %407 : vector<1x64xf32> to vector<48x64xf32>
    %409 = arith.addf %405, %408 : vector<48x64xf32>
    %cst_117 = arith.constant 0.000000e+00 : f32
    %410 = vector.broadcast %cst_117 : f32 to vector<48x64xf32>
    %411 = arith.maximumf %409, %410 : vector<48x64xf32>
    %412 = arith.truncf %411 : vector<48x64xf32> to vector<48x64xbf16>
    %c1_118 = arith.constant 1 : index
    %c0_119 = arith.constant 0 : index
    %c0_120 = arith.constant 0 : index
    %413 = vector.load %arg5[%c1_118, %c0_119, %c0_120] : memref<2x32x64xbf16, #tpu.memory_space<vmem>>, vector<1x32x64xbf16>
    %414 = vector.shape_cast %413 : vector<1x32x64xbf16> to vector<32x64xbf16>
    %cst_121 = arith.constant dense<0.000000e+00> : vector<48x32xf32>
    %415 = tpu.matmul %412, %414, %cst_121 {dimension_numbers = #tpu.dot_dimension_numbers<[1], [1], [0], [0], [0, 0, 1, 0], [], []>} : vector<48x64xbf16>, vector<32x64xbf16>, vector<48x32xf32> -> vector<48x32xf32>
    %416 = vector.extract_strided_slice %250 {offsets = [5, 0], sizes = [1, 32], strides = [1, 1]} : vector<6x32xf32> to vector<1x32xf32>
    %417 = vector.broadcast %416 : vector<1x32xf32> to vector<48x32xf32>
    %418 = arith.addf %415, %417 : vector<48x32xf32>
    %419 = arith.addf %400, %418 : vector<48x32xf32>
    %420 = vector.extract_strided_slice %250 {offsets = [3, 0], sizes = [1, 32], strides = [1, 1]} : vector<6x32xf32> to vector<1x32xf32>
    %421 = vector.extract_strided_slice %250 {offsets = [4, 0], sizes = [1, 32], strides = [1, 1]} : vector<6x32xf32> to vector<1x32xf32>
    %cst_122 = arith.constant dense<0.000000e+00> : vector<48xf32>
    %422 = vector.multi_reduction <add>, %419, %cst_122 [1] : vector<48x32xf32> to vector<48xf32>
    %423 = vector.shape_cast %422 : vector<48xf32> to vector<48x1xf32>
    %cst_123 = arith.constant 3.200000e+01 : f32
    %424 = vector.broadcast %cst_123 : f32 to vector<48x1xf32>
    %425 = arith.divf %423, %424 : vector<48x1xf32>
    %426 = vector.broadcast %425 : vector<48x1xf32> to vector<48x32xf32>
    %427 = arith.subf %419, %426 : vector<48x32xf32>
    %428 = arith.mulf %427, %427 : vector<48x32xf32>
    %cst_124 = arith.constant dense<0.000000e+00> : vector<48xf32>
    %429 = vector.multi_reduction <add>, %428, %cst_124 [1] : vector<48x32xf32> to vector<48xf32>
    %430 = vector.shape_cast %429 : vector<48xf32> to vector<48x1xf32>
    %cst_125 = arith.constant 3.200000e+01 : f32
    %431 = vector.broadcast %cst_125 : f32 to vector<48x1xf32>
    %432 = arith.divf %430, %431 : vector<48x1xf32>
    %433 = vector.broadcast %425 : vector<48x1xf32> to vector<48x32xf32>
    %434 = arith.subf %419, %433 : vector<48x32xf32>
    %cst_126 = arith.constant 9.99999974E-6 : f32
    %435 = vector.broadcast %cst_126 : f32 to vector<48x1xf32>
    %436 = arith.addf %432, %435 : vector<48x1xf32>
    %437 = math.rsqrt %436 : vector<48x1xf32>
    %438 = vector.broadcast %437 : vector<48x1xf32> to vector<48x32xf32>
    %439 = arith.mulf %434, %438 : vector<48x32xf32>
    %440 = vector.broadcast %420 : vector<1x32xf32> to vector<48x32xf32>
    %441 = arith.mulf %439, %440 : vector<48x32xf32>
    %442 = vector.broadcast %421 : vector<1x32xf32> to vector<48x32xf32>
    %443 = arith.addf %441, %442 : vector<48x32xf32>
    %c0_127 = arith.constant 0 : index
    %c0_128 = arith.constant 0 : index
    %444 = vector.load %arg7[%c0_127, %c0_128] : memref<2x32xf32, #tpu.memory_space<vmem>>, vector<2x32xf32>
    %445 = vector.extract_strided_slice %444 {offsets = [0, 0], sizes = [1, 32], strides = [1, 1]} : vector<2x32xf32> to vector<1x32xf32>
    %446 = vector.extract_strided_slice %444 {offsets = [1, 0], sizes = [1, 32], strides = [1, 1]} : vector<2x32xf32> to vector<1x32xf32>
    %cst_129 = arith.constant dense<0.000000e+00> : vector<48xf32>
    %447 = vector.multi_reduction <add>, %443, %cst_129 [1] : vector<48x32xf32> to vector<48xf32>
    %448 = vector.shape_cast %447 : vector<48xf32> to vector<48x1xf32>
    %cst_130 = arith.constant 3.200000e+01 : f32
    %449 = vector.broadcast %cst_130 : f32 to vector<48x1xf32>
    %450 = arith.divf %448, %449 : vector<48x1xf32>
    %451 = vector.broadcast %450 : vector<48x1xf32> to vector<48x32xf32>
    %452 = arith.subf %443, %451 : vector<48x32xf32>
    %453 = arith.mulf %452, %452 : vector<48x32xf32>
    %cst_131 = arith.constant dense<0.000000e+00> : vector<48xf32>
    %454 = vector.multi_reduction <add>, %453, %cst_131 [1] : vector<48x32xf32> to vector<48xf32>
    %455 = vector.shape_cast %454 : vector<48xf32> to vector<48x1xf32>
    %cst_132 = arith.constant 3.200000e+01 : f32
    %456 = vector.broadcast %cst_132 : f32 to vector<48x1xf32>
    %457 = arith.divf %455, %456 : vector<48x1xf32>
    %458 = vector.broadcast %450 : vector<48x1xf32> to vector<48x32xf32>
    %459 = arith.subf %443, %458 : vector<48x32xf32>
    %cst_133 = arith.constant 9.99999974E-6 : f32
    %460 = vector.broadcast %cst_133 : f32 to vector<48x1xf32>
    %461 = arith.addf %457, %460 : vector<48x1xf32>
    %462 = math.rsqrt %461 : vector<48x1xf32>
    %463 = vector.broadcast %462 : vector<48x1xf32> to vector<48x32xf32>
    %464 = arith.mulf %459, %463 : vector<48x32xf32>
    %465 = vector.broadcast %445 : vector<1x32xf32> to vector<48x32xf32>
    %466 = arith.mulf %464, %465 : vector<48x32xf32>
    %467 = vector.broadcast %446 : vector<1x32xf32> to vector<48x32xf32>
    %468 = arith.addf %466, %467 : vector<48x32xf32>
    %469 = arith.truncf %468 : vector<48x32xf32> to vector<48x32xbf16>
    %c0_134 = arith.constant 0 : index
    %c0_135 = arith.constant 0 : index
    %470 = vector.load %arg8[%c0_134, %c0_135] : memref<32x8xbf16, #tpu.memory_space<vmem>>, vector<32x8xbf16>
    %cst_136 = arith.constant dense<0.000000e+00> : vector<48x8xf32>
    %471 = tpu.matmul %469, %470, %cst_136 {dimension_numbers = #tpu.dot_dimension_numbers<[1], [0], [0], [1], [0, 0, 1, 1], [], []>} : vector<48x32xbf16>, vector<32x8xbf16>, vector<48x8xf32> -> vector<48x8xf32>
    %472 = vector.extract_strided_slice %471 {offsets = [0, 0], sizes = [48, 1], strides = [1, 1]} : vector<48x8xf32> to vector<48x1xf32>
    %c0_137 = arith.constant 0 : index
    %c0_138 = arith.constant 0 : index
    %c0_139 = arith.constant 0 : index
    %473 = vector.load %arg9[%c0_137, %c0_138, %c0_139] : memref<8x48x5xf32, #tpu.memory_space<vmem>>, vector<1x48x5xf32>
    %474 = vector.shape_cast %473 : vector<1x48x5xf32> to vector<48x5xf32>
    %475 = vector.broadcast %472 : vector<48x1xf32> to vector<48x5xf32>
    %476 = arith.mulf %475, %474 : vector<48x5xf32>
    %477 = vector.extract_strided_slice %471 {offsets = [0, 1], sizes = [48, 1], strides = [1, 1]} : vector<48x8xf32> to vector<48x1xf32>
    %c1_140 = arith.constant 1 : index
    %c0_141 = arith.constant 0 : index
    %c0_142 = arith.constant 0 : index
    %478 = vector.load %arg9[%c1_140, %c0_141, %c0_142] : memref<8x48x5xf32, #tpu.memory_space<vmem>>, vector<1x48x5xf32>
    %479 = vector.shape_cast %478 : vector<1x48x5xf32> to vector<48x5xf32>
    %480 = vector.broadcast %477 : vector<48x1xf32> to vector<48x5xf32>
    %481 = arith.mulf %480, %479 : vector<48x5xf32>
    %482 = arith.addf %476, %481 : vector<48x5xf32>
    %483 = vector.extract_strided_slice %471 {offsets = [0, 2], sizes = [48, 1], strides = [1, 1]} : vector<48x8xf32> to vector<48x1xf32>
    %c2 = arith.constant 2 : index
    %c0_143 = arith.constant 0 : index
    %c0_144 = arith.constant 0 : index
    %484 = vector.load %arg9[%c2, %c0_143, %c0_144] : memref<8x48x5xf32, #tpu.memory_space<vmem>>, vector<1x48x5xf32>
    %485 = vector.shape_cast %484 : vector<1x48x5xf32> to vector<48x5xf32>
    %486 = vector.broadcast %483 : vector<48x1xf32> to vector<48x5xf32>
    %487 = arith.mulf %486, %485 : vector<48x5xf32>
    %488 = arith.addf %482, %487 : vector<48x5xf32>
    %489 = vector.extract_strided_slice %471 {offsets = [0, 3], sizes = [48, 1], strides = [1, 1]} : vector<48x8xf32> to vector<48x1xf32>
    %c3 = arith.constant 3 : index
    %c0_145 = arith.constant 0 : index
    %c0_146 = arith.constant 0 : index
    %490 = vector.load %arg9[%c3, %c0_145, %c0_146] : memref<8x48x5xf32, #tpu.memory_space<vmem>>, vector<1x48x5xf32>
    %491 = vector.shape_cast %490 : vector<1x48x5xf32> to vector<48x5xf32>
    %492 = vector.broadcast %489 : vector<48x1xf32> to vector<48x5xf32>
    %493 = arith.mulf %492, %491 : vector<48x5xf32>
    %494 = arith.addf %488, %493 : vector<48x5xf32>
    %495 = vector.extract_strided_slice %471 {offsets = [0, 4], sizes = [48, 1], strides = [1, 1]} : vector<48x8xf32> to vector<48x1xf32>
    %c4 = arith.constant 4 : index
    %c0_147 = arith.constant 0 : index
    %c0_148 = arith.constant 0 : index
    %496 = vector.load %arg9[%c4, %c0_147, %c0_148] : memref<8x48x5xf32, #tpu.memory_space<vmem>>, vector<1x48x5xf32>
    %497 = vector.shape_cast %496 : vector<1x48x5xf32> to vector<48x5xf32>
    %498 = vector.broadcast %495 : vector<48x1xf32> to vector<48x5xf32>
    %499 = arith.mulf %498, %497 : vector<48x5xf32>
    %500 = arith.addf %494, %499 : vector<48x5xf32>
    %501 = vector.extract_strided_slice %471 {offsets = [0, 5], sizes = [48, 1], strides = [1, 1]} : vector<48x8xf32> to vector<48x1xf32>
    %c5 = arith.constant 5 : index
    %c0_149 = arith.constant 0 : index
    %c0_150 = arith.constant 0 : index
    %502 = vector.load %arg9[%c5, %c0_149, %c0_150] : memref<8x48x5xf32, #tpu.memory_space<vmem>>, vector<1x48x5xf32>
    %503 = vector.shape_cast %502 : vector<1x48x5xf32> to vector<48x5xf32>
    %504 = vector.broadcast %501 : vector<48x1xf32> to vector<48x5xf32>
    %505 = arith.mulf %504, %503 : vector<48x5xf32>
    %506 = arith.addf %500, %505 : vector<48x5xf32>
    %507 = vector.extract_strided_slice %471 {offsets = [0, 6], sizes = [48, 1], strides = [1, 1]} : vector<48x8xf32> to vector<48x1xf32>
    %c6 = arith.constant 6 : index
    %c0_151 = arith.constant 0 : index
    %c0_152 = arith.constant 0 : index
    %508 = vector.load %arg9[%c6, %c0_151, %c0_152] : memref<8x48x5xf32, #tpu.memory_space<vmem>>, vector<1x48x5xf32>
    %509 = vector.shape_cast %508 : vector<1x48x5xf32> to vector<48x5xf32>
    %510 = vector.broadcast %507 : vector<48x1xf32> to vector<48x5xf32>
    %511 = arith.mulf %510, %509 : vector<48x5xf32>
    %512 = arith.addf %506, %511 : vector<48x5xf32>
    %513 = vector.extract_strided_slice %471 {offsets = [0, 7], sizes = [48, 1], strides = [1, 1]} : vector<48x8xf32> to vector<48x1xf32>
    %c7 = arith.constant 7 : index
    %c0_153 = arith.constant 0 : index
    %c0_154 = arith.constant 0 : index
    %514 = vector.load %arg9[%c7, %c0_153, %c0_154] : memref<8x48x5xf32, #tpu.memory_space<vmem>>, vector<1x48x5xf32>
    %515 = vector.shape_cast %514 : vector<1x48x5xf32> to vector<48x5xf32>
    %516 = vector.broadcast %513 : vector<48x1xf32> to vector<48x5xf32>
    %517 = arith.mulf %516, %515 : vector<48x5xf32>
    %518 = arith.addf %512, %517 : vector<48x5xf32>
    %519 = vector.extract_strided_slice %518 {offsets = [0, 0], sizes = [24, 5], strides = [1, 1]} : vector<48x5xf32> to vector<24x5xf32>
    %cst_155 = arith.constant dense<0.000000e+00> : vector<5xf32>
    %520 = vector.multi_reduction <add>, %519, %cst_155 [0] : vector<24x5xf32> to vector<5xf32>
    %521 = vector.shape_cast %520 : vector<5xf32> to vector<1x5xf32>
    %522 = vector.extract_strided_slice %518 {offsets = [24, 0], sizes = [24, 5], strides = [1, 1]} : vector<48x5xf32> to vector<24x5xf32>
    %cst_156 = arith.constant dense<0.000000e+00> : vector<5xf32>
    %523 = vector.multi_reduction <add>, %522, %cst_156 [0] : vector<24x5xf32> to vector<5xf32>
    %524 = vector.shape_cast %523 : vector<5xf32> to vector<1x5xf32>
    %525 = tpu.concatenate %521, %524 in 0 : vector<1x5xf32>, vector<1x5xf32> -> vector<2x5xf32>
    %c0_157 = arith.constant 0 : index
    %c0_158 = arith.constant 0 : index
    %526 = vector.load %arg10[%c0_157, %c0_158] : memref<1x5xf32, #tpu.memory_space<vmem>>, vector<1x5xf32>
    %527 = vector.broadcast %526 : vector<1x5xf32> to vector<2x5xf32>
    %528 = arith.addf %525, %527 : vector<2x5xf32>
    %c0_159 = arith.constant 0 : index
    %c0_160 = arith.constant 0 : index
    %529 = vector.load %arg11[%c0_159, %c0_160] : memref<2x5xf32, #tpu.memory_space<vmem>>, vector<2x5xf32>
    tpu.vector_store %arg11[%c0_159, %c0_160], %528 {strides = array<i32>} : memref<2x5xf32, #tpu.memory_space<vmem>>, vector<2x5xf32>,
    return
  }
}

</mosaic_0001>

<llo_original>
// kernel: div.14
$region0: #{div.14}
  #allocation0 [shape = 's32[1]{0}', space=sflag, size = 0x4, scoped, tag = 'scoped memory for div.14']
  %s0 = inlined_call_operand.vmem [shape: f32[2,20], index: 0, kind: input, shape index: {}]
  %s1 = inlined_call_operand.vmem [shape: f32[2,20], index: 1, kind: input, shape index: {}]
  %s2 = inlined_call_operand.vmem [shape: f32[2,20], index: 2, kind: output, shape index: {}]
  %v3 = vld [vmem:[%s0] sm:$0x3]
  %v4 = vld [vmem:[%s1] sm:$0x3]
  %5 = xla_tuple %v3, %v4
  %6 = xla_tuple %5
  %v7 = vrcp.pop %v4
  %v8 = vmul.f32 %v3, %v7
  %9 = xla_tuple %v8
  %10 = vst [vmem:[%s2] sm:$0x3] %v8

// kernel: _forward_jit.1
$region0: #{_forward_jit.1}
  #allocation0 [shape = 'u32[]', space=smem, size = 0x4, offset = 0x4, fixed_abs, tag = 'smem constant byte address 0x4 - core index']
  #allocation1 [shape = 'u32[144,128]{1,0:T(1,128)}', space=vmem, size = 0x12000, scoped, tag = 'internal scratch']
  %s0 = inlined_call_operand.vmem [shape: f32[48,8], index: 0, kind: input, shape index: {}]
  %s1 = inlined_call_operand.vmem [shape: bf16[9,32], index: 1, kind: input, shape index: {}]
  %s2 = inlined_call_operand.vmem [shape: bf16[2,33,96], index: 2, kind: input, shape index: {}]
  %s3 = inlined_call_operand.vmem [shape: bf16[2,32,32], index: 3, kind: input, shape index: {}]
  %s4 = inlined_call_operand.vmem [shape: bf16[2,33,64], index: 4, kind: input, shape index: {}]
  %s5 = inlined_call_operand.vmem [shape: bf16[2,32,64], index: 5, kind: input, shape index: {}]
  %s6 = inlined_call_operand.vmem [shape: f32[2,6,32], index: 6, kind: input, shape index: {}]
  %s7 = inlined_call_operand.vmem [shape: f32[2,32], index: 7, kind: input, shape index: {}]
  %s8 = inlined_call_operand.vmem [shape: bf16[32,8], index: 8, kind: input, shape index: {}]
  %s9 = inlined_call_operand.vmem [shape: f32[8,48,5], index: 9, kind: input, shape index: {}]
  %s10 = inlined_call_operand.vmem [shape: f32[1,5], index: 10, kind: input, shape index: {}]
  %s11 = inlined_call_operand.hbm [shape: f32[2,5], index: 11, kind: output, shape index: {}]
  %s12 = sld [smem:[#allocation0]]
  $region54: #{_forward_jit.1} parent=0
    _
  %s14 = ssub.s32 1, %s12
  %s15 = scalar_select 0, %s14, %s12
  $region1: #{_forward_jit.1} parent=0
    #allocation2 [shape = 'u8[1024]{0}', space=vmem, size = 0x400, scoped, tag = 'output window, operand 0, single buffered']
    #allocation3 [shape = 's32[1]{0}', space=sflag, size = 0x4, scoped, tag = 'scoped memory for _forward_jit.1']
    %16 = vsyncpa [#allocation3], 0
    // Predicated region
    $region2: #{_forward_jit.1} parent=1 // pred_check
      _
    $region3: #{_forward_jit.1} parent=1 // pred_check_branch
      %18 = sbr.rel (0) target = $region5
    $region4: #{_forward_jit.1} parent=1 // pred_region
      _
    $region5: #{_forward_jit.1} parent=1 // pred_fallthru
      _
    // Predicated region
    $region6: #{_forward_jit.1} parent=1 // pred_check
      _
    $region7: #{_forward_jit.1} parent=1 // pred_check_branch
      %20 = sbr.rel (0) target = $region9
    $region8: #{_forward_jit.1} parent=1 // pred_region
      _
    $region9: #{_forward_jit.1} parent=1 // pred_fallthru
      _
    // Predicated region
    $region10: #{_forward_jit.1} parent=1 // pred_check
      _
    $region11: #{_forward_jit.1} parent=1 // pred_check_branch
      %22 = sbr.rel (0) target = $region13
    $region12: #{_forward_jit.1} parent=1 // pred_region
      _
    $region13: #{_forward_jit.1} parent=1 // pred_fallthru
      _
    // Predicated region
    $region14: #{_forward_jit.1} parent=1 // pred_check
      _
    $region15: #{_forward_jit.1} parent=1 // pred_check_branch
      %24 = sbr.rel (0) target = $region17
    $region16: #{_forward_jit.1} parent=1 // pred_region
      _
    $region17: #{_forward_jit.1} parent=1 // pred_fallthru
      _
    // Predicated region
    $region18: #{_forward_jit.1} parent=1 // pred_check
      _
    $region19: #{_forward_jit.1} parent=1 // pred_check_branch
      %26 = sbr.rel (0) target = $region21
    $region20: #{_forward_jit.1} parent=1 // pred_region
      _
    $region21: #{_forward_jit.1} parent=1 // pred_fallthru
      _
    // Predicated region
    $region22: #{_forward_jit.1} parent=1 // pred_check
      _
    $region23: #{_forward_jit.1} parent=1 // pred_check_branch
      %28 = sbr.rel (0) target = $region25
    $region24: #{_forward_jit.1} parent=1 // pred_region
      _
    $region25: #{_forward_jit.1} parent=1 // pred_fallthru
      _
    // Predicated region
    $region26: #{_forward_jit.1} parent=1 // pred_check
      _
    $region27: #{_forward_jit.1} parent=1 // pred_check_branch
      %30 = sbr.rel (0) target = $region29
    $region28: #{_forward_jit.1} parent=1 // pred_region
      _
    $region29: #{_forward_jit.1} parent=1 // pred_fallthru
      _
    // Predicated region
    $region30: #{_forward_jit.1} parent=1 // pred_check
      _
    $region31: #{_forward_jit.1} parent=1 // pred_check_branch
      %32 = sbr.rel (0) target = $region33
    $region32: #{_forward_jit.1} parent=1 // pred_region
      _
    $region33: #{_forward_jit.1} parent=1 // pred_fallthru
      _
    // Predicated region
    $region34: #{_forward_jit.1} parent=1 // pred_check
      _
    $region35: #{_forward_jit.1} parent=1 // pred_check_branch
      %34 = sbr.rel (0) target = $region37
    $region36: #{_forward_jit.1} parent=1 // pred_region
      _
    $region37: #{_forward_jit.1} parent=1 // pred_fallthru
      _
    // Predicated region
    $region38: #{_forward_jit.1} parent=1 // pred_check
      _
    $region39: #{_forward_jit.1} parent=1 // pred_check_branch
      %36 = sbr.rel (0) target = $region41
    $region40: #{_forward_jit.1} parent=1 // pred_region
      _
    $region41: #{_forward_jit.1} parent=1 // pred_fallthru
      _
    // Predicated region
    $region42: #{_forward_jit.1} parent=1 // pred_check
      _
    $region43: #{_forward_jit.1} parent=1 // pred_check_branch
      %38 = sbr.rel (0) target = $region45
    $region44: #{_forward_jit.1} parent=1 // pred_region
      _
    $region45: #{_forward_jit.1} parent=1 // pred_fallthru
      _
    %v40 = vlaneseq
    %v41 = vshrl.u32 %v40, 7
    %v42 = vadd.s32 %v41, 8
    %v43 = vadd.s32 %v41, 16
    %v44 = vadd.s32 %v41, 24
    %v45 = vadd.s32 %v41, 32
    %v46 = vadd.s32 %v41, 40
    %v47 = vlaneseq
    %v48 = vand.u32 %v47, 127
    %vm49 = vcmp.lt.s32.totalorder %v41, 24
    %vm50 = vcmp.lt.s32.totalorder %v42, 24
    %vm51 = vcmp.lt.s32.totalorder %v43, 24
    %vm52 = vcmp.lt.s32.totalorder %v44, 24
    %vm53 = vcmp.lt.s32.totalorder %v45, 24
    %vm54 = vcmp.lt.s32.totalorder %v46, 24
    %vm55 = vcmp.lt.s32.totalorder %v48, 24
    %vm56 = vmxor %vm49, %vm55
    %vm57 = vmxor %vm50, %vm55
    %vm58 = vmxor %vm51, %vm55
    %vm59 = vmxor %vm52, %vm55
    %vm60 = vmxor %vm53, %vm55
    %vm61 = vmxor %vm54, %vm55
    %vm62 = vmxor %vm56, 1
    %vm63 = vmxor %vm57, 1
    %vm64 = vmxor %vm58, 1
    %vm65 = vmxor %vm59, 1
    %vm66 = vmxor %vm60, 1
    %vm67 = vmxor %vm61, 1
    %vm68 = vcmp.lt.s32.totalorder %v48, 20
    %vm69 = vcmp.ge.s32.totalorder %v48, 24
    %vm70 = vcmp.lt.s32.totalorder %v48, 44
    %vm71 = vmand %vm69, %vm70
    %vm72 = vmor %vm68, %vm71
    %vm73 = vmand %vm62, %vm72
    %vm74 = vmand %vm63, %vm72
    %vm75 = vmand %vm64, %vm72
    %vm76 = vmand %vm65, %vm72
    %vm77 = vmand %vm66, %vm72
    %vm78 = vmand %vm67, %vm72
    %v79 = vsel %vm73, 0.0, -1e+30
    %v80 = vsel %vm74, 0.0, -1e+30
    %v81 = vsel %vm75, 0.0, -1e+30
    %v82 = vsel %vm76, 0.0, -1e+30
    %v83 = vsel %vm77, 0.0, -1e+30
    %v84 = vsel %vm78, 0.0, -1e+30
    %vm85 = vcmp.ge.s32.totalorder %v48, 0
    %vm86 = vcmp.lt.s32.totalorder %v48, 8
    %vm87 = vmand %vm85, %vm86
    %vm88 = vcmp.ge.s32.totalorder %v48, 8
    %vm89 = vcmp.lt.s32.totalorder %v48, 16
    %vm90 = vmand %vm88, %vm89
    %vm91 = vcmp.ge.s32.totalorder %v48, 16
    %vm92 = vmand %vm91, %vm55
    %vm93 = vcmp.lt.s32.totalorder %v48, 32
    %vm94 = vmand %vm69, %vm93
    %v95 = vld [vmem:[%s1] sm:$0xf]
    %v96 = vld [vmem:[%s1 + $0x4] sm:$0x1]
    %v97 = vld [vmem:[%s0] sm:$0xff]
    %v98 = vld [vmem:[%s0 + $0x8] sm:$0xff]
    %v99 = vld [vmem:[%s0 + $0x10] sm:$0xff]
    %v100 = vld [vmem:[%s0 + $0x18] sm:$0xff]
    %v101 = vld [vmem:[%s0 + $0x20] sm:$0xff]
    %v102 = vld [vmem:[%s0 + $0x28] sm:$0xff]
    %v103 = vpack.c.bf16 %v98, %v97
    %v104 = vpack.c.bf16 %v100, %v99
    %v105 = vpack.c.bf16 %v102, %v101
    %v106 = vunpack.c.l.bf16 %v96
    %v107 = vlaneseq
    %v108 = vshrl.u32 %v107, 7
    %v109 = vsub.s32 0, %v108
    %v110 = vrot.slane %v106, %v109
    %vm111 = vcmask 64512
    %v113 = vsel %vm111, %v103, 0
    %v116 = vsel %vm111, %v104, 0
    %v119 = vsel %vm111, %v105, 0
    %vm121 = vcmask 1043456
    %v123 = vsel %vm121, %v95, 0
    %125 = vmatprep.subr.bf16.mxu0 0
    %126 = vmatpush1.bf16.msra.mxu0 0
    %127 = vmatprep.subr.bf16.mxu0 0
    %128 = vmatpush1.bf16.msra.mxu0 0
    %129 = vmatprep.subr.bf16.mxu0 0
    %130 = vmatpush1.bf16.msra.mxu0 0
    %131 = vmatprep.subr.bf16.mxu0 0
    %132 = vmatpush1.bf16.msra.mxu0 0
    %133 = vmatprep.subr.bf16.mxu0 0
    %134 = vmatpush1.bf16.msra.mxu0 0
    %135 = vmatprep.subr.bf16.mxu0 0
    %136 = vmatpush1.bf16.msra.mxu0 0
    %137 = vmatprep.subr.bf16.mxu0 0
    %138 = vmatpush1.bf16.msra.mxu0 0
    %139 = vmatprep.subr.bf16.mxu0 0
    %140 = vmatpush1.bf16.msra.mxu0 %v123
    %141 = vmatprep.subr.bf16.mxu0 0
    %142 = vmatpush2.bf16.msra.mxu0 0
    %143 = vmatprep.subr.bf16.mxu0 0
    %144 = vmatpush2.bf16.msra.mxu0 0
    %145 = vmatprep.subr.bf16.mxu0 0
    %146 = vmatpush2.bf16.msra.mxu0 0
    %147 = vmatprep.subr.bf16.mxu0 0
    %148 = vmatpush2.bf16.msra.mxu0 0
    %149 = vmatprep.subr.bf16.mxu0 0
    %150 = vmatpush2.bf16.msra.mxu0 0
    %151 = vmatprep.subr.bf16.mxu0 0
    %152 = vmatpush2.bf16.msra.mxu0 0
    %153 = vmatprep.subr.bf16.mxu0 0
    %154 = vmatpush2.bf16.msra.mxu0 0
    %155 = vmatprep.subr.bf16.mxu0 0
    %156 = vmatpush2.bf16.msra.mxu0 0
    %157 = vmatprep.mubr.bf16.mxu0 0
    %158 = vmatmul.mubr.bf16.gmra.mxu0 %v113
    %v159 = vpop.f32.mrf.mxu0
    %v160 = vadd.f32 %v110, %v159
    %v161 = vpop.f32.mrf.mxu0
    %v162 = vpop.f32.mrf.mxu0
    %v163 = vadd.f32 %v110, %v162
    %v164 = vpop.f32.mrf.mxu0
    %165 = vmatprep.mubr.bf16.mxu0 0
    %166 = vmatmul.mubr.bf16.gmra.mxu0 %v116
    %v167 = vpop.f32.mrf.mxu0
    %v168 = vadd.f32 %v110, %v167
    %v169 = vpop.f32.mrf.mxu0
    %v170 = vpop.f32.mrf.mxu0
    %v171 = vadd.f32 %v110, %v170
    %v172 = vpop.f32.mrf.mxu0
    %173 = vmatprep.mubr.bf16.mxu0 0
    %174 = vmatmul.mubr.bf16.gmra.mxu0 %v119
    %v175 = vpop.f32.mrf.mxu0
    %v176 = vadd.f32 %v110, %v175
    %v177 = vpop.f32.mrf.mxu0
    %v178 = vpop.f32.mrf.mxu0
    %v179 = vadd.f32 %v110, %v178
    %v180 = vpop.f32.mrf.mxu0
    %181 = vdwg.mxu0
    %v182 = vld [vmem:[%s2] sm:$0xf]
    %v183 = vld [vmem:[%s2 + $0x4] sm:$0xf]
    %v184 = vld [vmem:[%s2 + $0x8] sm:$0xf]
    %v185 = vld [vmem:[%s2 + $0xc] sm:$0xf]
    %v186 = vld [vmem:[%s2 + $0x10] sm:$0x1]
    %v187 = vld [vmem:[%s6] sm:$0x3f]
    %v188 = vpack.c.bf16 %v163, %v160
    %v189 = vpack.c.bf16 %v171, %v168
    %v190 = vpack.c.bf16 %v179, %v176
    %v191 = vunpack.c.l.bf16 %v186
    %v192 = vlaneseq
    %v193 = vshrl.u32 %v192, 7
    %v194 = vsub.s32 0, %v193
    %v195 = vrot.slane %v191, %v194
    %v200 = vunpack.c.l.b16 %v182
    %v201 = vunpack.c.l.b16 %v183
    %v202 = vunpack.c.l.b16 %v184
    %v203 = vunpack.c.l.b16 %v185
    %v204 = vpack.c.b16 %v201, %v200
    %v205 = vpack.c.b16 %v203, %v202
    %vm208 = vcmask 261120
    %v210 = vsel %vm208, %v188, 0
    %v213 = vsel %vm208, %v189, 0
    %v216 = vsel %vm208, %v190, 0
    %218 = vmatprep.subr.bf16.mxu0 0
    %219 = vmatpush1.bf16.msra.mxu0 0
    %220 = vmatprep.subr.bf16.mxu0 0
    %221 = vmatpush1.bf16.msra.mxu0 0
    %222 = vmatprep.subr.bf16.mxu0 0
    %223 = vmatpush1.bf16.msra.mxu0 0
    %224 = vmatprep.subr.bf16.mxu0 0
    %225 = vmatpush1.bf16.msra.mxu0 0
    %226 = vmatprep.subr.bf16.mxu0 0
    %227 = vmatpush1.bf16.msra.mxu0 0
    %228 = vmatprep.subr.bf16.mxu0 0
    %229 = vmatpush1.bf16.msra.mxu0 0
    %230 = vmatprep.subr.bf16.mxu0 0
    %231 = vmatpush1.bf16.msra.mxu0 %v205
    %232 = vmatprep.subr.bf16.mxu0 0
    %233 = vmatpush1.bf16.msra.mxu0 %v204
    %234 = vmatprep.subr.bf16.mxu0 0
    %235 = vmatpush2.bf16.msra.mxu0 0
    %236 = vmatprep.subr.bf16.mxu0 0
    %237 = vmatpush2.bf16.msra.mxu0 0
    %238 = vmatprep.subr.bf16.mxu0 0
    %239 = vmatpush2.bf16.msra.mxu0 0
    %240 = vmatprep.subr.bf16.mxu0 0
    %241 = vmatpush2.bf16.msra.mxu0 0
    %242 = vmatprep.subr.bf16.mxu0 0
    %243 = vmatpush2.bf16.msra.mxu0 0
    %244 = vmatprep.subr.bf16.mxu0 0
    %245 = vmatpush2.bf16.msra.mxu0 0
    %246 = vmatprep.subr.bf16.mxu0 0
    %247 = vmatpush2.bf16.msra.mxu0 0
    %248 = vmatprep.subr.bf16.mxu0 0
    %249 = vmatpush2.bf16.msra.mxu0 0
    %250 = vmatprep.mubr.bf16.mxu0 0
    %251 = vmatmul.mubr.bf16.gmra.mxu0 %v210
    %v252 = vpop.f32.mrf.mxu0
    %v253 = vadd.f32 %v195, %v252
    %v254 = vpop.f32.mrf.mxu0
    %v255 = vpop.f32.mrf.mxu0
    %v256 = vadd.f32 %v195, %v255
    %v257 = vpop.f32.mrf.mxu0
    %258 = vmatprep.mubr.bf16.mxu0 0
    %259 = vmatmul.mubr.bf16.gmra.mxu0 %v213
    %v260 = vpop.f32.mrf.mxu0
    %v261 = vadd.f32 %v195, %v260
    %v262 = vpop.f32.mrf.mxu0
    %v263 = vpop.f32.mrf.mxu0
    %v264 = vadd.f32 %v195, %v263
    %v265 = vpop.f32.mrf.mxu0
    %266 = vmatprep.mubr.bf16.mxu0 0
    %267 = vmatmul.mubr.bf16.gmra.mxu0 %v216
    %v268 = vpop.f32.mrf.mxu0
    %v269 = vadd.f32 %v195, %v268
    %v270 = vpop.f32.mrf.mxu0
    %v271 = vpop.f32.mrf.mxu0
    %v272 = vadd.f32 %v195, %v271
    %v273 = vpop.f32.mrf.mxu0
    %274 = vdwg.mxu0
    %v275 = vpack.c.bf16 %v256, %v253
    %v276 = vpack.c.bf16 %v264, %v261
    %v277 = vpack.c.bf16 %v272, %v269
    %v278 = vsel %vm87, 1, 0
    %vm279 = vcmp.eq.s32.totalorder %v278, 1
    %286 = vrot.lane.b32.xlu0 %v253, 96
    %v287 = vpop.permute.xlu0 %286
    %288 = vrot.lane.b32.xlu0 %v256, 96
    %v289 = vpop.permute.xlu0 %288
    %290 = vrot.lane.b32.xlu0 %v261, 96
    %v291 = vpop.permute.xlu0 %290
    %292 = vrot.lane.b32.xlu0 %v264, 96
    %v293 = vpop.permute.xlu0 %292
    %294 = vrot.lane.b32.xlu0 %v269, 96
    %v295 = vpop.permute.xlu0 %294
    %296 = vrot.lane.b32.xlu0 %v272, 96
    %v297 = vpop.permute.xlu0 %296
    %v304 = vsel %vm279, %v287, 0.0
    %v305 = vsel %vm279, %v289, 0.0
    %v306 = vsel %vm279, %v291, 0.0
    %v307 = vsel %vm279, %v293, 0.0
    %v308 = vsel %vm279, %v295, 0.0
    %v309 = vsel %vm279, %v297, 0.0
    %v310 = vpack.c.bf16 %v305, %v304
    %v311 = vpack.c.bf16 %v307, %v306
    %v312 = vpack.c.bf16 %v309, %v308
    %v314 = vsel %vm208, %v275, 0
    %v317 = vsel %vm208, %v276, 0
    %v320 = vsel %vm208, %v277, 0
    %v323 = vsel %vm208, %v310, 0
    %v326 = vsel %vm208, %v311, 0
    %v329 = vsel %vm208, %v312, 0
    %331 = vmatprep.subr.bf16.mxu0 0
    %332 = vmatpush1.bf16.xpose.msra.mxu0 0
    %333 = vmatprep.subr.bf16.mxu0 0
    %334 = vmatpush1.bf16.xpose.msra.mxu0 0
    %335 = vmatprep.subr.bf16.mxu0 0
    %336 = vmatpush1.bf16.xpose.msra.mxu0 0
    %337 = vmatprep.subr.bf16.mxu0 0
    %338 = vmatpush1.bf16.xpose.msra.mxu0 0
    %339 = vmatprep.subr.bf16.mxu0 0
    %340 = vmatpush1.bf16.xpose.msra.mxu0 0
    %341 = vmatprep.subr.bf16.mxu0 0
    %342 = vmatpush1.bf16.xpose.msra.mxu0 %v329
    %343 = vmatprep.subr.bf16.mxu0 0
    %344 = vmatpush1.bf16.xpose.msra.mxu0 %v326
    %345 = vmatprep.subr.bf16.mxu0 0
    %346 = vmatpush1.bf16.xpose.msra.mxu0 %v323
    %347 = vmatprep.subr.bf16.mxu0 0
    %348 = vmatpush2.bf16.xpose.msra.mxu0 0
    %349 = vmatprep.subr.bf16.mxu0 0
    %350 = vmatpush2.bf16.xpose.msra.mxu0 0
    %351 = vmatprep.subr.bf16.mxu0 0
    %352 = vmatpush2.bf16.xpose.msra.mxu0 0
    %353 = vmatprep.subr.bf16.mxu0 0
    %354 = vmatpush2.bf16.xpose.msra.mxu0 0
    %355 = vmatprep.subr.bf16.mxu0 0
    %356 = vmatpush2.bf16.xpose.msra.mxu0 0
    %357 = vmatprep.subr.bf16.mxu0 0
    %358 = vmatpush2.bf16.xpose.msra.mxu0 0
    %359 = vmatprep.subr.bf16.mxu0 0
    %360 = vmatpush2.bf16.xpose.msra.mxu0 0
    %361 = vmatprep.subr.bf16.mxu0 0
    %362 = vmatpush2.bf16.xpose.msra.mxu0 0
    %363 = vmatprep.mubr.bf16.mxu0 0
    %364 = vmatmul.mubr.bf16.gmra.mxu0 %v314
    %v365 = vpop.f32.mrf.mxu0
    %v366 = vadd.f32 0.0, %v365
    %v367 = vpop.f32.mrf.mxu0
    %v368 = vpop.f32.mrf.mxu0
    %v369 = vadd.f32 0.0, %v368
    %v370 = vpop.f32.mrf.mxu0
    %371 = vmatprep.mubr.bf16.mxu0 0
    %372 = vmatmul.mubr.bf16.gmra.mxu0 %v317
    %v373 = vpop.f32.mrf.mxu0
    %v374 = vadd.f32 0.0, %v373
    %v375 = vpop.f32.mrf.mxu0
    %v376 = vpop.f32.mrf.mxu0
    %v377 = vadd.f32 0.0, %v376
    %v378 = vpop.f32.mrf.mxu0
    %379 = vmatprep.mubr.bf16.mxu0 0
    %380 = vmatmul.mubr.bf16.gmra.mxu0 %v320
    %v381 = vpop.f32.mrf.mxu0
    %v382 = vadd.f32 0.0, %v381
    %v383 = vpop.f32.mrf.mxu0
    %v384 = vpop.f32.mrf.mxu0
    %v385 = vadd.f32 0.0, %v384
    %v386 = vpop.f32.mrf.mxu0
    %387 = vdwg.mxu0
    %v388 = vmul.f32 %v366, 0.35355338
    %v389 = vmul.f32 %v369, 0.35355338
    %v390 = vmul.f32 %v374, 0.35355338
    %v391 = vmul.f32 %v377, 0.35355338
    %v392 = vmul.f32 %v382, 0.35355338
    %v393 = vmul.f32 %v385, 0.35355338
    %v394 = vadd.f32 %v388, %v79
    %v395 = vadd.f32 %v389, %v80
    %v396 = vadd.f32 %v390, %v81
    %v397 = vadd.f32 %v391, %v82
    %v398 = vadd.f32 %v392, %v83
    %v399 = vadd.f32 %v393, %v84
    %vm400 = vcmask 392192
    %v401 = vsel %vm400, %v394, -inf
    %402 = vmax.xlane.f32.xlu0 %v401
    %v403 = vpop.xlane.xlu0 %402
    %v404 = vsel %vm400, %v395, -inf
    %405 = vmax.xlane.f32.xlu0 %v404
    %v406 = vpop.xlane.xlu0 %405
    %v407 = vsel %vm400, %v396, -inf
    %408 = vmax.xlane.f32.xlu0 %v407
    %v409 = vpop.xlane.xlu0 %408
    %v410 = vsel %vm400, %v397, -inf
    %411 = vmax.xlane.f32.xlu0 %v410
    %v412 = vpop.xlane.xlu0 %411
    %v413 = vsel %vm400, %v398, -inf
    %414 = vmax.xlane.f32.xlu0 %v413
    %v415 = vpop.xlane.xlu0 %414
    %v416 = vsel %vm400, %v399, -inf
    %417 = vmax.xlane.f32.xlu0 %v416
    %v418 = vpop.xlane.xlu0 %417
    %v419 = vsub.f32 %v394, %v403
    %v420 = vsub.f32 %v395, %v406
    %v421 = vsub.f32 %v396, %v409
    %v422 = vsub.f32 %v397, %v412
    %v423 = vsub.f32 %v398, %v415
    %v424 = vsub.f32 %v399, %v418
    %v425 = vmul.f32 %v419, 1.442695
    %v426 = vpow.pop %v425
    %v427 = vmul.f32 %v420, 1.442695
    %v428 = vpow.pop %v427
    %v429 = vmul.f32 %v421, 1.442695
    %v430 = vpow.pop %v429
    %v431 = vmul.f32 %v422, 1.442695
    %v432 = vpow.pop %v431
    %v433 = vmul.f32 %v423, 1.442695
    %v434 = vpow.pop %v433
    %v435 = vmul.f32 %v424, 1.442695
    %v436 = vpow.pop %v435
    %v437 = vsel %vm400, %v426, 0.0
    %438 = vadd.xlane.f32.xlu0 %v437
    %v439 = vpop.xlane.xlu0 %438
    %v440 = vsel %vm400, %v428, 0.0
    %441 = vadd.xlane.f32.xlu0 %v440
    %v442 = vpop.xlane.xlu0 %441
    %v443 = vsel %vm400, %v430, 0.0
    %444 = vadd.xlane.f32.xlu0 %v443
    %v445 = vpop.xlane.xlu0 %444
    %v446 = vsel %vm400, %v432, 0.0
    %447 = vadd.xlane.f32.xlu0 %v446
    %v448 = vpop.xlane.xlu0 %447
    %v449 = vsel %vm400, %v434, 0.0
    %450 = vadd.xlane.f32.xlu0 %v449
    %v451 = vpop.xlane.xlu0 %450
    %v452 = vsel %vm400, %v436, 0.0
    %453 = vadd.xlane.f32.xlu0 %v452
    %v454 = vpop.xlane.xlu0 %453
    %v455 = vrcp.pop %v439
    %v456 = vrcp.pop %v442
    %v457 = vrcp.pop %v445
    %v458 = vrcp.pop %v448
    %v459 = vrcp.pop %v451
    %v460 = vrcp.pop %v454
    %v461 = vmul.f32 %v426, %v455
    %v462 = vmul.f32 %v428, %v456
    %v463 = vmul.f32 %v430, %v457
    %v464 = vmul.f32 %v432, %v458
    %v465 = vmul.f32 %v434, %v459
    %v466 = vmul.f32 %v436, %v460
    %467 = vrot.lane.b32.xlu0 %v253, 64
    %v468 = vpop.permute.xlu0 %467
    %469 = vrot.lane.b32.xlu0 %v256, 64
    %v470 = vpop.permute.xlu0 %469
    %471 = vrot.lane.b32.xlu0 %v261, 64
    %v472 = vpop.permute.xlu0 %471
    %473 = vrot.lane.b32.xlu0 %v264, 64
    %v474 = vpop.permute.xlu0 %473
    %475 = vrot.lane.b32.xlu0 %v269, 64
    %v476 = vpop.permute.xlu0 %475
    %477 = vrot.lane.b32.xlu0 %v272, 64
    %v478 = vpop.permute.xlu0 %477
    %v485 = vsel %vm279, %v468, 0.0
    %v486 = vsel %vm279, %v470, 0.0
    %v487 = vsel %vm279, %v472, 0.0
    %v488 = vsel %vm279, %v474, 0.0
    %v489 = vsel %vm279, %v476, 0.0
    %v490 = vsel %vm279, %v478, 0.0
    %v491 = vpack.c.bf16 %v486, %v485
    %v492 = vpack.c.bf16 %v488, %v487
    %v493 = vpack.c.bf16 %v490, %v489
    %v494 = vpack.c.bf16 %v462, %v461
    %v495 = vpack.c.bf16 %v464, %v463
    %v496 = vpack.c.bf16 %v466, %v465
    %v497 = vsel %vm90, 1, 0
    %vm498 = vcmp.eq.s32.totalorder %v497, 1
    %v499 = vsel %vm498, %v287, 0.0
    %v500 = vsel %vm498, %v289, 0.0
    %v501 = vsel %vm498, %v291, 0.0
    %v502 = vsel %vm498, %v293, 0.0
    %v503 = vsel %vm498, %v295, 0.0
    %v504 = vsel %vm498, %v297, 0.0
    %v505 = vpack.c.bf16 %v500, %v499
    %v506 = vpack.c.bf16 %v502, %v501
    %v507 = vpack.c.bf16 %v504, %v503
    %v509 = vsel %vm208, %v505, 0
    %v512 = vsel %vm208, %v506, 0
    %v515 = vsel %vm208, %v507, 0
    %517 = vmatprep.subr.bf16.mxu0 0
    %518 = vmatpush1.bf16.xpose.msra.mxu0 0
    %519 = vmatprep.subr.bf16.mxu0 0
    %520 = vmatpush1.bf16.xpose.msra.mxu0 0
    %521 = vmatprep.subr.bf16.mxu0 0
    %522 = vmatpush1.bf16.xpose.msra.mxu0 0
    %523 = vmatprep.subr.bf16.mxu0 0
    %524 = vmatpush1.bf16.xpose.msra.mxu0 0
    %525 = vmatprep.subr.bf16.mxu0 0
    %526 = vmatpush1.bf16.xpose.msra.mxu0 0
    %527 = vmatprep.subr.bf16.mxu0 0
    %528 = vmatpush1.bf16.xpose.msra.mxu0 %v515
    %529 = vmatprep.subr.bf16.mxu0 0
    %530 = vmatpush1.bf16.xpose.msra.mxu0 %v512
    %531 = vmatprep.subr.bf16.mxu0 0
    %532 = vmatpush1.bf16.xpose.msra.mxu0 %v509
    %533 = vmatprep.subr.bf16.mxu0 0
    %534 = vmatpush2.bf16.xpose.msra.mxu0 0
    %535 = vmatprep.subr.bf16.mxu0 0
    %536 = vmatpush2.bf16.xpose.msra.mxu0 0
    %537 = vmatprep.subr.bf16.mxu0 0
    %538 = vmatpush2.bf16.xpose.msra.mxu0 0
    %539 = vmatprep.subr.bf16.mxu0 0
    %540 = vmatpush2.bf16.xpose.msra.mxu0 0
    %541 = vmatprep.subr.bf16.mxu0 0
    %542 = vmatpush2.bf16.xpose.msra.mxu0 0
    %543 = vmatprep.subr.bf16.mxu0 0
    %544 = vmatpush2.bf16.xpose.msra.mxu0 0
    %545 = vmatprep.subr.bf16.mxu0 0
    %546 = vmatpush2.bf16.xpose.msra.mxu0 0
    %547 = vmatprep.subr.bf16.mxu0 0
    %548 = vmatpush2.bf16.xpose.msra.mxu0 0
    %549 = vmatprep.mubr.bf16.mxu0 0
    %550 = vmatmul.mubr.bf16.gmra.mxu0 %v314
    %v551 = vpop.f32.mrf.mxu0
    %v552 = vadd.f32 0.0, %v551
    %v553 = vpop.f32.mrf.mxu0
    %v554 = vpop.f32.mrf.mxu0
    %v555 = vadd.f32 0.0, %v554
    %v556 = vpop.f32.mrf.mxu0
    %557 = vmatprep.mubr.bf16.mxu0 0
    %558 = vmatmul.mubr.bf16.gmra.mxu0 %v317
    %v559 = vpop.f32.mrf.mxu0
    %v560 = vadd.f32 0.0, %v559
    %v561 = vpop.f32.mrf.mxu0
    %v562 = vpop.f32.mrf.mxu0
    %v563 = vadd.f32 0.0, %v562
    %v564 = vpop.f32.mrf.mxu0
    %565 = vmatprep.mubr.bf16.mxu0 0
    %566 = vmatmul.mubr.bf16.gmra.mxu0 %v320
    %v567 = vpop.f32.mrf.mxu0
    %v568 = vadd.f32 0.0, %v567
    %v569 = vpop.f32.mrf.mxu0
    %v570 = vpop.f32.mrf.mxu0
    %v571 = vadd.f32 0.0, %v570
    %v572 = vpop.f32.mrf.mxu0
    %573 = vdwg.mxu0
    %v574 = vmul.f32 %v552, 0.35355338
    %v575 = vmul.f32 %v555, 0.35355338
    %v576 = vmul.f32 %v560, 0.35355338
    %v577 = vmul.f32 %v563, 0.35355338
    %v578 = vmul.f32 %v568, 0.35355338
    %v579 = vmul.f32 %v571, 0.35355338
    %v580 = vadd.f32 %v574, %v79
    %v581 = vadd.f32 %v575, %v80
    %v582 = vadd.f32 %v576, %v81
    %v583 = vadd.f32 %v577, %v82
    %v584 = vadd.f32 %v578, %v83
    %v585 = vadd.f32 %v579, %v84
    %v586 = vsel %vm400, %v580, -inf
    %587 = vmax.xlane.f32.xlu0 %v586
    %v588 = vpop.xlane.xlu0 %587
    %v589 = vsel %vm400, %v581, -inf
    %590 = vmax.xlane.f32.xlu0 %v589
    %v591 = vpop.xlane.xlu0 %590
    %v592 = vsel %vm400, %v582, -inf
    %593 = vmax.xlane.f32.xlu0 %v592
    %v594 = vpop.xlane.xlu0 %593
    %v595 = vsel %vm400, %v583, -inf
    %596 = vmax.xlane.f32.xlu0 %v595
    %v597 = vpop.xlane.xlu0 %596
    %v598 = vsel %vm400, %v584, -inf
    %599 = vmax.xlane.f32.xlu0 %v598
    %v600 = vpop.xlane.xlu0 %599
    %v601 = vsel %vm400, %v585, -inf
    %602 = vmax.xlane.f32.xlu0 %v601
    %v603 = vpop.xlane.xlu0 %602
    %v604 = vsub.f32 %v580, %v588
    %v605 = vsub.f32 %v581, %v591
    %v606 = vsub.f32 %v582, %v594
    %v607 = vsub.f32 %v583, %v597
    %v608 = vsub.f32 %v584, %v600
    %v609 = vsub.f32 %v585, %v603
    %v610 = vmul.f32 %v604, 1.442695
    %v611 = vpow.pop %v610
    %v612 = vmul.f32 %v605, 1.442695
    %v613 = vpow.pop %v612
    %v614 = vmul.f32 %v606, 1.442695
    %v615 = vpow.pop %v614
    %v616 = vmul.f32 %v607, 1.442695
    %v617 = vpow.pop %v616
    %v618 = vmul.f32 %v608, 1.442695
    %v619 = vpow.pop %v618
    %v620 = vmul.f32 %v609, 1.442695
    %v621 = vpow.pop %v620
    %v622 = vsel %vm400, %v611, 0.0
    %623 = vadd.xlane.f32.xlu0 %v622
    %v624 = vpop.xlane.xlu0 %623
    %v625 = vsel %vm400, %v613, 0.0
    %626 = vadd.xlane.f32.xlu0 %v625
    %v627 = vpop.xlane.xlu0 %626
    %v628 = vsel %vm400, %v615, 0.0
    %629 = vadd.xlane.f32.xlu0 %v628
    %v630 = vpop.xlane.xlu0 %629
    %v631 = vsel %vm400, %v617, 0.0
    %632 = vadd.xlane.f32.xlu0 %v631
    %v633 = vpop.xlane.xlu0 %632
    %v634 = vsel %vm400, %v619, 0.0
    %635 = vadd.xlane.f32.xlu0 %v634
    %v636 = vpop.xlane.xlu0 %635
    %v637 = vsel %vm400, %v621, 0.0
    %638 = vadd.xlane.f32.xlu0 %v637
    %v639 = vpop.xlane.xlu0 %638
    %v640 = vrcp.pop %v624
    %v641 = vrcp.pop %v627
    %v642 = vrcp.pop %v630
    %v643 = vrcp.pop %v633
    %v644 = vrcp.pop %v636
    %v645 = vrcp.pop %v639
    %v646 = vmul.f32 %v611, %v640
    %v647 = vmul.f32 %v613, %v641
    %v648 = vmul.f32 %v615, %v642
    %v649 = vmul.f32 %v617, %v643
    %v650 = vmul.f32 %v619, %v644
    %v651 = vmul.f32 %v621, %v645
    %v652 = vsel %vm498, %v468, 0.0
    %v653 = vsel %vm498, %v470, 0.0
    %v654 = vsel %vm498, %v472, 0.0
    %v655 = vsel %vm498, %v474, 0.0
    %v656 = vsel %vm498, %v476, 0.0
    %v657 = vsel %vm498, %v478, 0.0
    %v658 = vpack.c.bf16 %v653, %v652
    %v659 = vpack.c.bf16 %v655, %v654
    %v660 = vpack.c.bf16 %v657, %v656
    %v661 = vpack.c.bf16 %v647, %v646
    %v662 = vpack.c.bf16 %v649, %v648
    %v663 = vpack.c.bf16 %v651, %v650
    %v665 = vsel %vm400, %v661, 0
    %v668 = vsel %vm400, %v662, 0
    %v671 = vsel %vm400, %v663, 0
    %673 = vmatprep.subr.bf16.mxu0 0
    %674 = vmatpush1.bf16.msra.mxu0 0
    %675 = vmatprep.subr.bf16.mxu0 0
    %676 = vmatpush1.bf16.msra.mxu0 0
    %677 = vmatprep.subr.bf16.mxu0 0
    %678 = vmatpush1.bf16.msra.mxu0 0
    %679 = vmatprep.subr.bf16.mxu0 0
    %680 = vmatpush1.bf16.msra.mxu0 0
    %681 = vmatprep.subr.bf16.mxu0 0
    %682 = vmatpush1.bf16.msra.mxu0 0
    %683 = vmatprep.subr.bf16.mxu0 0
    %684 = vmatpush1.bf16.msra.mxu0 %v660
    %685 = vmatprep.subr.bf16.mxu0 0
    %686 = vmatpush1.bf16.msra.mxu0 %v659
    %687 = vmatprep.subr.bf16.mxu0 0
    %688 = vmatpush1.bf16.msra.mxu0 %v658
    %689 = vmatprep.subr.bf16.mxu0 0
    %690 = vmatpush2.bf16.msra.mxu0 0
    %691 = vmatprep.subr.bf16.mxu0 0
    %692 = vmatpush2.bf16.msra.mxu0 0
    %693 = vmatprep.subr.bf16.mxu0 0
    %694 = vmatpush2.bf16.msra.mxu0 0
    %695 = vmatprep.subr.bf16.mxu0 0
    %696 = vmatpush2.bf16.msra.mxu0 0
    %697 = vmatprep.subr.bf16.mxu0 0
    %698 = vmatpush2.bf16.msra.mxu0 0
    %699 = vmatprep.subr.bf16.mxu0 0
    %700 = vmatpush2.bf16.msra.mxu0 0
    %701 = vmatprep.subr.bf16.mxu0 0
    %702 = vmatpush2.bf16.msra.mxu0 0
    %703 = vmatprep.subr.bf16.mxu0 0
    %704 = vmatpush2.bf16.msra.mxu0 0
    %705 = vmatprep.mubr.bf16.mxu0 0
    %706 = vmatmul.mubr.bf16.gmra.mxu0 %v665
    %v707 = vpop.f32.mrf.mxu0
    %v708 = vadd.f32 0.0, %v707
    %v709 = vpop.f32.mrf.mxu0
    %v710 = vpop.f32.mrf.mxu0
    %v711 = vadd.f32 0.0, %v710
    %v712 = vpop.f32.mrf.mxu0
    %713 = vmatprep.mubr.bf16.mxu0 0
    %714 = vmatmul.mubr.bf16.gmra.mxu0 %v668
    %v715 = vpop.f32.mrf.mxu0
    %v716 = vadd.f32 0.0, %v715
    %v717 = vpop.f32.mrf.mxu0
    %v718 = vpop.f32.mrf.mxu0
    %v719 = vadd.f32 0.0, %v718
    %v720 = vpop.f32.mrf.mxu0
    %721 = vmatprep.mubr.bf16.mxu0 0
    %722 = vmatmul.mubr.bf16.gmra.mxu0 %v671
    %v723 = vpop.f32.mrf.mxu0
    %v724 = vadd.f32 0.0, %v723
    %v725 = vpop.f32.mrf.mxu0
    %v726 = vpop.f32.mrf.mxu0
    %v727 = vadd.f32 0.0, %v726
    %v728 = vpop.f32.mrf.mxu0
    %729 = vdwg.mxu0
    %v731 = vsel %vm400, %v494, 0
    %v734 = vsel %vm400, %v495, 0
    %v737 = vsel %vm400, %v496, 0
    %739 = vmatprep.subr.bf16.mxu0 0
    %740 = vmatpush1.bf16.msra.mxu0 0
    %741 = vmatprep.subr.bf16.mxu0 0
    %742 = vmatpush1.bf16.msra.mxu0 0
    %743 = vmatprep.subr.bf16.mxu0 0
    %744 = vmatpush1.bf16.msra.mxu0 0
    %745 = vmatprep.subr.bf16.mxu0 0
    %746 = vmatpush1.bf16.msra.mxu0 0
    %747 = vmatprep.subr.bf16.mxu0 0
    %748 = vmatpush1.bf16.msra.mxu0 0
    %749 = vmatprep.subr.bf16.mxu0 0
    %750 = vmatpush1.bf16.msra.mxu0 %v493
    %751 = vmatprep.subr.bf16.mxu0 0
    %752 = vmatpush1.bf16.msra.mxu0 %v492
    %753 = vmatprep.subr.bf16.mxu0 0
    %754 = vmatpush1.bf16.msra.mxu0 %v491
    %755 = vmatprep.subr.bf16.mxu0 0
    %756 = vmatpush2.bf16.msra.mxu0 0
    %757 = vmatprep.subr.bf16.mxu0 0
    %758 = vmatpush2.bf16.msra.mxu0 0
    %759 = vmatprep.subr.bf16.mxu0 0
    %760 = vmatpush2.bf16.msra.mxu0 0
    %761 = vmatprep.subr.bf16.mxu0 0
    %762 = vmatpush2.bf16.msra.mxu0 0
    %763 = vmatprep.subr.bf16.mxu0 0
    %764 = vmatpush2.bf16.msra.mxu0 0
    %765 = vmatprep.subr.bf16.mxu0 0
    %766 = vmatpush2.bf16.msra.mxu0 0
    %767 = vmatprep.subr.bf16.mxu0 0
    %768 = vmatpush2.bf16.msra.mxu0 0
    %769 = vmatprep.subr.bf16.mxu0 0
    %770 = vmatpush2.bf16.msra.mxu0 0
    %771 = vmatprep.mubr.bf16.mxu0 0
    %772 = vmatmul.mubr.bf16.gmra.mxu0 %v731
    %v773 = vpop.f32.mrf.mxu0
    %v774 = vadd.f32 %v708, %v773
    %v775 = vpop.f32.mrf.mxu0
    %v776 = vpop.f32.mrf.mxu0
    %v777 = vadd.f32 %v711, %v776
    %v778 = vpop.f32.mrf.mxu0
    %779 = vmatprep.mubr.bf16.mxu0 0
    %780 = vmatmul.mubr.bf16.gmra.mxu0 %v734
    %v781 = vpop.f32.mrf.mxu0
    %v782 = vadd.f32 %v716, %v781
    %v783 = vpop.f32.mrf.mxu0
    %v784 = vpop.f32.mrf.mxu0
    %v785 = vadd.f32 %v719, %v784
    %v786 = vpop.f32.mrf.mxu0
    %787 = vmatprep.mubr.bf16.mxu0 0
    %788 = vmatmul.mubr.bf16.gmra.mxu0 %v737
    %v789 = vpop.f32.mrf.mxu0
    %v790 = vadd.f32 %v724, %v789
    %v791 = vpop.f32.mrf.mxu0
    %v792 = vpop.f32.mrf.mxu0
    %v793 = vadd.f32 %v727, %v792
    %v794 = vpop.f32.mrf.mxu0
    %795 = vdwg.mxu0
    %v796 = vsel %vm92, 1, 0
    %vm797 = vcmp.eq.s32.totalorder %v796, 1
    %v798 = vsel %vm797, %v287, 0.0
    %v799 = vsel %vm797, %v289, 0.0
    %v800 = vsel %vm797, %v291, 0.0
    %v801 = vsel %vm797, %v293, 0.0
    %v802 = vsel %vm797, %v295, 0.0
    %v803 = vsel %vm797, %v297, 0.0
    %v804 = vpack.c.bf16 %v799, %v798
    %v805 = vpack.c.bf16 %v801, %v800
    %v806 = vpack.c.bf16 %v803, %v802
    %v808 = vsel %vm208, %v804, 0
    %v811 = vsel %vm208, %v805, 0
    %v814 = vsel %vm208, %v806, 0
    %816 = vmatprep.subr.bf16.mxu0 0
    %817 = vmatpush1.bf16.xpose.msra.mxu0 0
    %818 = vmatprep.subr.bf16.mxu0 0
    %819 = vmatpush1.bf16.xpose.msra.mxu0 0
    %820 = vmatprep.subr.bf16.mxu0 0
    %821 = vmatpush1.bf16.xpose.msra.mxu0 0
    %822 = vmatprep.subr.bf16.mxu0 0
    %823 = vmatpush1.bf16.xpose.msra.mxu0 0
    %824 = vmatprep.subr.bf16.mxu0 0
    %825 = vmatpush1.bf16.xpose.msra.mxu0 0
    %826 = vmatprep.subr.bf16.mxu0 0
    %827 = vmatpush1.bf16.xpose.msra.mxu0 %v814
    %828 = vmatprep.subr.bf16.mxu0 0
    %829 = vmatpush1.bf16.xpose.msra.mxu0 %v811
    %830 = vmatprep.subr.bf16.mxu0 0
    %831 = vmatpush1.bf16.xpose.msra.mxu0 %v808
    %832 = vmatprep.subr.bf16.mxu0 0
    %833 = vmatpush2.bf16.xpose.msra.mxu0 0
    %834 = vmatprep.subr.bf16.mxu0 0
    %835 = vmatpush2.bf16.xpose.msra.mxu0 0
    %836 = vmatprep.subr.bf16.mxu0 0
    %837 = vmatpush2.bf16.xpose.msra.mxu0 0
    %838 = vmatprep.subr.bf16.mxu0 0
    %839 = vmatpush2.bf16.xpose.msra.mxu0 0
    %840 = vmatprep.subr.bf16.mxu0 0
    %841 = vmatpush2.bf16.xpose.msra.mxu0 0
    %842 = vmatprep.subr.bf16.mxu0 0
    %843 = vmatpush2.bf16.xpose.msra.mxu0 0
    %844 = vmatprep.subr.bf16.mxu0 0
    %845 = vmatpush2.bf16.xpose.msra.mxu0 0
    %846 = vmatprep.subr.bf16.mxu0 0
    %847 = vmatpush2.bf16.xpose.msra.mxu0 0
    %848 = vmatprep.mubr.bf16.mxu0 0
    %849 = vmatmul.mubr.bf16.gmra.mxu0 %v314
    %v850 = vpop.f32.mrf.mxu0
    %v851 = vadd.f32 0.0, %v850
    %v852 = vpop.f32.mrf.mxu0
    %v853 = vpop.f32.mrf.mxu0
    %v854 = vadd.f32 0.0, %v853
    %v855 = vpop.f32.mrf.mxu0
    %856 = vmatprep.mubr.bf16.mxu0 0
    %857 = vmatmul.mubr.bf16.gmra.mxu0 %v317
    %v858 = vpop.f32.mrf.mxu0
    %v859 = vadd.f32 0.0, %v858
    %v860 = vpop.f32.mrf.mxu0
    %v861 = vpop.f32.mrf.mxu0
    %v862 = vadd.f32 0.0, %v861
    %v863 = vpop.f32.mrf.mxu0
    %864 = vmatprep.mubr.bf16.mxu0 0
    %865 = vmatmul.mubr.bf16.gmra.mxu0 %v320
    %v866 = vpop.f32.mrf.mxu0
    %v867 = vadd.f32 0.0, %v866
    %v868 = vpop.f32.mrf.mxu0
    %v869 = vpop.f32.mrf.mxu0
    %v870 = vadd.f32 0.0, %v869
    %v871 = vpop.f32.mrf.mxu0
    %872 = vdwg.mxu0
    %v873 = vmul.f32 %v851, 0.35355338
    %v874 = vmul.f32 %v854, 0.35355338
    %v875 = vmul.f32 %v859, 0.35355338
    %v876 = vmul.f32 %v862, 0.35355338
    %v877 = vmul.f32 %v867, 0.35355338
    %v878 = vmul.f32 %v870, 0.35355338
    %v879 = vadd.f32 %v873, %v79
    %v880 = vadd.f32 %v874, %v80
    %v881 = vadd.f32 %v875, %v81
    %v882 = vadd.f32 %v876, %v82
    %v883 = vadd.f32 %v877, %v83
    %v884 = vadd.f32 %v878, %v84
    %v885 = vsel %vm400, %v879, -inf
    %886 = vmax.xlane.f32.xlu0 %v885
    %v887 = vpop.xlane.xlu0 %886
    %v888 = vsel %vm400, %v880, -inf
    %889 = vmax.xlane.f32.xlu0 %v888
    %v890 = vpop.xlane.xlu0 %889
    %v891 = vsel %vm400, %v881, -inf
    %892 = vmax.xlane.f32.xlu0 %v891
    %v893 = vpop.xlane.xlu0 %892
    %v894 = vsel %vm400, %v882, -inf
    %895 = vmax.xlane.f32.xlu0 %v894
    %v896 = vpop.xlane.xlu0 %895
    %v897 = vsel %vm400, %v883, -inf
    %898 = vmax.xlane.f32.xlu0 %v897
    %v899 = vpop.xlane.xlu0 %898
    %v900 = vsel %vm400, %v884, -inf
    %901 = vmax.xlane.f32.xlu0 %v900
    %v902 = vpop.xlane.xlu0 %901
    %v903 = vsub.f32 %v879, %v887
    %v904 = vsub.f32 %v880, %v890
    %v905 = vsub.f32 %v881, %v893
    %v906 = vsub.f32 %v882, %v896
    %v907 = vsub.f32 %v883, %v899
    %v908 = vsub.f32 %v884, %v902
    %v909 = vmul.f32 %v903, 1.442695
    %v910 = vpow.pop %v909
    %v911 = vmul.f32 %v904, 1.442695
    %v912 = vpow.pop %v911
    %v913 = vmul.f32 %v905, 1.442695
    %v914 = vpow.pop %v913
    %v915 = vmul.f32 %v906, 1.442695
    %v916 = vpow.pop %v915
    %v917 = vmul.f32 %v907, 1.442695
    %v918 = vpow.pop %v917
    %v919 = vmul.f32 %v908, 1.442695
    %v920 = vpow.pop %v919
    %v921 = vsel %vm400, %v910, 0.0
    %922 = vadd.xlane.f32.xlu0 %v921
    %v923 = vpop.xlane.xlu0 %922
    %v924 = vsel %vm400, %v912, 0.0
    %925 = vadd.xlane.f32.xlu0 %v924
    %v926 = vpop.xlane.xlu0 %925
    %v927 = vsel %vm400, %v914, 0.0
    %928 = vadd.xlane.f32.xlu0 %v927
    %v929 = vpop.xlane.xlu0 %928
    %v930 = vsel %vm400, %v916, 0.0
    %931 = vadd.xlane.f32.xlu0 %v930
    %v932 = vpop.xlane.xlu0 %931
    %v933 = vsel %vm400, %v918, 0.0
    %934 = vadd.xlane.f32.xlu0 %v933
    %v935 = vpop.xlane.xlu0 %934
    %v936 = vsel %vm400, %v920, 0.0
    %937 = vadd.xlane.f32.xlu0 %v936
    %v938 = vpop.xlane.xlu0 %937
    %v939 = vrcp.pop %v923
    %v940 = vrcp.pop %v926
    %v941 = vrcp.pop %v929
    %v942 = vrcp.pop %v932
    %v943 = vrcp.pop %v935
    %v944 = vrcp.pop %v938
    %v945 = vmul.f32 %v910, %v939
    %v946 = vmul.f32 %v912, %v940
    %v947 = vmul.f32 %v914, %v941
    %v948 = vmul.f32 %v916, %v942
    %v949 = vmul.f32 %v918, %v943
    %v950 = vmul.f32 %v920, %v944
    %v951 = vsel %vm797, %v468, 0.0
    %v952 = vsel %vm797, %v470, 0.0
    %v953 = vsel %vm797, %v472, 0.0
    %v954 = vsel %vm797, %v474, 0.0
    %v955 = vsel %vm797, %v476, 0.0
    %v956 = vsel %vm797, %v478, 0.0
    %v957 = vpack.c.bf16 %v952, %v951
    %v958 = vpack.c.bf16 %v954, %v953
    %v959 = vpack.c.bf16 %v956, %v955
    %v960 = vpack.c.bf16 %v946, %v945
    %v961 = vpack.c.bf16 %v948, %v947
    %v962 = vpack.c.bf16 %v950, %v949
    %v964 = vsel %vm400, %v960, 0
    %v967 = vsel %vm400, %v961, 0
    %v970 = vsel %vm400, %v962, 0
    %972 = vmatprep.subr.bf16.mxu0 0
    %973 = vmatpush1.bf16.msra.mxu0 0
    %974 = vmatprep.subr.bf16.mxu0 0
    %975 = vmatpush1.bf16.msra.mxu0 0
    %976 = vmatprep.subr.bf16.mxu0 0
    %977 = vmatpush1.bf16.msra.mxu0 0
    %978 = vmatprep.subr.bf16.mxu0 0
    %979 = vmatpush1.bf16.msra.mxu0 0
    %980 = vmatprep.subr.bf16.mxu0 0
    %981 = vmatpush1.bf16.msra.mxu0 0
    %982 = vmatprep.subr.bf16.mxu0 0
    %983 = vmatpush1.bf16.msra.mxu0 %v959
    %984 = vmatprep.subr.bf16.mxu0 0
    %985 = vmatpush1.bf16.msra.mxu0 %v958
    %986 = vmatprep.subr.bf16.mxu0 0
    %987 = vmatpush1.bf16.msra.mxu0 %v957
    %988 = vmatprep.subr.bf16.mxu0 0
    %989 = vmatpush2.bf16.msra.mxu0 0
    %990 = vmatprep.subr.bf16.mxu0 0
    %991 = vmatpush2.bf16.msra.mxu0 0
    %992 = vmatprep.subr.bf16.mxu0 0
    %993 = vmatpush2.bf16.msra.mxu0 0
    %994 = vmatprep.subr.bf16.mxu0 0
    %995 = vmatpush2.bf16.msra.mxu0 0
    %996 = vmatprep.subr.bf16.mxu0 0
    %997 = vmatpush2.bf16.msra.mxu0 0
    %998 = vmatprep.subr.bf16.mxu0 0
    %999 = vmatpush2.bf16.msra.mxu0 0
    %1000 = vmatprep.subr.bf16.mxu0 0
    %1001 = vmatpush2.bf16.msra.mxu0 0
    %1002 = vmatprep.subr.bf16.mxu0 0
    %1003 = vmatpush2.bf16.msra.mxu0 0
    %1004 = vmatprep.mubr.bf16.mxu0 0
    %1005 = vmatmul.mubr.bf16.gmra.mxu0 %v964
    %v1006 = vpop.f32.mrf.mxu0
    %v1007 = vadd.f32 0.0, %v1006
    %v1008 = vpop.f32.mrf.mxu0
    %v1009 = vpop.f32.mrf.mxu0
    %v1010 = vadd.f32 0.0, %v1009
    %v1011 = vpop.f32.mrf.mxu0
    %1012 = vmatprep.mubr.bf16.mxu0 0
    %1013 = vmatmul.mubr.bf16.gmra.mxu0 %v967
    %v1014 = vpop.f32.mrf.mxu0
    %v1015 = vadd.f32 0.0, %v1014
    %v1016 = vpop.f32.mrf.mxu0
    %v1017 = vpop.f32.mrf.mxu0
    %v1018 = vadd.f32 0.0, %v1017
    %v1019 = vpop.f32.mrf.mxu0
    %1020 = vmatprep.mubr.bf16.mxu0 0
    %1021 = vmatmul.mubr.bf16.gmra.mxu0 %v970
    %v1022 = vpop.f32.mrf.mxu0
    %v1023 = vadd.f32 0.0, %v1022
    %v1024 = vpop.f32.mrf.mxu0
    %v1025 = vpop.f32.mrf.mxu0
    %v1026 = vadd.f32 0.0, %v1025
    %v1027 = vpop.f32.mrf.mxu0
    %1028 = vdwg.mxu0
    %v1029 = vadd.f32 %v774, %v1007
    %v1030 = vadd.f32 %v777, %v1010
    %v1031 = vadd.f32 %v782, %v1015
    %v1032 = vadd.f32 %v785, %v1018
    %v1033 = vadd.f32 %v790, %v1023
    %v1034 = vadd.f32 %v793, %v1026
    %v1035 = vsel %vm94, 1, 0
    %vm1036 = vcmp.eq.s32.totalorder %v1035, 1
    %v1037 = vsel %vm1036, %v287, 0.0
    %v1038 = vsel %vm1036, %v289, 0.0
    %v1039 = vsel %vm1036, %v291, 0.0
    %v1040 = vsel %vm1036, %v293, 0.0
    %v1041 = vsel %vm1036, %v295, 0.0
    %v1042 = vsel %vm1036, %v297, 0.0
    %v1043 = vpack.c.bf16 %v1038, %v1037
    %v1044 = vpack.c.bf16 %v1040, %v1039
    %v1045 = vpack.c.bf16 %v1042, %v1041
    %v1047 = vsel %vm208, %v1043, 0
    %v1050 = vsel %vm208, %v1044, 0
    %v1053 = vsel %vm208, %v1045, 0
    %1055 = vmatprep.subr.bf16.mxu0 0
    %1056 = vmatpush1.bf16.xpose.msra.mxu0 0
    %1057 = vmatprep.subr.bf16.mxu0 0
    %1058 = vmatpush1.bf16.xpose.msra.mxu0 0
    %1059 = vmatprep.subr.bf16.mxu0 0
    %1060 = vmatpush1.bf16.xpose.msra.mxu0 0
    %1061 = vmatprep.subr.bf16.mxu0 0
    %1062 = vmatpush1.bf16.xpose.msra.mxu0 0
    %1063 = vmatprep.subr.bf16.mxu0 0
    %1064 = vmatpush1.bf16.xpose.msra.mxu0 0
    %1065 = vmatprep.subr.bf16.mxu0 0
    %1066 = vmatpush1.bf16.xpose.msra.mxu0 %v1053
    %1067 = vmatprep.subr.bf16.mxu0 0
    %1068 = vmatpush1.bf16.xpose.msra.mxu0 %v1050
    %1069 = vmatprep.subr.bf16.mxu0 0
    %1070 = vmatpush1.bf16.xpose.msra.mxu0 %v1047
    %1071 = vmatprep.subr.bf16.mxu0 0
    %1072 = vmatpush2.bf16.xpose.msra.mxu0 0
    %1073 = vmatprep.subr.bf16.mxu0 0
    %1074 = vmatpush2.bf16.xpose.msra.mxu0 0
    %1075 = vmatprep.subr.bf16.mxu0 0
    %1076 = vmatpush2.bf16.xpose.msra.mxu0 0
    %1077 = vmatprep.subr.bf16.mxu0 0
    %1078 = vmatpush2.bf16.xpose.msra.mxu0 0
    %1079 = vmatprep.subr.bf16.mxu0 0
    %1080 = vmatpush2.bf16.xpose.msra.mxu0 0
    %1081 = vmatprep.subr.bf16.mxu0 0
    %1082 = vmatpush2.bf16.xpose.msra.mxu0 0
    %1083 = vmatprep.subr.bf16.mxu0 0
    %1084 = vmatpush2.bf16.xpose.msra.mxu0 0
    %1085 = vmatprep.subr.bf16.mxu0 0
    %1086 = vmatpush2.bf16.xpose.msra.mxu0 0
    %1087 = vmatprep.mubr.bf16.mxu0 0
    %1088 = vmatmul.mubr.bf16.gmra.mxu0 %v314
    %v1089 = vpop.f32.mrf.mxu0
    %v1090 = vadd.f32 0.0, %v1089
    %v1091 = vpop.f32.mrf.mxu0
    %v1092 = vpop.f32.mrf.mxu0
    %v1093 = vadd.f32 0.0, %v1092
    %v1094 = vpop.f32.mrf.mxu0
    %1095 = vmatprep.mubr.bf16.mxu0 0
    %1096 = vmatmul.mubr.bf16.gmra.mxu0 %v317
    %v1097 = vpop.f32.mrf.mxu0
    %v1098 = vadd.f32 0.0, %v1097
    %v1099 = vpop.f32.mrf.mxu0
    %v1100 = vpop.f32.mrf.mxu0
    %v1101 = vadd.f32 0.0, %v1100
    %v1102 = vpop.f32.mrf.mxu0
    %1103 = vmatprep.mubr.bf16.mxu0 0
    %1104 = vmatmul.mubr.bf16.gmra.mxu0 %v320
    %v1105 = vpop.f32.mrf.mxu0
    %v1106 = vadd.f32 0.0, %v1105
    %v1107 = vpop.f32.mrf.mxu0
    %v1108 = vpop.f32.mrf.mxu0
    %v1109 = vadd.f32 0.0, %v1108
    %v1110 = vpop.f32.mrf.mxu0
    %1111 = vdwg.mxu0
    %v1112 = vmul.f32 %v1090, 0.35355338
    %v1113 = vmul.f32 %v1093, 0.35355338
    %v1114 = vmul.f32 %v1098, 0.35355338
    %v1115 = vmul.f32 %v1101, 0.35355338
    %v1116 = vmul.f32 %v1106, 0.35355338
    %v1117 = vmul.f32 %v1109, 0.35355338
    %v1118 = vadd.f32 %v1112, %v79
    %v1119 = vadd.f32 %v1113, %v80
    %v1120 = vadd.f32 %v1114, %v81
    %v1121 = vadd.f32 %v1115, %v82
    %v1122 = vadd.f32 %v1116, %v83
    %v1123 = vadd.f32 %v1117, %v84
    %v1124 = vsel %vm400, %v1118, -inf
    %1125 = vmax.xlane.f32.xlu0 %v1124
    %v1126 = vpop.xlane.xlu0 %1125
    %v1127 = vsel %vm400, %v1119, -inf
    %1128 = vmax.xlane.f32.xlu0 %v1127
    %v1129 = vpop.xlane.xlu0 %1128
    %v1130 = vsel %vm400, %v1120, -inf
    %1131 = vmax.xlane.f32.xlu0 %v1130
    %v1132 = vpop.xlane.xlu0 %1131
    %v1133 = vsel %vm400, %v1121, -inf
    %1134 = vmax.xlane.f32.xlu0 %v1133
    %v1135 = vpop.xlane.xlu0 %1134
    %v1136 = vsel %vm400, %v1122, -inf
    %1137 = vmax.xlane.f32.xlu0 %v1136
    %v1138 = vpop.xlane.xlu0 %1137
    %v1139 = vsel %vm400, %v1123, -inf
    %1140 = vmax.xlane.f32.xlu0 %v1139
    %v1141 = vpop.xlane.xlu0 %1140
    %v1142 = vsub.f32 %v1118, %v1126
    %v1143 = vsub.f32 %v1119, %v1129
    %v1144 = vsub.f32 %v1120, %v1132
    %v1145 = vsub.f32 %v1121, %v1135
    %v1146 = vsub.f32 %v1122, %v1138
    %v1147 = vsub.f32 %v1123, %v1141
    %v1148 = vmul.f32 %v1142, 1.442695
    %v1149 = vpow.pop %v1148
    %v1150 = vmul.f32 %v1143, 1.442695
    %v1151 = vpow.pop %v1150
    %v1152 = vmul.f32 %v1144, 1.442695
    %v1153 = vpow.pop %v1152
    %v1154 = vmul.f32 %v1145, 1.442695
    %v1155 = vpow.pop %v1154
    %v1156 = vmul.f32 %v1146, 1.442695
    %v1157 = vpow.pop %v1156
    %v1158 = vmul.f32 %v1147, 1.442695
    %v1159 = vpow.pop %v1158
    %v1160 = vsel %vm400, %v1149, 0.0
    %1161 = vadd.xlane.f32.xlu0 %v1160
    %v1162 = vpop.xlane.xlu0 %1161
    %v1163 = vsel %vm400, %v1151, 0.0
    %1164 = vadd.xlane.f32.xlu0 %v1163
    %v1165 = vpop.xlane.xlu0 %1164
    %v1166 = vsel %vm400, %v1153, 0.0
    %1167 = vadd.xlane.f32.xlu0 %v1166
    %v1168 = vpop.xlane.xlu0 %1167
    %v1169 = vsel %vm400, %v1155, 0.0
    %1170 = vadd.xlane.f32.xlu0 %v1169
    %v1171 = vpop.xlane.xlu0 %1170
    %v1172 = vsel %vm400, %v1157, 0.0
    %1173 = vadd.xlane.f32.xlu0 %v1172
    %v1174 = vpop.xlane.xlu0 %1173
    %v1175 = vsel %vm400, %v1159, 0.0
    %1176 = vadd.xlane.f32.xlu0 %v1175
    %v1177 = vpop.xlane.xlu0 %1176
    %v1178 = vrcp.pop %v1162
    %v1179 = vrcp.pop %v1165
    %v1180 = vrcp.pop %v1168
    %v1181 = vrcp.pop %v1171
    %v1182 = vrcp.pop %v1174
    %v1183 = vrcp.pop %v1177
    %v1184 = vmul.f32 %v1149, %v1178
    %v1185 = vmul.f32 %v1151, %v1179
    %v1186 = vmul.f32 %v1153, %v1180
    %v1187 = vmul.f32 %v1155, %v1181
    %v1188 = vmul.f32 %v1157, %v1182
    %v1189 = vmul.f32 %v1159, %v1183
    %v1190 = vsel %vm1036, %v468, 0.0
    %v1191 = vsel %vm1036, %v470, 0.0
    %v1192 = vsel %vm1036, %v472, 0.0
    %v1193 = vsel %vm1036, %v474, 0.0
    %v1194 = vsel %vm1036, %v476, 0.0
    %v1195 = vsel %vm1036, %v478, 0.0
    %v1196 = vpack.c.bf16 %v1191, %v1190
    %v1197 = vpack.c.bf16 %v1193, %v1192
    %v1198 = vpack.c.bf16 %v1195, %v1194
    %v1199 = vpack.c.bf16 %v1185, %v1184
    %v1200 = vpack.c.bf16 %v1187, %v1186
    %v1201 = vpack.c.bf16 %v1189, %v1188
    %v1203 = vsel %vm400, %v1199, 0
    %v1206 = vsel %vm400, %v1200, 0
    %v1209 = vsel %vm400, %v1201, 0
    %1211 = vmatprep.subr.bf16.mxu0 0
    %1212 = vmatpush1.bf16.msra.mxu0 0
    %1213 = vmatprep.subr.bf16.mxu0 0
    %1214 = vmatpush1.bf16.msra.mxu0 0
    %1215 = vmatprep.subr.bf16.mxu0 0
    %1216 = vmatpush1.bf16.msra.mxu0 0
    %1217 = vmatprep.subr.bf16.mxu0 0
    %1218 = vmatpush1.bf16.msra.mxu0 0
    %1219 = vmatprep.subr.bf16.mxu0 0
    %1220 = vmatpush1.bf16.msra.mxu0 0
    %1221 = vmatprep.subr.bf16.mxu0 0
    %1222 = vmatpush1.bf16.msra.mxu0 %v1198
    %1223 = vmatprep.subr.bf16.mxu0 0
    %1224 = vmatpush1.bf16.msra.mxu0 %v1197
    %1225 = vmatprep.subr.bf16.mxu0 0
    %1226 = vmatpush1.bf16.msra.mxu0 %v1196
    %1227 = vmatprep.subr.bf16.mxu0 0
    %1228 = vmatpush2.bf16.msra.mxu0 0
    %1229 = vmatprep.subr.bf16.mxu0 0
    %1230 = vmatpush2.bf16.msra.mxu0 0
    %1231 = vmatprep.subr.bf16.mxu0 0
    %1232 = vmatpush2.bf16.msra.mxu0 0
    %1233 = vmatprep.subr.bf16.mxu0 0
    %1234 = vmatpush2.bf16.msra.mxu0 0
    %1235 = vmatprep.subr.bf16.mxu0 0
    %1236 = vmatpush2.bf16.msra.mxu0 0
    %1237 = vmatprep.subr.bf16.mxu0 0
    %1238 = vmatpush2.bf16.msra.mxu0 0
    %1239 = vmatprep.subr.bf16.mxu0 0
    %1240 = vmatpush2.bf16.msra.mxu0 0
    %1241 = vmatprep.subr.bf16.mxu0 0
    %1242 = vmatpush2.bf16.msra.mxu0 0
    %1243 = vmatprep.mubr.bf16.mxu0 0
    %1244 = vmatmul.mubr.bf16.gmra.mxu0 %v1203
    %v1245 = vpop.f32.mrf.mxu0
    %v1246 = vadd.f32 0.0, %v1245
    %v1247 = vpop.f32.mrf.mxu0
    %v1248 = vpop.f32.mrf.mxu0
    %v1249 = vadd.f32 0.0, %v1248
    %v1250 = vpop.f32.mrf.mxu0
    %1251 = vmatprep.mubr.bf16.mxu0 0
    %1252 = vmatmul.mubr.bf16.gmra.mxu0 %v1206
    %v1253 = vpop.f32.mrf.mxu0
    %v1254 = vadd.f32 0.0, %v1253
    %v1255 = vpop.f32.mrf.mxu0
    %v1256 = vpop.f32.mrf.mxu0
    %v1257 = vadd.f32 0.0, %v1256
    %v1258 = vpop.f32.mrf.mxu0
    %1259 = vmatprep.mubr.bf16.mxu0 0
    %1260 = vmatmul.mubr.bf16.gmra.mxu0 %v1209
    %v1261 = vpop.f32.mrf.mxu0
    %v1262 = vadd.f32 0.0, %v1261
    %v1263 = vpop.f32.mrf.mxu0
    %v1264 = vpop.f32.mrf.mxu0
    %v1265 = vadd.f32 0.0, %v1264
    %v1266 = vpop.f32.mrf.mxu0
    %1267 = vdwg.mxu0
    %v1268 = vadd.f32 %v1029, %v1246
    %v1269 = vadd.f32 %v1030, %v1249
    %v1270 = vadd.f32 %v1031, %v1254
    %v1271 = vadd.f32 %v1032, %v1257
    %v1272 = vadd.f32 %v1033, %v1262
    %v1273 = vadd.f32 %v1034, %v1265
    %v1274 = vpack.c.bf16 %v1269, %v1268
    %v1275 = vpack.c.bf16 %v1271, %v1270
    %v1276 = vpack.c.bf16 %v1273, %v1272
    %v1277 = vld [vmem:[%s3] sm:$0xf]
    %v1278 = vld [vmem:[%s3 + $0x4] sm:$0xf]
    %v1279 = vld [vmem:[%s3 + $0x8] sm:$0xf]
    %v1280 = vld [vmem:[%s3 + $0xc] sm:$0xf]
    %v1285 = vunpack.c.l.b16 %v1277
    %v1286 = vunpack.c.l.b16 %v1278
    %v1287 = vunpack.c.l.b16 %v1279
    %v1288 = vunpack.c.l.b16 %v1280
    %v1289 = vpack.c.b16 %v1286, %v1285
    %v1290 = vpack.c.b16 %v1288, %v1287
    %v1294 = vsel %vm208, %v1274, 0
    %v1297 = vsel %vm208, %v1275, 0
    %v1300 = vsel %vm208, %v1276, 0
    %1302 = vmatprep.subr.bf16.mxu0 0
    %1303 = vmatpush1.bf16.msra.mxu0 0
    %1304 = vmatprep.subr.bf16.mxu0 0
    %1305 = vmatpush1.bf16.msra.mxu0 0
    %1306 = vmatprep.subr.bf16.mxu0 0
    %1307 = vmatpush1.bf16.msra.mxu0 0
    %1308 = vmatprep.subr.bf16.mxu0 0
    %1309 = vmatpush1.bf16.msra.mxu0 0
    %1310 = vmatprep.subr.bf16.mxu0 0
    %1311 = vmatpush1.bf16.msra.mxu0 0
    %1312 = vmatprep.subr.bf16.mxu0 0
    %1313 = vmatpush1.bf16.msra.mxu0 0
    %1314 = vmatprep.subr.bf16.mxu0 0
    %1315 = vmatpush1.bf16.msra.mxu0 %v1290
    %1316 = vmatprep.subr.bf16.mxu0 0
    %1317 = vmatpush1.bf16.msra.mxu0 %v1289
    %1318 = vmatprep.subr.bf16.mxu0 0
    %1319 = vmatpush2.bf16.msra.mxu0 0
    %1320 = vmatprep.subr.bf16.mxu0 0
    %1321 = vmatpush2.bf16.msra.mxu0 0
    %1322 = vmatprep.subr.bf16.mxu0 0
    %1323 = vmatpush2.bf16.msra.mxu0 0
    %1324 = vmatprep.subr.bf16.mxu0 0
    %1325 = vmatpush2.bf16.msra.mxu0 0
    %1326 = vmatprep.subr.bf16.mxu0 0
    %1327 = vmatpush2.bf16.msra.mxu0 0
    %1328 = vmatprep.subr.bf16.mxu0 0
    %1329 = vmatpush2.bf16.msra.mxu0 0
    %1330 = vmatprep.subr.bf16.mxu0 0
    %1331 = vmatpush2.bf16.msra.mxu0 0
    %1332 = vmatprep.subr.bf16.mxu0 0
    %1333 = vmatpush2.bf16.msra.mxu0 0
    %1334 = vmatprep.mubr.bf16.mxu0 0
    %1335 = vmatmul.mubr.bf16.gmra.mxu0 %v1294
    %v1336 = vpop.f32.mrf.mxu0
    %v1337 = vadd.f32 0.0, %v1336
    %v1338 = vpop.f32.mrf.mxu0
    %v1339 = vpop.f32.mrf.mxu0
    %v1340 = vadd.f32 0.0, %v1339
    %v1341 = vpop.f32.mrf.mxu0
    %1342 = vmatprep.mubr.bf16.mxu0 0
    %1343 = vmatmul.mubr.bf16.gmra.mxu0 %v1297
    %v1344 = vpop.f32.mrf.mxu0
    %v1345 = vadd.f32 0.0, %v1344
    %v1346 = vpop.f32.mrf.mxu0
    %v1347 = vpop.f32.mrf.mxu0
    %v1348 = vadd.f32 0.0, %v1347
    %v1349 = vpop.f32.mrf.mxu0
    %1350 = vmatprep.mubr.bf16.mxu0 0
    %1351 = vmatmul.mubr.bf16.gmra.mxu0 %v1300
    %v1352 = vpop.f32.mrf.mxu0
    %v1353 = vadd.f32 0.0, %v1352
    %v1354 = vpop.f32.mrf.mxu0
    %v1355 = vpop.f32.mrf.mxu0
    %v1356 = vadd.f32 0.0, %v1355
    %v1357 = vpop.f32.mrf.mxu0
    %1358 = vdwg.mxu0
    %v1359 = vadd.f32 %v160, %v1337
    %v1360 = vadd.f32 %v163, %v1340
    %v1361 = vadd.f32 %v168, %v1345
    %v1362 = vadd.f32 %v171, %v1348
    %v1363 = vadd.f32 %v176, %v1353
    %v1364 = vadd.f32 %v179, %v1356
    %v1365 = vlaneseq
    %v1366 = vshrl.u32 %v1365, 7
    %v1367 = vsub.s32 0, %v1366
    %v1368 = vrot.slane %v187, %v1367
    %v1369 = vadd.f32 %v1359, %v1368
    %v1370 = vadd.f32 %v1360, %v1368
    %v1371 = vadd.f32 %v1361, %v1368
    %v1372 = vadd.f32 %v1362, %v1368
    %v1373 = vadd.f32 %v1363, %v1368
    %v1374 = vadd.f32 %v1364, %v1368
    %v1375 = vsel %vm208, %v1369, 0.0
    %1376 = vadd.xlane.f32.xlu0 %v1375
    %v1377 = vpop.xlane.xlu0 %1376
    %v1378 = vsel %vm208, %v1370, 0.0
    %1379 = vadd.xlane.f32.xlu0 %v1378
    %v1380 = vpop.xlane.xlu0 %1379
    %v1381 = vsel %vm208, %v1371, 0.0
    %1382 = vadd.xlane.f32.xlu0 %v1381
    %v1383 = vpop.xlane.xlu0 %1382
    %v1384 = vsel %vm208, %v1372, 0.0
    %1385 = vadd.xlane.f32.xlu0 %v1384
    %v1386 = vpop.xlane.xlu0 %1385
    %v1387 = vsel %vm208, %v1373, 0.0
    %1388 = vadd.xlane.f32.xlu0 %v1387
    %v1389 = vpop.xlane.xlu0 %1388
    %v1390 = vsel %vm208, %v1374, 0.0
    %1391 = vadd.xlane.f32.xlu0 %v1390
    %v1392 = vpop.xlane.xlu0 %1391
    %v1393 = vrcp.pop 32.0
    %v1394 = vmul.f32 %v1377, %v1393
    %v1395 = vmul.f32 %v1380, %v1393
    %v1396 = vmul.f32 %v1383, %v1393
    %v1397 = vmul.f32 %v1386, %v1393
    %v1398 = vmul.f32 %v1389, %v1393
    %v1399 = vmul.f32 %v1392, %v1393
    %v1400 = vsub.f32 %v1369, %v1394
    %v1401 = vsub.f32 %v1370, %v1395
    %v1402 = vsub.f32 %v1371, %v1396
    %v1403 = vsub.f32 %v1372, %v1397
    %v1404 = vsub.f32 %v1373, %v1398
    %v1405 = vsub.f32 %v1374, %v1399
    %v1406 = vmul.f32 %v1400, %v1400
    %v1407 = vmul.f32 %v1401, %v1401
    %v1408 = vmul.f32 %v1402, %v1402
    %v1409 = vmul.f32 %v1403, %v1403
    %v1410 = vmul.f32 %v1404, %v1404
    %v1411 = vmul.f32 %v1405, %v1405
    %v1412 = vsel %vm208, %v1406, 0.0
    %1413 = vadd.xlane.f32.xlu0 %v1412
    %v1414 = vpop.xlane.xlu0 %1413
    %v1415 = vsel %vm208, %v1407, 0.0
    %1416 = vadd.xlane.f32.xlu0 %v1415
    %v1417 = vpop.xlane.xlu0 %1416
    %v1418 = vsel %vm208, %v1408, 0.0
    %1419 = vadd.xlane.f32.xlu0 %v1418
    %v1420 = vpop.xlane.xlu0 %1419
    %v1421 = vsel %vm208, %v1409, 0.0
    %1422 = vadd.xlane.f32.xlu0 %v1421
    %v1423 = vpop.xlane.xlu0 %1422
    %v1424 = vsel %vm208, %v1410, 0.0
    %1425 = vadd.xlane.f32.xlu0 %v1424
    %v1426 = vpop.xlane.xlu0 %1425
    %v1427 = vsel %vm208, %v1411, 0.0
    %1428 = vadd.xlane.f32.xlu0 %v1427
    %v1429 = vpop.xlane.xlu0 %1428
    %v1430 = vmul.f32 %v1414, %v1393
    %v1431 = vmul.f32 %v1417, %v1393
    %v1432 = vmul.f32 %v1420, %v1393
    %v1433 = vmul.f32 %v1423, %v1393
    %v1434 = vmul.f32 %v1426, %v1393
    %v1435 = vmul.f32 %v1429, %v1393
    %v1436 = vadd.f32 %v1430, 1e-05
    %v1437 = vadd.f32 %v1431, 1e-05
    %v1438 = vadd.f32 %v1432, 1e-05
    %v1439 = vadd.f32 %v1433, 1e-05
    %v1440 = vadd.f32 %v1434, 1e-05
    %v1441 = vadd.f32 %v1435, 1e-05
    %v1442 = vrsqrt.pop %v1436
    %v1443 = vrsqrt.pop %v1437
    %v1444 = vrsqrt.pop %v1438
    %v1445 = vrsqrt.pop %v1439
    %v1446 = vrsqrt.pop %v1440
    %v1447 = vrsqrt.pop %v1441
    %v1448 = vmul.f32 %v1400, %v1442
    %v1449 = vmul.f32 %v1401, %v1443
    %v1450 = vmul.f32 %v1402, %v1444
    %v1451 = vmul.f32 %v1403, %v1445
    %v1452 = vmul.f32 %v1404, %v1446
    %v1453 = vmul.f32 %v1405, %v1447
    %v1454 = vlaneseq
    %v1455 = vshrl.u32 %v1454, 7
    %v1456 = vsub.s32 1, %v1455
    %v1457 = vrot.slane %v187, %v1456
    %v1458 = vmul.f32 %v1448, %v1457
    %v1459 = vmul.f32 %v1449, %v1457
    %v1460 = vmul.f32 %v1450, %v1457
    %v1461 = vmul.f32 %v1451, %v1457
    %v1462 = vmul.f32 %v1452, %v1457
    %v1463 = vmul.f32 %v1453, %v1457
    %v1464 = vlaneseq
    %v1465 = vshrl.u32 %v1464, 7
    %v1466 = vsub.s32 2, %v1465
    %v1467 = vrot.slane %v187, %v1466
    %v1468 = vadd.f32 %v1458, %v1467
    %v1469 = vadd.f32 %v1459, %v1467
    %v1470 = vadd.f32 %v1460, %v1467
    %v1471 = vadd.f32 %v1461, %v1467
    %v1472 = vadd.f32 %v1462, %v1467
    %v1473 = vadd.f32 %v1463, %v1467
    %v1474 = vld [vmem:[%s4] sm:$0xf]
    %v1475 = vld [vmem:[%s4 + $0x4] sm:$0xf]
    %v1476 = vld [vmem:[%s4 + $0x8] sm:$0xf]
    %v1477 = vld [vmem:[%s4 + $0xc] sm:$0xf]
    %v1478 = vld [vmem:[%s4 + $0x10] sm:$0x1]
    %v1479 = vpack.c.bf16 %v1469, %v1468
    %v1480 = vpack.c.bf16 %v1471, %v1470
    %v1481 = vpack.c.bf16 %v1473, %v1472
    %v1482 = vunpack.c.l.bf16 %v1478
    %v1483 = vlaneseq
    %v1484 = vshrl.u32 %v1483, 7
    %v1485 = vsub.s32 0, %v1484
    %v1486 = vrot.slane %v1482, %v1485
    %v1491 = vunpack.c.l.b16 %v1474
    %v1492 = vunpack.c.l.b16 %v1475
    %v1493 = vunpack.c.l.b16 %v1476
    %v1494 = vunpack.c.l.b16 %v1477
    %v1495 = vpack.c.b16 %v1492, %v1491
    %v1496 = vpack.c.b16 %v1494, %v1493
    %v1500 = vsel %vm208, %v1479, 0
    %v1503 = vsel %vm208, %v1480, 0
    %v1506 = vsel %vm208, %v1481, 0
    %1508 = vmatprep.subr.bf16.mxu0 0
    %1509 = vmatpush1.bf16.msra.mxu0 0
    %1510 = vmatprep.subr.bf16.mxu0 0
    %1511 = vmatpush1.bf16.msra.mxu0 0
    %1512 = vmatprep.subr.bf16.mxu0 0
    %1513 = vmatpush1.bf16.msra.mxu0 0
    %1514 = vmatprep.subr.bf16.mxu0 0
    %1515 = vmatpush1.bf16.msra.mxu0 0
    %1516 = vmatprep.subr.bf16.mxu0 0
    %1517 = vmatpush1.bf16.msra.mxu0 0
    %1518 = vmatprep.subr.bf16.mxu0 0
    %1519 = vmatpush1.bf16.msra.mxu0 0
    %1520 = vmatprep.subr.bf16.mxu0 0
    %1521 = vmatpush1.bf16.msra.mxu0 %v1496
    %1522 = vmatprep.subr.bf16.mxu0 0
    %1523 = vmatpush1.bf16.msra.mxu0 %v1495
    %1524 = vmatprep.subr.bf16.mxu0 0
    %1525 = vmatpush2.bf16.msra.mxu0 0
    %1526 = vmatprep.subr.bf16.mxu0 0
    %1527 = vmatpush2.bf16.msra.mxu0 0
    %1528 = vmatprep.subr.bf16.mxu0 0
    %1529 = vmatpush2.bf16.msra.mxu0 0
    %1530 = vmatprep.subr.bf16.mxu0 0
    %1531 = vmatpush2.bf16.msra.mxu0 0
    %1532 = vmatprep.subr.bf16.mxu0 0
    %1533 = vmatpush2.bf16.msra.mxu0 0
    %1534 = vmatprep.subr.bf16.mxu0 0
    %1535 = vmatpush2.bf16.msra.mxu0 0
    %1536 = vmatprep.subr.bf16.mxu0 0
    %1537 = vmatpush2.bf16.msra.mxu0 0
    %1538 = vmatprep.subr.bf16.mxu0 0
    %1539 = vmatpush2.bf16.msra.mxu0 0
    %1540 = vmatprep.mubr.bf16.mxu0 0
    %1541 = vmatmul.mubr.bf16.gmra.mxu0 %v1500
    %v1542 = vpop.f32.mrf.mxu0
    %v1543 = vadd.f32 %v1486, %v1542
    %v1544 = vpop.f32.mrf.mxu0
    %v1545 = vpop.f32.mrf.mxu0
    %v1546 = vadd.f32 %v1486, %v1545
    %v1547 = vpop.f32.mrf.mxu0
    %1548 = vmatprep.mubr.bf16.mxu0 0
    %1549 = vmatmul.mubr.bf16.gmra.mxu0 %v1503
    %v1550 = vpop.f32.mrf.mxu0
    %v1551 = vadd.f32 %v1486, %v1550
    %v1552 = vpop.f32.mrf.mxu0
    %v1553 = vpop.f32.mrf.mxu0
    %v1554 = vadd.f32 %v1486, %v1553
    %v1555 = vpop.f32.mrf.mxu0
    %1556 = vmatprep.mubr.bf16.mxu0 0
    %1557 = vmatmul.mubr.bf16.gmra.mxu0 %v1506
    %v1558 = vpop.f32.mrf.mxu0
    %v1559 = vadd.f32 %v1486, %v1558
    %v1560 = vpop.f32.mrf.mxu0
    %v1561 = vpop.f32.mrf.mxu0
    %v1562 = vadd.f32 %v1486, %v1561
    %v1563 = vpop.f32.mrf.mxu0
    %1564 = vdwg.mxu0
    %v1565 = vmax.f32 %v1543, 0.0
    %v1566 = vmax.f32 %v1546, 0.0
    %v1567 = vmax.f32 %v1551, 0.0
    %v1568 = vmax.f32 %v1554, 0.0
    %v1569 = vmax.f32 %v1559, 0.0
    %v1570 = vmax.f32 %v1562, 0.0
    %v1571 = vpack.c.bf16 %v1566, %v1565
    %v1572 = vpack.c.bf16 %v1568, %v1567
    %v1573 = vpack.c.bf16 %v1570, %v1569
    %v1574 = vld [vmem:[%s5] sm:$0xf]
    %v1575 = vld [vmem:[%s5 + $0x4] sm:$0xf]
    %v1576 = vld [vmem:[%s5 + $0x8] sm:$0xf]
    %v1577 = vld [vmem:[%s5 + $0xc] sm:$0xf]
    %v1578 = vlaneseq
    %v1579 = vshrl.u32 %v1578, 7
    %v1580 = vsub.s32 5, %v1579
    %v1581 = vrot.slane %v187, %v1580
    %v1586 = vunpack.c.l.b16 %v1574
    %v1587 = vunpack.c.l.b16 %v1575
    %v1588 = vunpack.c.l.b16 %v1576
    %v1589 = vunpack.c.l.b16 %v1577
    %v1590 = vpack.c.b16 %v1587, %v1586
    %v1591 = vpack.c.b16 %v1589, %v1588
    %vm1592 = vcmask 523264
    %v1594 = vsel %vm1592, %v1571, 0
    %v1597 = vsel %vm1592, %v1572, 0
    %v1600 = vsel %vm1592, %v1573, 0
    %v1603 = vsel %vm1592, %v1590, 0
    %v1606 = vsel %vm1592, %v1591, 0
    %1608 = vmatprep.subr.bf16.mxu0 0
    %1609 = vmatpush1.bf16.xpose.msra.mxu0 0
    %1610 = vmatprep.subr.bf16.mxu0 0
    %1611 = vmatpush1.bf16.xpose.msra.mxu0 0
    %1612 = vmatprep.subr.bf16.mxu0 0
    %1613 = vmatpush1.bf16.xpose.msra.mxu0 0
    %1614 = vmatprep.subr.bf16.mxu0 0
    %1615 = vmatpush1.bf16.xpose.msra.mxu0 0
    %1616 = vmatprep.subr.bf16.mxu0 0
    %1617 = vmatpush1.bf16.xpose.msra.mxu0 0
    %1618 = vmatprep.subr.bf16.mxu0 0
    %1619 = vmatpush1.bf16.xpose.msra.mxu0 0
    %1620 = vmatprep.subr.bf16.mxu0 0
    %1621 = vmatpush1.bf16.xpose.msra.mxu0 %v1606
    %1622 = vmatprep.subr.bf16.mxu0 0
    %1623 = vmatpush1.bf16.xpose.msra.mxu0 %v1603
    %1624 = vmatprep.subr.bf16.mxu0 0
    %1625 = vmatpush2.bf16.xpose.msra.mxu0 0
    %1626 = vmatprep.subr.bf16.mxu0 0
    %1627 = vmatpush2.bf16.xpose.msra.mxu0 0
    %1628 = vmatprep.subr.bf16.mxu0 0
    %1629 = vmatpush2.bf16.xpose.msra.mxu0 0
    %1630 = vmatprep.subr.bf16.mxu0 0
    %1631 = vmatpush2.bf16.xpose.msra.mxu0 0
    %1632 = vmatprep.subr.bf16.mxu0 0
    %1633 = vmatpush2.bf16.xpose.msra.mxu0 0
    %1634 = vmatprep.subr.bf16.mxu0 0
    %1635 = vmatpush2.bf16.xpose.msra.mxu0 0
    %1636 = vmatprep.subr.bf16.mxu0 0
    %1637 = vmatpush2.bf16.xpose.msra.mxu0 0
    %1638 = vmatprep.subr.bf16.mxu0 0
    %1639 = vmatpush2.bf16.xpose.msra.mxu0 0
    %1640 = vmatprep.mubr.bf16.mxu0 0
    %1641 = vmatmul.mubr.bf16.gmra.mxu0 %v1594
    %v1642 = vpop.f32.mrf.mxu0
    %v1643 = vadd.f32 %v1581, %v1642
    %v1644 = vpop.f32.mrf.mxu0
    %v1645 = vpop.f32.mrf.mxu0
    %v1646 = vadd.f32 %v1581, %v1645
    %v1647 = vpop.f32.mrf.mxu0
    %1648 = vmatprep.mubr.bf16.mxu0 0
    %1649 = vmatmul.mubr.bf16.gmra.mxu0 %v1597
    %v1650 = vpop.f32.mrf.mxu0
    %v1651 = vadd.f32 %v1581, %v1650
    %v1652 = vpop.f32.mrf.mxu0
    %v1653 = vpop.f32.mrf.mxu0
    %v1654 = vadd.f32 %v1581, %v1653
    %v1655 = vpop.f32.mrf.mxu0
    %1656 = vmatprep.mubr.bf16.mxu0 0
    %1657 = vmatmul.mubr.bf16.gmra.mxu0 %v1600
    %v1658 = vpop.f32.mrf.mxu0
    %v1659 = vadd.f32 %v1581, %v1658
    %v1660 = vpop.f32.mrf.mxu0
    %v1661 = vpop.f32.mrf.mxu0
    %v1662 = vadd.f32 %v1581, %v1661
    %v1663 = vpop.f32.mrf.mxu0
    %1664 = vdwg.mxu0
    %v1665 = vadd.f32 %v1468, %v1643
    %v1666 = vadd.f32 %v1469, %v1646
    %v1667 = vadd.f32 %v1470, %v1651
    %v1668 = vadd.f32 %v1471, %v1654
    %v1669 = vadd.f32 %v1472, %v1659
    %v1670 = vadd.f32 %v1473, %v1662
    %v1671 = vsel %vm208, %v1665, 0.0
    %1672 = vadd.xlane.f32.xlu0 %v1671
    %v1673 = vpop.xlane.xlu0 %1672
    %v1674 = vsel %vm208, %v1666, 0.0
    %1675 = vadd.xlane.f32.xlu0 %v1674
    %v1676 = vpop.xlane.xlu0 %1675
    %v1677 = vsel %vm208, %v1667, 0.0
    %1678 = vadd.xlane.f32.xlu0 %v1677
    %v1679 = vpop.xlane.xlu0 %1678
    %v1680 = vsel %vm208, %v1668, 0.0
    %1681 = vadd.xlane.f32.xlu0 %v1680
    %v1682 = vpop.xlane.xlu0 %1681
    %v1683 = vsel %vm208, %v1669, 0.0
    %1684 = vadd.xlane.f32.xlu0 %v1683
    %v1685 = vpop.xlane.xlu0 %1684
    %v1686 = vsel %vm208, %v1670, 0.0
    %1687 = vadd.xlane.f32.xlu0 %v1686
    %v1688 = vpop.xlane.xlu0 %1687
    %v1689 = vmul.f32 %v1673, %v1393
    %v1690 = vmul.f32 %v1676, %v1393
    %v1691 = vmul.f32 %v1679, %v1393
    %v1692 = vmul.f32 %v1682, %v1393
    %v1693 = vmul.f32 %v1685, %v1393
    %v1694 = vmul.f32 %v1688, %v1393
    %v1695 = vsub.f32 %v1665, %v1689
    %v1696 = vsub.f32 %v1666, %v1690
    %v1697 = vsub.f32 %v1667, %v1691
    %v1698 = vsub.f32 %v1668, %v1692
    %v1699 = vsub.f32 %v1669, %v1693
    %v1700 = vsub.f32 %v1670, %v1694
    %v1701 = vmul.f32 %v1695, %v1695
    %v1702 = vmul.f32 %v1696, %v1696
    %v1703 = vmul.f32 %v1697, %v1697
    %v1704 = vmul.f32 %v1698, %v1698
    %v1705 = vmul.f32 %v1699, %v1699
    %v1706 = vmul.f32 %v1700, %v1700
    %v1707 = vsel %vm208, %v1701, 0.0
    %1708 = vadd.xlane.f32.xlu0 %v1707
    %v1709 = vpop.xlane.xlu0 %1708
    %v1710 = vsel %vm208, %v1702, 0.0
    %1711 = vadd.xlane.f32.xlu0 %v1710
    %v1712 = vpop.xlane.xlu0 %1711
    %v1713 = vsel %vm208, %v1703, 0.0
    %1714 = vadd.xlane.f32.xlu0 %v1713
    %v1715 = vpop.xlane.xlu0 %1714
    %v1716 = vsel %vm208, %v1704, 0.0
    %1717 = vadd.xlane.f32.xlu0 %v1716
    %v1718 = vpop.xlane.xlu0 %1717
    %v1719 = vsel %vm208, %v1705, 0.0
    %1720 = vadd.xlane.f32.xlu0 %v1719
    %v1721 = vpop.xlane.xlu0 %1720
    %v1722 = vsel %vm208, %v1706, 0.0
    %1723 = vadd.xlane.f32.xlu0 %v1722
    %v1724 = vpop.xlane.xlu0 %1723
    %v1725 = vmul.f32 %v1709, %v1393
    %v1726 = vmul.f32 %v1712, %v1393
    %v1727 = vmul.f32 %v1715, %v1393
    %v1728 = vmul.f32 %v1718, %v1393
    %v1729 = vmul.f32 %v1721, %v1393
    %v1730 = vmul.f32 %v1724, %v1393
    %v1731 = vadd.f32 %v1725, 1e-05
    %v1732 = vadd.f32 %v1726, 1e-05
    %v1733 = vadd.f32 %v1727, 1e-05
    %v1734 = vadd.f32 %v1728, 1e-05
    %v1735 = vadd.f32 %v1729, 1e-05
    %v1736 = vadd.f32 %v1730, 1e-05
    %v1737 = vrsqrt.pop %v1731
    %v1738 = vrsqrt.pop %v1732
    %v1739 = vrsqrt.pop %v1733
    %v1740 = vrsqrt.pop %v1734
    %v1741 = vrsqrt.pop %v1735
    %v1742 = vrsqrt.pop %v1736
    %v1743 = vmul.f32 %v1695, %v1737
    %v1744 = vmul.f32 %v1696, %v1738
    %v1745 = vmul.f32 %v1697, %v1739
    %v1746 = vmul.f32 %v1698, %v1740
    %v1747 = vmul.f32 %v1699, %v1741
    %v1748 = vmul.f32 %v1700, %v1742
    %v1749 = vlaneseq
    %v1750 = vshrl.u32 %v1749, 7
    %v1751 = vsub.s32 3, %v1750
    %v1752 = vrot.slane %v187, %v1751
    %v1753 = vmul.f32 %v1743, %v1752
    %v1754 = vmul.f32 %v1744, %v1752
    %v1755 = vmul.f32 %v1745, %v1752
    %v1756 = vmul.f32 %v1746, %v1752
    %v1757 = vmul.f32 %v1747, %v1752
    %v1758 = vmul.f32 %v1748, %v1752
    %v1759 = vlaneseq
    %v1760 = vshrl.u32 %v1759, 7
    %v1761 = vsub.s32 4, %v1760
    %v1762 = vrot.slane %v187, %v1761
    %v1763 = vadd.f32 %v1753, %v1762
    %v1764 = vadd.f32 %v1754, %v1762
    %v1765 = vadd.f32 %v1755, %v1762
    %v1766 = vadd.f32 %v1756, %v1762
    %v1767 = vadd.f32 %v1757, %v1762
    %v1768 = vadd.f32 %v1758, %v1762
    %s1769 = scalar_lea.vmem %s2, 20
    %v1770 = vld [vmem:[%s1769] sm:$0xf]
    %v1771 = vld [vmem:[%s1769 + $0x4] sm:$0xf]
    %v1772 = vld [vmem:[%s1769 + $0x8] sm:$0xf]
    %v1773 = vld [vmem:[%s1769 + $0xc] sm:$0xf]
    %v1774 = vld [vmem:[%s1769 + $0x10] sm:$0x1]
    %s1775 = scalar_lea.vmem %s6, 8
    %v1776 = vld [vmem:[%s1775] sm:$0x3f]
    %v1777 = vpack.c.bf16 %v1764, %v1763
    %v1778 = vpack.c.bf16 %v1766, %v1765
    %v1779 = vpack.c.bf16 %v1768, %v1767
    %v1780 = vunpack.c.l.bf16 %v1774
    %v1781 = vlaneseq
    %v1782 = vshrl.u32 %v1781, 7
    %v1783 = vsub.s32 0, %v1782
    %v1784 = vrot.slane %v1780, %v1783
    %v1789 = vunpack.c.l.b16 %v1770
    %v1790 = vunpack.c.l.b16 %v1771
    %v1791 = vunpack.c.l.b16 %v1772
    %v1792 = vunpack.c.l.b16 %v1773
    %v1793 = vpack.c.b16 %v1790, %v1789
    %v1794 = vpack.c.b16 %v1792, %v1791
    %v1798 = vsel %vm208, %v1777, 0
    %v1801 = vsel %vm208, %v1778, 0
    %v1804 = vsel %vm208, %v1779, 0
    %1806 = vmatprep.subr.bf16.mxu0 0
    %1807 = vmatpush1.bf16.msra.mxu0 0
    %1808 = vmatprep.subr.bf16.mxu0 0
    %1809 = vmatpush1.bf16.msra.mxu0 0
    %1810 = vmatprep.subr.bf16.mxu0 0
    %1811 = vmatpush1.bf16.msra.mxu0 0
    %1812 = vmatprep.subr.bf16.mxu0 0
    %1813 = vmatpush1.bf16.msra.mxu0 0
    %1814 = vmatprep.subr.bf16.mxu0 0
    %1815 = vmatpush1.bf16.msra.mxu0 0
    %1816 = vmatprep.subr.bf16.mxu0 0
    %1817 = vmatpush1.bf16.msra.mxu0 0
    %1818 = vmatprep.subr.bf16.mxu0 0
    %1819 = vmatpush1.bf16.msra.mxu0 %v1794
    %1820 = vmatprep.subr.bf16.mxu0 0
    %1821 = vmatpush1.bf16.msra.mxu0 %v1793
    %1822 = vmatprep.subr.bf16.mxu0 0
    %1823 = vmatpush2.bf16.msra.mxu0 0
    %1824 = vmatprep.subr.bf16.mxu0 0
    %1825 = vmatpush2.bf16.msra.mxu0 0
    %1826 = vmatprep.subr.bf16.mxu0 0
    %1827 = vmatpush2.bf16.msra.mxu0 0
    %1828 = vmatprep.subr.bf16.mxu0 0
    %1829 = vmatpush2.bf16.msra.mxu0 0
    %1830 = vmatprep.subr.bf16.mxu0 0
    %1831 = vmatpush2.bf16.msra.mxu0 0
    %1832 = vmatprep.subr.bf16.mxu0 0
    %1833 = vmatpush2.bf16.msra.mxu0 0
    %1834 = vmatprep.subr.bf16.mxu0 0
    %1835 = vmatpush2.bf16.msra.mxu0 0
    %1836 = vmatprep.subr.bf16.mxu0 0
    %1837 = vmatpush2.bf16.msra.mxu0 0
    %1838 = vmatprep.mubr.bf16.mxu0 0
    %1839 = vmatmul.mubr.bf16.gmra.mxu0 %v1798
    %v1840 = vpop.f32.mrf.mxu0
    %v1841 = vadd.f32 %v1784, %v1840
    %v1842 = vpop.f32.mrf.mxu0
    %v1843 = vpop.f32.mrf.mxu0
    %v1844 = vadd.f32 %v1784, %v1843
    %v1845 = vpop.f32.mrf.mxu0
    %1846 = vmatprep.mubr.bf16.mxu0 0
    %1847 = vmatmul.mubr.bf16.gmra.mxu0 %v1801
    %v1848 = vpop.f32.mrf.mxu0
    %v1849 = vadd.f32 %v1784, %v1848
    %v1850 = vpop.f32.mrf.mxu0
    %v1851 = vpop.f32.mrf.mxu0
    %v1852 = vadd.f32 %v1784, %v1851
    %v1853 = vpop.f32.mrf.mxu0
    %1854 = vmatprep.mubr.bf16.mxu0 0
    %1855 = vmatmul.mubr.bf16.gmra.mxu0 %v1804
    %v1856 = vpop.f32.mrf.mxu0
    %v1857 = vadd.f32 %v1784, %v1856
    %v1858 = vpop.f32.mrf.mxu0
    %v1859 = vpop.f32.mrf.mxu0
    %v1860 = vadd.f32 %v1784, %v1859
    %v1861 = vpop.f32.mrf.mxu0
    %1862 = vdwg.mxu0
    %v1863 = vpack.c.bf16 %v1844, %v1841
    %v1864 = vpack.c.bf16 %v1852, %v1849
    %v1865 = vpack.c.bf16 %v1860, %v1857
    %1872 = vrot.lane.b32.xlu0 %v1841, 96
    %v1873 = vpop.permute.xlu0 %1872
    %1874 = vrot.lane.b32.xlu0 %v1844, 96
    %v1875 = vpop.permute.xlu0 %1874
    %1876 = vrot.lane.b32.xlu0 %v1849, 96
    %v1877 = vpop.permute.xlu0 %1876
    %1878 = vrot.lane.b32.xlu0 %v1852, 96
    %v1879 = vpop.permute.xlu0 %1878
    %1880 = vrot.lane.b32.xlu0 %v1857, 96
    %v1881 = vpop.permute.xlu0 %1880
    %1882 = vrot.lane.b32.xlu0 %v1860, 96
    %v1883 = vpop.permute.xlu0 %1882
    %v1890 = vsel %vm279, %v1873, 0.0
    %v1891 = vsel %vm279, %v1875, 0.0
    %v1892 = vsel %vm279, %v1877, 0.0
    %v1893 = vsel %vm279, %v1879, 0.0
    %v1894 = vsel %vm279, %v1881, 0.0
    %v1895 = vsel %vm279, %v1883, 0.0
    %v1896 = vpack.c.bf16 %v1891, %v1890
    %v1897 = vpack.c.bf16 %v1893, %v1892
    %v1898 = vpack.c.bf16 %v1895, %v1894
    %v1900 = vsel %vm208, %v1863, 0
    %v1903 = vsel %vm208, %v1864, 0
    %v1906 = vsel %vm208, %v1865, 0
    %v1909 = vsel %vm208, %v1896, 0
    %v1912 = vsel %vm208, %v1897, 0
    %v1915 = vsel %vm208, %v1898, 0
    %1917 = vmatprep.subr.bf16.mxu0 0
    %1918 = vmatpush1.bf16.xpose.msra.mxu0 0
    %1919 = vmatprep.subr.bf16.mxu0 0
    %1920 = vmatpush1.bf16.xpose.msra.mxu0 0
    %1921 = vmatprep.subr.bf16.mxu0 0
    %1922 = vmatpush1.bf16.xpose.msra.mxu0 0
    %1923 = vmatprep.subr.bf16.mxu0 0
    %1924 = vmatpush1.bf16.xpose.msra.mxu0 0
    %1925 = vmatprep.subr.bf16.mxu0 0
    %1926 = vmatpush1.bf16.xpose.msra.mxu0 0
    %1927 = vmatprep.subr.bf16.mxu0 0
    %1928 = vmatpush1.bf16.xpose.msra.mxu0 %v1915
    %1929 = vmatprep.subr.bf16.mxu0 0
    %1930 = vmatpush1.bf16.xpose.msra.mxu0 %v1912
    %1931 = vmatprep.subr.bf16.mxu0 0
    %1932 = vmatpush1.bf16.xpose.msra.mxu0 %v1909
    %1933 = vmatprep.subr.bf16.mxu0 0
    %1934 = vmatpush2.bf16.xpose.msra.mxu0 0
    %1935 = vmatprep.subr.bf16.mxu0 0
    %1936 = vmatpush2.bf16.xpose.msra.mxu0 0
    %1937 = vmatprep.subr.bf16.mxu0 0
    %1938 = vmatpush2.bf16.xpose.msra.mxu0 0
    %1939 = vmatprep.subr.bf16.mxu0 0
    %1940 = vmatpush2.bf16.xpose.msra.mxu0 0
    %1941 = vmatprep.subr.bf16.mxu0 0
    %1942 = vmatpush2.bf16.xpose.msra.mxu0 0
    %1943 = vmatprep.subr.bf16.mxu0 0
    %1944 = vmatpush2.bf16.xpose.msra.mxu0 0
    %1945 = vmatprep.subr.bf16.mxu0 0
    %1946 = vmatpush2.bf16.xpose.msra.mxu0 0
    %1947 = vmatprep.subr.bf16.mxu0 0
    %1948 = vmatpush2.bf16.xpose.msra.mxu0 0
    %1949 = vmatprep.mubr.bf16.mxu0 0
    %1950 = vmatmul.mubr.bf16.gmra.mxu0 %v1900
    %v1951 = vpop.f32.mrf.mxu0
    %v1952 = vadd.f32 0.0, %v1951
    %v1953 = vpop.f32.mrf.mxu0
    %v1954 = vpop.f32.mrf.mxu0
    %v1955 = vadd.f32 0.0, %v1954
    %v1956 = vpop.f32.mrf.mxu0
    %1957 = vmatprep.mubr.bf16.mxu0 0
    %1958 = vmatmul.mubr.bf16.gmra.mxu0 %v1903
    %v1959 = vpop.f32.mrf.mxu0
    %v1960 = vadd.f32 0.0, %v1959
    %v1961 = vpop.f32.mrf.mxu0
    %v1962 = vpop.f32.mrf.mxu0
    %v1963 = vadd.f32 0.0, %v1962
    %v1964 = vpop.f32.mrf.mxu0
    %1965 = vmatprep.mubr.bf16.mxu0 0
    %1966 = vmatmul.mubr.bf16.gmra.mxu0 %v1906
    %v1967 = vpop.f32.mrf.mxu0
    %v1968 = vadd.f32 0.0, %v1967
    %v1969 = vpop.f32.mrf.mxu0
    %v1970 = vpop.f32.mrf.mxu0
    %v1971 = vadd.f32 0.0, %v1970
    %v1972 = vpop.f32.mrf.mxu0
    %1973 = vdwg.mxu0
    %v1974 = vmul.f32 %v1952, 0.35355338
    %v1975 = vmul.f32 %v1955, 0.35355338
    %v1976 = vmul.f32 %v1960, 0.35355338
    %v1977 = vmul.f32 %v1963, 0.35355338
    %v1978 = vmul.f32 %v1968, 0.35355338
    %v1979 = vmul.f32 %v1971, 0.35355338
    %v1980 = vadd.f32 %v1974, %v79
    %v1981 = vadd.f32 %v1975, %v80
    %v1982 = vadd.f32 %v1976, %v81
    %v1983 = vadd.f32 %v1977, %v82
    %v1984 = vadd.f32 %v1978, %v83
    %v1985 = vadd.f32 %v1979, %v84
    %v1986 = vsel %vm400, %v1980, -inf
    %1987 = vmax.xlane.f32.xlu0 %v1986
    %v1988 = vpop.xlane.xlu0 %1987
    %v1989 = vsel %vm400, %v1981, -inf
    %1990 = vmax.xlane.f32.xlu0 %v1989
    %v1991 = vpop.xlane.xlu0 %1990
    %v1992 = vsel %vm400, %v1982, -inf
    %1993 = vmax.xlane.f32.xlu0 %v1992
    %v1994 = vpop.xlane.xlu0 %1993
    %v1995 = vsel %vm400, %v1983, -inf
    %1996 = vmax.xlane.f32.xlu0 %v1995
    %v1997 = vpop.xlane.xlu0 %1996
    %v1998 = vsel %vm400, %v1984, -inf
    %1999 = vmax.xlane.f32.xlu0 %v1998
    %v2000 = vpop.xlane.xlu0 %1999
    %v2001 = vsel %vm400, %v1985, -inf
    %2002 = vmax.xlane.f32.xlu0 %v2001
    %v2003 = vpop.xlane.xlu0 %2002
    %v2004 = vsub.f32 %v1980, %v1988
    %v2005 = vsub.f32 %v1981, %v1991
    %v2006 = vsub.f32 %v1982, %v1994
    %v2007 = vsub.f32 %v1983, %v1997
    %v2008 = vsub.f32 %v1984, %v2000
    %v2009 = vsub.f32 %v1985, %v2003
    %v2010 = vmul.f32 %v2004, 1.442695
    %v2011 = vpow.pop %v2010
    %v2012 = vmul.f32 %v2005, 1.442695
    %v2013 = vpow.pop %v2012
    %v2014 = vmul.f32 %v2006, 1.442695
    %v2015 = vpow.pop %v2014
    %v2016 = vmul.f32 %v2007, 1.442695
    %v2017 = vpow.pop %v2016
    %v2018 = vmul.f32 %v2008, 1.442695
    %v2019 = vpow.pop %v2018
    %v2020 = vmul.f32 %v2009, 1.442695
    %v2021 = vpow.pop %v2020
    %v2022 = vsel %vm400, %v2011, 0.0
    %2023 = vadd.xlane.f32.xlu0 %v2022
    %v2024 = vpop.xlane.xlu0 %2023
    %v2025 = vsel %vm400, %v2013, 0.0
    %2026 = vadd.xlane.f32.xlu0 %v2025
    %v2027 = vpop.xlane.xlu0 %2026
    %v2028 = vsel %vm400, %v2015, 0.0
    %2029 = vadd.xlane.f32.xlu0 %v2028
    %v2030 = vpop.xlane.xlu0 %2029
    %v2031 = vsel %vm400, %v2017, 0.0
    %2032 = vadd.xlane.f32.xlu0 %v2031
    %v2033 = vpop.xlane.xlu0 %2032
    %v2034 = vsel %vm400, %v2019, 0.0
    %2035 = vadd.xlane.f32.xlu0 %v2034
    %v2036 = vpop.xlane.xlu0 %2035
    %v2037 = vsel %vm400, %v2021, 0.0
    %2038 = vadd.xlane.f32.xlu0 %v2037
    %v2039 = vpop.xlane.xlu0 %2038
    %v2040 = vrcp.pop %v2024
    %v2041 = vrcp.pop %v2027
    %v2042 = vrcp.pop %v2030
    %v2043 = vrcp.pop %v2033
    %v2044 = vrcp.pop %v2036
    %v2045 = vrcp.pop %v2039
    %v2046 = vmul.f32 %v2011, %v2040
    %v2047 = vmul.f32 %v2013, %v2041
    %v2048 = vmul.f32 %v2015, %v2042
    %v2049 = vmul.f32 %v2017, %v2043
    %v2050 = vmul.f32 %v2019, %v2044
    %v2051 = vmul.f32 %v2021, %v2045
    %2052 = vrot.lane.b32.xlu0 %v1841, 64
    %v2053 = vpop.permute.xlu0 %2052
    %2054 = vrot.lane.b32.xlu0 %v1844, 64
    %v2055 = vpop.permute.xlu0 %2054
    %2056 = vrot.lane.b32.xlu0 %v1849, 64
    %v2057 = vpop.permute.xlu0 %2056
    %2058 = vrot.lane.b32.xlu0 %v1852, 64
    %v2059 = vpop.permute.xlu0 %2058
    %2060 = vrot.lane.b32.xlu0 %v1857, 64
    %v2061 = vpop.permute.xlu0 %2060
    %2062 = vrot.lane.b32.xlu0 %v1860, 64
    %v2063 = vpop.permute.xlu0 %2062
    %v2070 = vsel %vm279, %v2053, 0.0
    %v2071 = vsel %vm279, %v2055, 0.0
    %v2072 = vsel %vm279, %v2057, 0.0
    %v2073 = vsel %vm279, %v2059, 0.0
    %v2074 = vsel %vm279, %v2061, 0.0
    %v2075 = vsel %vm279, %v2063, 0.0
    %v2076 = vpack.c.bf16 %v2071, %v2070
    %v2077 = vpack.c.bf16 %v2073, %v2072
    %v2078 = vpack.c.bf16 %v2075, %v2074
    %v2079 = vpack.c.bf16 %v2047, %v2046
    %v2080 = vpack.c.bf16 %v2049, %v2048
    %v2081 = vpack.c.bf16 %v2051, %v2050
    %v2082 = vsel %vm498, %v1873, 0.0
    %v2083 = vsel %vm498, %v1875, 0.0
    %v2084 = vsel %vm498, %v1877, 0.0
    %v2085 = vsel %vm498, %v1879, 0.0
    %v2086 = vsel %vm498, %v1881, 0.0
    %v2087 = vsel %vm498, %v1883, 0.0
    %v2088 = vpack.c.bf16 %v2083, %v2082
    %v2089 = vpack.c.bf16 %v2085, %v2084
    %v2090 = vpack.c.bf16 %v2087, %v2086
    %v2092 = vsel %vm208, %v2088, 0
    %v2095 = vsel %vm208, %v2089, 0
    %v2098 = vsel %vm208, %v2090, 0
    %2100 = vmatprep.subr.bf16.mxu0 0
    %2101 = vmatpush1.bf16.xpose.msra.mxu0 0
    %2102 = vmatprep.subr.bf16.mxu0 0
    %2103 = vmatpush1.bf16.xpose.msra.mxu0 0
    %2104 = vmatprep.subr.bf16.mxu0 0
    %2105 = vmatpush1.bf16.xpose.msra.mxu0 0
    %2106 = vmatprep.subr.bf16.mxu0 0
    %2107 = vmatpush1.bf16.xpose.msra.mxu0 0
    %2108 = vmatprep.subr.bf16.mxu0 0
    %2109 = vmatpush1.bf16.xpose.msra.mxu0 0
    %2110 = vmatprep.subr.bf16.mxu0 0
    %2111 = vmatpush1.bf16.xpose.msra.mxu0 %v2098
    %2112 = vmatprep.subr.bf16.mxu0 0
    %2113 = vmatpush1.bf16.xpose.msra.mxu0 %v2095
    %2114 = vmatprep.subr.bf16.mxu0 0
    %2115 = vmatpush1.bf16.xpose.msra.mxu0 %v2092
    %2116 = vmatprep.subr.bf16.mxu0 0
    %2117 = vmatpush2.bf16.xpose.msra.mxu0 0
    %2118 = vmatprep.subr.bf16.mxu0 0
    %2119 = vmatpush2.bf16.xpose.msra.mxu0 0
    %2120 = vmatprep.subr.bf16.mxu0 0
    %2121 = vmatpush2.bf16.xpose.msra.mxu0 0
    %2122 = vmatprep.subr.bf16.mxu0 0
    %2123 = vmatpush2.bf16.xpose.msra.mxu0 0
    %2124 = vmatprep.subr.bf16.mxu0 0
    %2125 = vmatpush2.bf16.xpose.msra.mxu0 0
    %2126 = vmatprep.subr.bf16.mxu0 0
    %2127 = vmatpush2.bf16.xpose.msra.mxu0 0
    %2128 = vmatprep.subr.bf16.mxu0 0
    %2129 = vmatpush2.bf16.xpose.msra.mxu0 0
    %2130 = vmatprep.subr.bf16.mxu0 0
    %2131 = vmatpush2.bf16.xpose.msra.mxu0 0
    %2132 = vmatprep.mubr.bf16.mxu0 0
    %2133 = vmatmul.mubr.bf16.gmra.mxu0 %v1900
    %v2134 = vpop.f32.mrf.mxu0
    %v2135 = vadd.f32 0.0, %v2134
    %v2136 = vpop.f32.mrf.mxu0
    %v2137 = vpop.f32.mrf.mxu0
    %v2138 = vadd.f32 0.0, %v2137
    %v2139 = vpop.f32.mrf.mxu0
    %2140 = vmatprep.mubr.bf16.mxu0 0
    %2141 = vmatmul.mubr.bf16.gmra.mxu0 %v1903
    %v2142 = vpop.f32.mrf.mxu0
    %v2143 = vadd.f32 0.0, %v2142
    %v2144 = vpop.f32.mrf.mxu0
    %v2145 = vpop.f32.mrf.mxu0
    %v2146 = vadd.f32 0.0, %v2145
    %v2147 = vpop.f32.mrf.mxu0
    %2148 = vmatprep.mubr.bf16.mxu0 0
    %2149 = vmatmul.mubr.bf16.gmra.mxu0 %v1906
    %v2150 = vpop.f32.mrf.mxu0
    %v2151 = vadd.f32 0.0, %v2150
    %v2152 = vpop.f32.mrf.mxu0
    %v2153 = vpop.f32.mrf.mxu0
    %v2154 = vadd.f32 0.0, %v2153
    %v2155 = vpop.f32.mrf.mxu0
    %2156 = vdwg.mxu0
    %v2157 = vmul.f32 %v2135, 0.35355338
    %v2158 = vmul.f32 %v2138, 0.35355338
    %v2159 = vmul.f32 %v2143, 0.35355338
    %v2160 = vmul.f32 %v2146, 0.35355338
    %v2161 = vmul.f32 %v2151, 0.35355338
    %v2162 = vmul.f32 %v2154, 0.35355338
    %v2163 = vadd.f32 %v2157, %v79
    %v2164 = vadd.f32 %v2158, %v80
    %v2165 = vadd.f32 %v2159, %v81
    %v2166 = vadd.f32 %v2160, %v82
    %v2167 = vadd.f32 %v2161, %v83
    %v2168 = vadd.f32 %v2162, %v84
    %v2169 = vsel %vm400, %v2163, -inf
    %2170 = vmax.xlane.f32.xlu0 %v2169
    %v2171 = vpop.xlane.xlu0 %2170
    %v2172 = vsel %vm400, %v2164, -inf
    %2173 = vmax.xlane.f32.xlu0 %v2172
    %v2174 = vpop.xlane.xlu0 %2173
    %v2175 = vsel %vm400, %v2165, -inf
    %2176 = vmax.xlane.f32.xlu0 %v2175
    %v2177 = vpop.xlane.xlu0 %2176
    %v2178 = vsel %vm400, %v2166, -inf
    %2179 = vmax.xlane.f32.xlu0 %v2178
    %v2180 = vpop.xlane.xlu0 %2179
    %v2181 = vsel %vm400, %v2167, -inf
    %2182 = vmax.xlane.f32.xlu0 %v2181
    %v2183 = vpop.xlane.xlu0 %2182
    %v2184 = vsel %vm400, %v2168, -inf
    %2185 = vmax.xlane.f32.xlu0 %v2184
    %v2186 = vpop.xlane.xlu0 %2185
    %v2187 = vsub.f32 %v2163, %v2171
    %v2188 = vsub.f32 %v2164, %v2174
    %v2189 = vsub.f32 %v2165, %v2177
    %v2190 = vsub.f32 %v2166, %v2180
    %v2191 = vsub.f32 %v2167, %v2183
    %v2192 = vsub.f32 %v2168, %v2186
    %v2193 = vmul.f32 %v2187, 1.442695
    %v2194 = vpow.pop %v2193
    %v2195 = vmul.f32 %v2188, 1.442695
    %v2196 = vpow.pop %v2195
    %v2197 = vmul.f32 %v2189, 1.442695
    %v2198 = vpow.pop %v2197
    %v2199 = vmul.f32 %v2190, 1.442695
    %v2200 = vpow.pop %v2199
    %v2201 = vmul.f32 %v2191, 1.442695
    %v2202 = vpow.pop %v2201
    %v2203 = vmul.f32 %v2192, 1.442695
    %v2204 = vpow.pop %v2203
    %v2205 = vsel %vm400, %v2194, 0.0
    %2206 = vadd.xlane.f32.xlu0 %v2205
    %v2207 = vpop.xlane.xlu0 %2206
    %v2208 = vsel %vm400, %v2196, 0.0
    %2209 = vadd.xlane.f32.xlu0 %v2208
    %v2210 = vpop.xlane.xlu0 %2209
    %v2211 = vsel %vm400, %v2198, 0.0
    %2212 = vadd.xlane.f32.xlu0 %v2211
    %v2213 = vpop.xlane.xlu0 %2212
    %v2214 = vsel %vm400, %v2200, 0.0
    %2215 = vadd.xlane.f32.xlu0 %v2214
    %v2216 = vpop.xlane.xlu0 %2215
    %v2217 = vsel %vm400, %v2202, 0.0
    %2218 = vadd.xlane.f32.xlu0 %v2217
    %v2219 = vpop.xlane.xlu0 %2218
    %v2220 = vsel %vm400, %v2204, 0.0
    %2221 = vadd.xlane.f32.xlu0 %v2220
    %v2222 = vpop.xlane.xlu0 %2221
    %v2223 = vrcp.pop %v2207
    %v2224 = vrcp.pop %v2210
    %v2225 = vrcp.pop %v2213
    %v2226 = vrcp.pop %v2216
    %v2227 = vrcp.pop %v2219
    %v2228 = vrcp.pop %v2222
    %v2229 = vmul.f32 %v2194, %v2223
    %v2230 = vmul.f32 %v2196, %v2224
    %v2231 = vmul.f32 %v2198, %v2225
    %v2232 = vmul.f32 %v2200, %v2226
    %v2233 = vmul.f32 %v2202, %v2227
    %v2234 = vmul.f32 %v2204, %v2228
    %v2235 = vsel %vm498, %v2053, 0.0
    %v2236 = vsel %vm498, %v2055, 0.0
    %v2237 = vsel %vm498, %v2057, 0.0
    %v2238 = vsel %vm498, %v2059, 0.0
    %v2239 = vsel %vm498, %v2061, 0.0
    %v2240 = vsel %vm498, %v2063, 0.0
    %v2241 = vpack.c.bf16 %v2236, %v2235
    %v2242 = vpack.c.bf16 %v2238, %v2237
    %v2243 = vpack.c.bf16 %v2240, %v2239
    %v2244 = vpack.c.bf16 %v2230, %v2229
    %v2245 = vpack.c.bf16 %v2232, %v2231
    %v2246 = vpack.c.bf16 %v2234, %v2233
    %v2248 = vsel %vm400, %v2244, 0
    %v2251 = vsel %vm400, %v2245, 0
    %v2254 = vsel %vm400, %v2246, 0
    %2256 = vmatprep.subr.bf16.mxu0 0
    %2257 = vmatpush1.bf16.msra.mxu0 0
    %2258 = vmatprep.subr.bf16.mxu0 0
    %2259 = vmatpush1.bf16.msra.mxu0 0
    %2260 = vmatprep.subr.bf16.mxu0 0
    %2261 = vmatpush1.bf16.msra.mxu0 0
    %2262 = vmatprep.subr.bf16.mxu0 0
    %2263 = vmatpush1.bf16.msra.mxu0 0
    %2264 = vmatprep.subr.bf16.mxu0 0
    %2265 = vmatpush1.bf16.msra.mxu0 0
    %2266 = vmatprep.subr.bf16.mxu0 0
    %2267 = vmatpush1.bf16.msra.mxu0 %v2243
    %2268 = vmatprep.subr.bf16.mxu0 0
    %2269 = vmatpush1.bf16.msra.mxu0 %v2242
    %2270 = vmatprep.subr.bf16.mxu0 0
    %2271 = vmatpush1.bf16.msra.mxu0 %v2241
    %2272 = vmatprep.subr.bf16.mxu0 0
    %2273 = vmatpush2.bf16.msra.mxu0 0
    %2274 = vmatprep.subr.bf16.mxu0 0
    %2275 = vmatpush2.bf16.msra.mxu0 0
    %2276 = vmatprep.subr.bf16.mxu0 0
    %2277 = vmatpush2.bf16.msra.mxu0 0
    %2278 = vmatprep.subr.bf16.mxu0 0
    %2279 = vmatpush2.bf16.msra.mxu0 0
    %2280 = vmatprep.subr.bf16.mxu0 0
    %2281 = vmatpush2.bf16.msra.mxu0 0
    %2282 = vmatprep.subr.bf16.mxu0 0
    %2283 = vmatpush2.bf16.msra.mxu0 0
    %2284 = vmatprep.subr.bf16.mxu0 0
    %2285 = vmatpush2.bf16.msra.mxu0 0
    %2286 = vmatprep.subr.bf16.mxu0 0
    %2287 = vmatpush2.bf16.msra.mxu0 0
    %2288 = vmatprep.mubr.bf16.mxu0 0
    %2289 = vmatmul.mubr.bf16.gmra.mxu0 %v2248
    %v2290 = vpop.f32.mrf.mxu0
    %v2291 = vadd.f32 0.0, %v2290
    %v2292 = vpop.f32.mrf.mxu0
    %v2293 = vpop.f32.mrf.mxu0
    %v2294 = vadd.f32 0.0, %v2293
    %v2295 = vpop.f32.mrf.mxu0
    %2296 = vmatprep.mubr.bf16.mxu0 0
    %2297 = vmatmul.mubr.bf16.gmra.mxu0 %v2251
    %v2298 = vpop.f32.mrf.mxu0
    %v2299 = vadd.f32 0.0, %v2298
    %v2300 = vpop.f32.mrf.mxu0
    %v2301 = vpop.f32.mrf.mxu0
    %v2302 = vadd.f32 0.0, %v2301
    %v2303 = vpop.f32.mrf.mxu0
    %2304 = vmatprep.mubr.bf16.mxu0 0
    %2305 = vmatmul.mubr.bf16.gmra.mxu0 %v2254
    %v2306 = vpop.f32.mrf.mxu0
    %v2307 = vadd.f32 0.0, %v2306
    %v2308 = vpop.f32.mrf.mxu0
    %v2309 = vpop.f32.mrf.mxu0
    %v2310 = vadd.f32 0.0, %v2309
    %v2311 = vpop.f32.mrf.mxu0
    %2312 = vdwg.mxu0
    %v2314 = vsel %vm400, %v2079, 0
    %v2317 = vsel %vm400, %v2080, 0
    %v2320 = vsel %vm400, %v2081, 0
    %2322 = vmatprep.subr.bf16.mxu0 0
    %2323 = vmatpush1.bf16.msra.mxu0 0
    %2324 = vmatprep.subr.bf16.mxu0 0
    %2325 = vmatpush1.bf16.msra.mxu0 0
    %2326 = vmatprep.subr.bf16.mxu0 0
    %2327 = vmatpush1.bf16.msra.mxu0 0
    %2328 = vmatprep.subr.bf16.mxu0 0
    %2329 = vmatpush1.bf16.msra.mxu0 0
    %2330 = vmatprep.subr.bf16.mxu0 0
    %2331 = vmatpush1.bf16.msra.mxu0 0
    %2332 = vmatprep.subr.bf16.mxu0 0
    %2333 = vmatpush1.bf16.msra.mxu0 %v2078
    %2334 = vmatprep.subr.bf16.mxu0 0
    %2335 = vmatpush1.bf16.msra.mxu0 %v2077
    %2336 = vmatprep.subr.bf16.mxu0 0
    %2337 = vmatpush1.bf16.msra.mxu0 %v2076
    %2338 = vmatprep.subr.bf16.mxu0 0
    %2339 = vmatpush2.bf16.msra.mxu0 0
    %2340 = vmatprep.subr.bf16.mxu0 0
    %2341 = vmatpush2.bf16.msra.mxu0 0
    %2342 = vmatprep.subr.bf16.mxu0 0
    %2343 = vmatpush2.bf16.msra.mxu0 0
    %2344 = vmatprep.subr.bf16.mxu0 0
    %2345 = vmatpush2.bf16.msra.mxu0 0
    %2346 = vmatprep.subr.bf16.mxu0 0
    %2347 = vmatpush2.bf16.msra.mxu0 0
    %2348 = vmatprep.subr.bf16.mxu0 0
    %2349 = vmatpush2.bf16.msra.mxu0 0
    %2350 = vmatprep.subr.bf16.mxu0 0
    %2351 = vmatpush2.bf16.msra.mxu0 0
    %2352 = vmatprep.subr.bf16.mxu0 0
    %2353 = vmatpush2.bf16.msra.mxu0 0
    %2354 = vmatprep.mubr.bf16.mxu0 0
    %2355 = vmatmul.mubr.bf16.gmra.mxu0 %v2314
    %v2356 = vpop.f32.mrf.mxu0
    %v2357 = vadd.f32 %v2291, %v2356
    %v2358 = vpop.f32.mrf.mxu0
    %v2359 = vpop.f32.mrf.mxu0
    %v2360 = vadd.f32 %v2294, %v2359
    %v2361 = vpop.f32.mrf.mxu0
    %2362 = vmatprep.mubr.bf16.mxu0 0
    %2363 = vmatmul.mubr.bf16.gmra.mxu0 %v2317
    %v2364 = vpop.f32.mrf.mxu0
    %v2365 = vadd.f32 %v2299, %v2364
    %v2366 = vpop.f32.mrf.mxu0
    %v2367 = vpop.f32.mrf.mxu0
    %v2368 = vadd.f32 %v2302, %v2367
    %v2369 = vpop.f32.mrf.mxu0
    %2370 = vmatprep.mubr.bf16.mxu0 0
    %2371 = vmatmul.mubr.bf16.gmra.mxu0 %v2320
    %v2372 = vpop.f32.mrf.mxu0
    %v2373 = vadd.f32 %v2307, %v2372
    %v2374 = vpop.f32.mrf.mxu0
    %v2375 = vpop.f32.mrf.mxu0
    %v2376 = vadd.f32 %v2310, %v2375
    %v2377 = vpop.f32.mrf.mxu0
    %2378 = vdwg.mxu0
    %v2379 = vsel %vm797, %v1873, 0.0
    %v2380 = vsel %vm797, %v1875, 0.0
    %v2381 = vsel %vm797, %v1877, 0.0
    %v2382 = vsel %vm797, %v1879, 0.0
    %v2383 = vsel %vm797, %v1881, 0.0
    %v2384 = vsel %vm797, %v1883, 0.0
    %v2385 = vpack.c.bf16 %v2380, %v2379
    %v2386 = vpack.c.bf16 %v2382, %v2381
    %v2387 = vpack.c.bf16 %v2384, %v2383
    %v2389 = vsel %vm208, %v2385, 0
    %v2392 = vsel %vm208, %v2386, 0
    %v2395 = vsel %vm208, %v2387, 0
    %2397 = vmatprep.subr.bf16.mxu0 0
    %2398 = vmatpush1.bf16.xpose.msra.mxu0 0
    %2399 = vmatprep.subr.bf16.mxu0 0
    %2400 = vmatpush1.bf16.xpose.msra.mxu0 0
    %2401 = vmatprep.subr.bf16.mxu0 0
    %2402 = vmatpush1.bf16.xpose.msra.mxu0 0
    %2403 = vmatprep.subr.bf16.mxu0 0
    %2404 = vmatpush1.bf16.xpose.msra.mxu0 0
    %2405 = vmatprep.subr.bf16.mxu0 0
    %2406 = vmatpush1.bf16.xpose.msra.mxu0 0
    %2407 = vmatprep.subr.bf16.mxu0 0
    %2408 = vmatpush1.bf16.xpose.msra.mxu0 %v2395
    %2409 = vmatprep.subr.bf16.mxu0 0
    %2410 = vmatpush1.bf16.xpose.msra.mxu0 %v2392
    %2411 = vmatprep.subr.bf16.mxu0 0
    %2412 = vmatpush1.bf16.xpose.msra.mxu0 %v2389
    %2413 = vmatprep.subr.bf16.mxu0 0
    %2414 = vmatpush2.bf16.xpose.msra.mxu0 0
    %2415 = vmatprep.subr.bf16.mxu0 0
    %2416 = vmatpush2.bf16.xpose.msra.mxu0 0
    %2417 = vmatprep.subr.bf16.mxu0 0
    %2418 = vmatpush2.bf16.xpose.msra.mxu0 0
    %2419 = vmatprep.subr.bf16.mxu0 0
    %2420 = vmatpush2.bf16.xpose.msra.mxu0 0
    %2421 = vmatprep.subr.bf16.mxu0 0
    %2422 = vmatpush2.bf16.xpose.msra.mxu0 0
    %2423 = vmatprep.subr.bf16.mxu0 0
    %2424 = vmatpush2.bf16.xpose.msra.mxu0 0
    %2425 = vmatprep.subr.bf16.mxu0 0
    %2426 = vmatpush2.bf16.xpose.msra.mxu0 0
    %2427 = vmatprep.subr.bf16.mxu0 0
    %2428 = vmatpush2.bf16.xpose.msra.mxu0 0
    %2429 = vmatprep.mubr.bf16.mxu0 0
    %2430 = vmatmul.mubr.bf16.gmra.mxu0 %v1900
    %v2431 = vpop.f32.mrf.mxu0
    %v2432 = vadd.f32 0.0, %v2431
    %v2433 = vpop.f32.mrf.mxu0
    %v2434 = vpop.f32.mrf.mxu0
    %v2435 = vadd.f32 0.0, %v2434
    %v2436 = vpop.f32.mrf.mxu0
    %2437 = vmatprep.mubr.bf16.mxu0 0
    %2438 = vmatmul.mubr.bf16.gmra.mxu0 %v1903
    %v2439 = vpop.f32.mrf.mxu0
    %v2440 = vadd.f32 0.0, %v2439
    %v2441 = vpop.f32.mrf.mxu0
    %v2442 = vpop.f32.mrf.mxu0
    %v2443 = vadd.f32 0.0, %v2442
    %v2444 = vpop.f32.mrf.mxu0
    %2445 = vmatprep.mubr.bf16.mxu0 0
    %2446 = vmatmul.mubr.bf16.gmra.mxu0 %v1906
    %v2447 = vpop.f32.mrf.mxu0
    %v2448 = vadd.f32 0.0, %v2447
    %v2449 = vpop.f32.mrf.mxu0
    %v2450 = vpop.f32.mrf.mxu0
    %v2451 = vadd.f32 0.0, %v2450
    %v2452 = vpop.f32.mrf.mxu0
    %2453 = vdwg.mxu0
    %v2454 = vmul.f32 %v2432, 0.35355338
    %v2455 = vmul.f32 %v2435, 0.35355338
    %v2456 = vmul.f32 %v2440, 0.35355338
    %v2457 = vmul.f32 %v2443, 0.35355338
    %v2458 = vmul.f32 %v2448, 0.35355338
    %v2459 = vmul.f32 %v2451, 0.35355338
    %v2460 = vadd.f32 %v2454, %v79
    %v2461 = vadd.f32 %v2455, %v80
    %v2462 = vadd.f32 %v2456, %v81
    %v2463 = vadd.f32 %v2457, %v82
    %v2464 = vadd.f32 %v2458, %v83
    %v2465 = vadd.f32 %v2459, %v84
    %v2466 = vsel %vm400, %v2460, -inf
    %2467 = vmax.xlane.f32.xlu0 %v2466
    %v2468 = vpop.xlane.xlu0 %2467
    %v2469 = vsel %vm400, %v2461, -inf
    %2470 = vmax.xlane.f32.xlu0 %v2469
    %v2471 = vpop.xlane.xlu0 %2470
    %v2472 = vsel %vm400, %v2462, -inf
    %2473 = vmax.xlane.f32.xlu0 %v2472
    %v2474 = vpop.xlane.xlu0 %2473
    %v2475 = vsel %vm400, %v2463, -inf
    %2476 = vmax.xlane.f32.xlu0 %v2475
    %v2477 = vpop.xlane.xlu0 %2476
    %v2478 = vsel %vm400, %v2464, -inf
    %2479 = vmax.xlane.f32.xlu0 %v2478
    %v2480 = vpop.xlane.xlu0 %2479
    %v2481 = vsel %vm400, %v2465, -inf
    %2482 = vmax.xlane.f32.xlu0 %v2481
    %v2483 = vpop.xlane.xlu0 %2482
    %v2484 = vsub.f32 %v2460, %v2468
    %v2485 = vsub.f32 %v2461, %v2471
    %v2486 = vsub.f32 %v2462, %v2474
    %v2487 = vsub.f32 %v2463, %v2477
    %v2488 = vsub.f32 %v2464, %v2480
    %v2489 = vsub.f32 %v2465, %v2483
    %v2490 = vmul.f32 %v2484, 1.442695
    %v2491 = vpow.pop %v2490
    %v2492 = vmul.f32 %v2485, 1.442695
    %v2493 = vpow.pop %v2492
    %v2494 = vmul.f32 %v2486, 1.442695
    %v2495 = vpow.pop %v2494
    %v2496 = vmul.f32 %v2487, 1.442695
    %v2497 = vpow.pop %v2496
    %v2498 = vmul.f32 %v2488, 1.442695
    %v2499 = vpow.pop %v2498
    %v2500 = vmul.f32 %v2489, 1.442695
    %v2501 = vpow.pop %v2500
    %v2502 = vsel %vm400, %v2491, 0.0
    %2503 = vadd.xlane.f32.xlu0 %v2502
    %v2504 = vpop.xlane.xlu0 %2503
    %v2505 = vsel %vm400, %v2493, 0.0
    %2506 = vadd.xlane.f32.xlu0 %v2505
    %v2507 = vpop.xlane.xlu0 %2506
    %v2508 = vsel %vm400, %v2495, 0.0
    %2509 = vadd.xlane.f32.xlu0 %v2508
    %v2510 = vpop.xlane.xlu0 %2509
    %v2511 = vsel %vm400, %v2497, 0.0
    %2512 = vadd.xlane.f32.xlu0 %v2511
    %v2513 = vpop.xlane.xlu0 %2512
    %v2514 = vsel %vm400, %v2499, 0.0
    %2515 = vadd.xlane.f32.xlu0 %v2514
    %v2516 = vpop.xlane.xlu0 %2515
    %v2517 = vsel %vm400, %v2501, 0.0
    %2518 = vadd.xlane.f32.xlu0 %v2517
    %v2519 = vpop.xlane.xlu0 %2518
    %v2520 = vrcp.pop %v2504
    %v2521 = vrcp.pop %v2507
    %v2522 = vrcp.pop %v2510
    %v2523 = vrcp.pop %v2513
    %v2524 = vrcp.pop %v2516
    %v2525 = vrcp.pop %v2519
    %v2526 = vmul.f32 %v2491, %v2520
    %v2527 = vmul.f32 %v2493, %v2521
    %v2528 = vmul.f32 %v2495, %v2522
    %v2529 = vmul.f32 %v2497, %v2523
    %v2530 = vmul.f32 %v2499, %v2524
    %v2531 = vmul.f32 %v2501, %v2525
    %v2532 = vsel %vm797, %v2053, 0.0
    %v2533 = vsel %vm797, %v2055, 0.0
    %v2534 = vsel %vm797, %v2057, 0.0
    %v2535 = vsel %vm797, %v2059, 0.0
    %v2536 = vsel %vm797, %v2061, 0.0
    %v2537 = vsel %vm797, %v2063, 0.0
    %v2538 = vpack.c.bf16 %v2533, %v2532
    %v2539 = vpack.c.bf16 %v2535, %v2534
    %v2540 = vpack.c.bf16 %v2537, %v2536
    %v2541 = vpack.c.bf16 %v2527, %v2526
    %v2542 = vpack.c.bf16 %v2529, %v2528
    %v2543 = vpack.c.bf16 %v2531, %v2530
    %v2545 = vsel %vm400, %v2541, 0
    %v2548 = vsel %vm400, %v2542, 0
    %v2551 = vsel %vm400, %v2543, 0
    %2553 = vmatprep.subr.bf16.mxu0 0
    %2554 = vmatpush1.bf16.msra.mxu0 0
    %2555 = vmatprep.subr.bf16.mxu0 0
    %2556 = vmatpush1.bf16.msra.mxu0 0
    %2557 = vmatprep.subr.bf16.mxu0 0
    %2558 = vmatpush1.bf16.msra.mxu0 0
    %2559 = vmatprep.subr.bf16.mxu0 0
    %2560 = vmatpush1.bf16.msra.mxu0 0
    %2561 = vmatprep.subr.bf16.mxu0 0
    %2562 = vmatpush1.bf16.msra.mxu0 0
    %2563 = vmatprep.subr.bf16.mxu0 0
    %2564 = vmatpush1.bf16.msra.mxu0 %v2540
    %2565 = vmatprep.subr.bf16.mxu0 0
    %2566 = vmatpush1.bf16.msra.mxu0 %v2539
    %2567 = vmatprep.subr.bf16.mxu0 0
    %2568 = vmatpush1.bf16.msra.mxu0 %v2538
    %2569 = vmatprep.subr.bf16.mxu0 0
    %2570 = vmatpush2.bf16.msra.mxu0 0
    %2571 = vmatprep.subr.bf16.mxu0 0
    %2572 = vmatpush2.bf16.msra.mxu0 0
    %2573 = vmatprep.subr.bf16.mxu0 0
    %2574 = vmatpush2.bf16.msra.mxu0 0
    %2575 = vmatprep.subr.bf16.mxu0 0
    %2576 = vmatpush2.bf16.msra.mxu0 0
    %2577 = vmatprep.subr.bf16.mxu0 0
    %2578 = vmatpush2.bf16.msra.mxu0 0
    %2579 = vmatprep.subr.bf16.mxu0 0
    %2580 = vmatpush2.bf16.msra.mxu0 0
    %2581 = vmatprep.subr.bf16.mxu0 0
    %2582 = vmatpush2.bf16.msra.mxu0 0
    %2583 = vmatprep.subr.bf16.mxu0 0
    %2584 = vmatpush2.bf16.msra.mxu0 0
    %2585 = vmatprep.mubr.bf16.mxu0 0
    %2586 = vmatmul.mubr.bf16.gmra.mxu0 %v2545
    %v2587 = vpop.f32.mrf.mxu0
    %v2588 = vadd.f32 0.0, %v2587
    %v2589 = vpop.f32.mrf.mxu0
    %v2590 = vpop.f32.mrf.mxu0
    %v2591 = vadd.f32 0.0, %v2590
    %v2592 = vpop.f32.mrf.mxu0
    %2593 = vmatprep.mubr.bf16.mxu0 0
    %2594 = vmatmul.mubr.bf16.gmra.mxu0 %v2548
    %v2595 = vpop.f32.mrf.mxu0
    %v2596 = vadd.f32 0.0, %v2595
    %v2597 = vpop.f32.mrf.mxu0
    %v2598 = vpop.f32.mrf.mxu0
    %v2599 = vadd.f32 0.0, %v2598
    %v2600 = vpop.f32.mrf.mxu0
    %2601 = vmatprep.mubr.bf16.mxu0 0
    %2602 = vmatmul.mubr.bf16.gmra.mxu0 %v2551
    %v2603 = vpop.f32.mrf.mxu0
    %v2604 = vadd.f32 0.0, %v2603
    %v2605 = vpop.f32.mrf.mxu0
    %v2606 = vpop.f32.mrf.mxu0
    %v2607 = vadd.f32 0.0, %v2606
    %v2608 = vpop.f32.mrf.mxu0
    %2609 = vdwg.mxu0
    %v2610 = vadd.f32 %v2357, %v2588
    %v2611 = vadd.f32 %v2360, %v2591
    %v2612 = vadd.f32 %v2365, %v2596
    %v2613 = vadd.f32 %v2368, %v2599
    %v2614 = vadd.f32 %v2373, %v2604
    %v2615 = vadd.f32 %v2376, %v2607
    %v2616 = vsel %vm1036, %v1873, 0.0
    %v2617 = vsel %vm1036, %v1875, 0.0
    %v2618 = vsel %vm1036, %v1877, 0.0
    %v2619 = vsel %vm1036, %v1879, 0.0
    %v2620 = vsel %vm1036, %v1881, 0.0
    %v2621 = vsel %vm1036, %v1883, 0.0
    %v2622 = vpack.c.bf16 %v2617, %v2616
    %v2623 = vpack.c.bf16 %v2619, %v2618
    %v2624 = vpack.c.bf16 %v2621, %v2620
    %v2626 = vsel %vm208, %v2622, 0
    %v2629 = vsel %vm208, %v2623, 0
    %v2632 = vsel %vm208, %v2624, 0
    %2634 = vmatprep.subr.bf16.mxu0 0
    %2635 = vmatpush1.bf16.xpose.msra.mxu0 0
    %2636 = vmatprep.subr.bf16.mxu0 0
    %2637 = vmatpush1.bf16.xpose.msra.mxu0 0
    %2638 = vmatprep.subr.bf16.mxu0 0
    %2639 = vmatpush1.bf16.xpose.msra.mxu0 0
    %2640 = vmatprep.subr.bf16.mxu0 0
    %2641 = vmatpush1.bf16.xpose.msra.mxu0 0
    %2642 = vmatprep.subr.bf16.mxu0 0
    %2643 = vmatpush1.bf16.xpose.msra.mxu0 0
    %2644 = vmatprep.subr.bf16.mxu0 0
    %2645 = vmatpush1.bf16.xpose.msra.mxu0 %v2632
    %2646 = vmatprep.subr.bf16.mxu0 0
    %2647 = vmatpush1.bf16.xpose.msra.mxu0 %v2629
    %2648 = vmatprep.subr.bf16.mxu0 0
    %2649 = vmatpush1.bf16.xpose.msra.mxu0 %v2626
    %2650 = vmatprep.subr.bf16.mxu0 0
    %2651 = vmatpush2.bf16.xpose.msra.mxu0 0
    %2652 = vmatprep.subr.bf16.mxu0 0
    %2653 = vmatpush2.bf16.xpose.msra.mxu0 0
    %2654 = vmatprep.subr.bf16.mxu0 0
    %2655 = vmatpush2.bf16.xpose.msra.mxu0 0
    %2656 = vmatprep.subr.bf16.mxu0 0
    %2657 = vmatpush2.bf16.xpose.msra.mxu0 0
    %2658 = vmatprep.subr.bf16.mxu0 0
    %2659 = vmatpush2.bf16.xpose.msra.mxu0 0
    %2660 = vmatprep.subr.bf16.mxu0 0
    %2661 = vmatpush2.bf16.xpose.msra.mxu0 0
    %2662 = vmatprep.subr.bf16.mxu0 0
    %2663 = vmatpush2.bf16.xpose.msra.mxu0 0
    %2664 = vmatprep.subr.bf16.mxu0 0
    %2665 = vmatpush2.bf16.xpose.msra.mxu0 0
    %2666 = vmatprep.mubr.bf16.mxu0 0
    %2667 = vmatmul.mubr.bf16.gmra.mxu0 %v1900
    %v2668 = vpop.f32.mrf.mxu0
    %v2669 = vadd.f32 0.0, %v2668
    %v2670 = vpop.f32.mrf.mxu0
    %v2671 = vpop.f32.mrf.mxu0
    %v2672 = vadd.f32 0.0, %v2671
    %v2673 = vpop.f32.mrf.mxu0
    %2674 = vmatprep.mubr.bf16.mxu0 0
    %2675 = vmatmul.mubr.bf16.gmra.mxu0 %v1903
    %v2676 = vpop.f32.mrf.mxu0
    %v2677 = vadd.f32 0.0, %v2676
    %v2678 = vpop.f32.mrf.mxu0
    %v2679 = vpop.f32.mrf.mxu0
    %v2680 = vadd.f32 0.0, %v2679
    %v2681 = vpop.f32.mrf.mxu0
    %2682 = vmatprep.mubr.bf16.mxu0 0
    %2683 = vmatmul.mubr.bf16.gmra.mxu0 %v1906
    %v2684 = vpop.f32.mrf.mxu0
    %v2685 = vadd.f32 0.0, %v2684
    %v2686 = vpop.f32.mrf.mxu0
    %v2687 = vpop.f32.mrf.mxu0
    %v2688 = vadd.f32 0.0, %v2687
    %v2689 = vpop.f32.mrf.mxu0
    %2690 = vdwg.mxu0
    %v2691 = vmul.f32 %v2669, 0.35355338
    %v2692 = vmul.f32 %v2672, 0.35355338
    %v2693 = vmul.f32 %v2677, 0.35355338
    %v2694 = vmul.f32 %v2680, 0.35355338
    %v2695 = vmul.f32 %v2685, 0.35355338
    %v2696 = vmul.f32 %v2688, 0.35355338
    %v2697 = vadd.f32 %v2691, %v79
    %v2698 = vadd.f32 %v2692, %v80
    %v2699 = vadd.f32 %v2693, %v81
    %v2700 = vadd.f32 %v2694, %v82
    %v2701 = vadd.f32 %v2695, %v83
    %v2702 = vadd.f32 %v2696, %v84
    %v2703 = vsel %vm400, %v2697, -inf
    %2704 = vmax.xlane.f32.xlu0 %v2703
    %v2705 = vpop.xlane.xlu0 %2704
    %v2706 = vsel %vm400, %v2698, -inf
    %2707 = vmax.xlane.f32.xlu0 %v2706
    %v2708 = vpop.xlane.xlu0 %2707
    %v2709 = vsel %vm400, %v2699, -inf
    %2710 = vmax.xlane.f32.xlu0 %v2709
    %v2711 = vpop.xlane.xlu0 %2710
    %v2712 = vsel %vm400, %v2700, -inf
    %2713 = vmax.xlane.f32.xlu0 %v2712
    %v2714 = vpop.xlane.xlu0 %2713
    %v2715 = vsel %vm400, %v2701, -inf
    %2716 = vmax.xlane.f32.xlu0 %v2715
    %v2717 = vpop.xlane.xlu0 %2716
    %v2718 = vsel %vm400, %v2702, -inf
    %2719 = vmax.xlane.f32.xlu0 %v2718
    %v2720 = vpop.xlane.xlu0 %2719
    %v2721 = vsub.f32 %v2697, %v2705
    %v2722 = vsub.f32 %v2698, %v2708
    %v2723 = vsub.f32 %v2699, %v2711
    %v2724 = vsub.f32 %v2700, %v2714
    %v2725 = vsub.f32 %v2701, %v2717
    %v2726 = vsub.f32 %v2702, %v2720
    %v2727 = vmul.f32 %v2721, 1.442695
    %v2728 = vpow.pop %v2727
    %v2729 = vmul.f32 %v2722, 1.442695
    %v2730 = vpow.pop %v2729
    %v2731 = vmul.f32 %v2723, 1.442695
    %v2732 = vpow.pop %v2731
    %v2733 = vmul.f32 %v2724, 1.442695
    %v2734 = vpow.pop %v2733
    %v2735 = vmul.f32 %v2725, 1.442695
    %v2736 = vpow.pop %v2735
    %v2737 = vmul.f32 %v2726, 1.442695
    %v2738 = vpow.pop %v2737
    %v2739 = vsel %vm400, %v2728, 0.0
    %2740 = vadd.xlane.f32.xlu0 %v2739
    %v2741 = vpop.xlane.xlu0 %2740
    %v2742 = vsel %vm400, %v2730, 0.0
    %2743 = vadd.xlane.f32.xlu0 %v2742
    %v2744 = vpop.xlane.xlu0 %2743
    %v2745 = vsel %vm400, %v2732, 0.0
    %2746 = vadd.xlane.f32.xlu0 %v2745
    %v2747 = vpop.xlane.xlu0 %2746
    %v2748 = vsel %vm400, %v2734, 0.0
    %2749 = vadd.xlane.f32.xlu0 %v2748
    %v2750 = vpop.xlane.xlu0 %2749
    %v2751 = vsel %vm400, %v2736, 0.0
    %2752 = vadd.xlane.f32.xlu0 %v2751
    %v2753 = vpop.xlane.xlu0 %2752
    %v2754 = vsel %vm400, %v2738, 0.0
    %2755 = vadd.xlane.f32.xlu0 %v2754
    %v2756 = vpop.xlane.xlu0 %2755
    %v2757 = vrcp.pop %v2741
    %v2758 = vrcp.pop %v2744
    %v2759 = vrcp.pop %v2747
    %v2760 = vrcp.pop %v2750
    %v2761 = vrcp.pop %v2753
    %v2762 = vrcp.pop %v2756
    %v2763 = vmul.f32 %v2728, %v2757
    %v2764 = vmul.f32 %v2730, %v2758
    %v2765 = vmul.f32 %v2732, %v2759
    %v2766 = vmul.f32 %v2734, %v2760
    %v2767 = vmul.f32 %v2736, %v2761
    %v2768 = vmul.f32 %v2738, %v2762
    %v2769 = vsel %vm1036, %v2053, 0.0
    %v2770 = vsel %vm1036, %v2055, 0.0
    %v2771 = vsel %vm1036, %v2057, 0.0
    %v2772 = vsel %vm1036, %v2059, 0.0
    %v2773 = vsel %vm1036, %v2061, 0.0
    %v2774 = vsel %vm1036, %v2063, 0.0
    %v2775 = vpack.c.bf16 %v2770, %v2769
    %v2776 = vpack.c.bf16 %v2772, %v2771
    %v2777 = vpack.c.bf16 %v2774, %v2773
    %v2778 = vpack.c.bf16 %v2764, %v2763
    %v2779 = vpack.c.bf16 %v2766, %v2765
    %v2780 = vpack.c.bf16 %v2768, %v2767
    %v2782 = vsel %vm400, %v2778, 0
    %v2785 = vsel %vm400, %v2779, 0
    %v2788 = vsel %vm400, %v2780, 0
    %2790 = vmatprep.subr.bf16.mxu0 0
    %2791 = vmatpush1.bf16.msra.mxu0 0
    %2792 = vmatprep.subr.bf16.mxu0 0
    %2793 = vmatpush1.bf16.msra.mxu0 0
    %2794 = vmatprep.subr.bf16.mxu0 0
    %2795 = vmatpush1.bf16.msra.mxu0 0
    %2796 = vmatprep.subr.bf16.mxu0 0
    %2797 = vmatpush1.bf16.msra.mxu0 0
    %2798 = vmatprep.subr.bf16.mxu0 0
    %2799 = vmatpush1.bf16.msra.mxu0 0
    %2800 = vmatprep.subr.bf16.mxu0 0
    %2801 = vmatpush1.bf16.msra.mxu0 %v2777
    %2802 = vmatprep.subr.bf16.mxu0 0
    %2803 = vmatpush1.bf16.msra.mxu0 %v2776
    %2804 = vmatprep.subr.bf16.mxu0 0
    %2805 = vmatpush1.bf16.msra.mxu0 %v2775
    %2806 = vmatprep.subr.bf16.mxu0 0
    %2807 = vmatpush2.bf16.msra.mxu0 0
    %2808 = vmatprep.subr.bf16.mxu0 0
    %2809 = vmatpush2.bf16.msra.mxu0 0
    %2810 = vmatprep.subr.bf16.mxu0 0
    %2811 = vmatpush2.bf16.msra.mxu0 0
    %2812 = vmatprep.subr.bf16.mxu0 0
    %2813 = vmatpush2.bf16.msra.mxu0 0
    %2814 = vmatprep.subr.bf16.mxu0 0
    %2815 = vmatpush2.bf16.msra.mxu0 0
    %2816 = vmatprep.subr.bf16.mxu0 0
    %2817 = vmatpush2.bf16.msra.mxu0 0
    %2818 = vmatprep.subr.bf16.mxu0 0
    %2819 = vmatpush2.bf16.msra.mxu0 0
    %2820 = vmatprep.subr.bf16.mxu0 0
    %2821 = vmatpush2.bf16.msra.mxu0 0
    %2822 = vmatprep.mubr.bf16.mxu0 0
    %2823 = vmatmul.mubr.bf16.gmra.mxu0 %v2782
    %v2824 = vpop.f32.mrf.mxu0
    %v2825 = vadd.f32 0.0, %v2824
    %v2826 = vpop.f32.mrf.mxu0
    %v2827 = vpop.f32.mrf.mxu0
    %v2828 = vadd.f32 0.0, %v2827
    %v2829 = vpop.f32.mrf.mxu0
    %2830 = vmatprep.mubr.bf16.mxu0 0
    %2831 = vmatmul.mubr.bf16.gmra.mxu0 %v2785
    %v2832 = vpop.f32.mrf.mxu0
    %v2833 = vadd.f32 0.0, %v2832
    %v2834 = vpop.f32.mrf.mxu0
    %v2835 = vpop.f32.mrf.mxu0
    %v2836 = vadd.f32 0.0, %v2835
    %v2837 = vpop.f32.mrf.mxu0
    %2838 = vmatprep.mubr.bf16.mxu0 0
    %2839 = vmatmul.mubr.bf16.gmra.mxu0 %v2788
    %v2840 = vpop.f32.mrf.mxu0
    %v2841 = vadd.f32 0.0, %v2840
    %v2842 = vpop.f32.mrf.mxu0
    %v2843 = vpop.f32.mrf.mxu0
    %v2844 = vadd.f32 0.0, %v2843
    %v2845 = vpop.f32.mrf.mxu0
    %2846 = vdwg.mxu0
    %v2847 = vadd.f32 %v2610, %v2825
    %v2848 = vadd.f32 %v2611, %v2828
    %v2849 = vadd.f32 %v2612, %v2833
    %v2850 = vadd.f32 %v2613, %v2836
    %v2851 = vadd.f32 %v2614, %v2841
    %v2852 = vadd.f32 %v2615, %v2844
    %v2853 = vpack.c.bf16 %v2848, %v2847
    %v2854 = vpack.c.bf16 %v2850, %v2849
    %v2855 = vpack.c.bf16 %v2852, %v2851
    %s2856 = scalar_lea.vmem %s3, 16
    %v2857 = vld [vmem:[%s2856] sm:$0xf]
    %v2858 = vld [vmem:[%s2856 + $0x4] sm:$0xf]
    %v2859 = vld [vmem:[%s2856 + $0x8] sm:$0xf]
    %v2860 = vld [vmem:[%s2856 + $0xc] sm:$0xf]
    %v2865 = vunpack.c.l.b16 %v2857
    %v2866 = vunpack.c.l.b16 %v2858
    %v2867 = vunpack.c.l.b16 %v2859
    %v2868 = vunpack.c.l.b16 %v2860
    %v2869 = vpack.c.b16 %v2866, %v2865
    %v2870 = vpack.c.b16 %v2868, %v2867
    %v2874 = vsel %vm208, %v2853, 0
    %v2877 = vsel %vm208, %v2854, 0
    %v2880 = vsel %vm208, %v2855, 0
    %2882 = vmatprep.subr.bf16.mxu0 0
    %2883 = vmatpush1.bf16.msra.mxu0 0
    %2884 = vmatprep.subr.bf16.mxu0 0
    %2885 = vmatpush1.bf16.msra.mxu0 0
    %2886 = vmatprep.subr.bf16.mxu0 0
    %2887 = vmatpush1.bf16.msra.mxu0 0
    %2888 = vmatprep.subr.bf16.mxu0 0
    %2889 = vmatpush1.bf16.msra.mxu0 0
    %2890 = vmatprep.subr.bf16.mxu0 0
    %2891 = vmatpush1.bf16.msra.mxu0 0
    %2892 = vmatprep.subr.bf16.mxu0 0
    %2893 = vmatpush1.bf16.msra.mxu0 0
    %2894 = vmatprep.subr.bf16.mxu0 0
    %2895 = vmatpush1.bf16.msra.mxu0 %v2870
    %2896 = vmatprep.subr.bf16.mxu0 0
    %2897 = vmatpush1.bf16.msra.mxu0 %v2869
    %2898 = vmatprep.subr.bf16.mxu0 0
    %2899 = vmatpush2.bf16.msra.mxu0 0
    %2900 = vmatprep.subr.bf16.mxu0 0
    %2901 = vmatpush2.bf16.msra.mxu0 0
    %2902 = vmatprep.subr.bf16.mxu0 0
    %2903 = vmatpush2.bf16.msra.mxu0 0
    %2904 = vmatprep.subr.bf16.mxu0 0
    %2905 = vmatpush2.bf16.msra.mxu0 0
    %2906 = vmatprep.subr.bf16.mxu0 0
    %2907 = vmatpush2.bf16.msra.mxu0 0
    %2908 = vmatprep.subr.bf16.mxu0 0
    %2909 = vmatpush2.bf16.msra.mxu0 0
    %2910 = vmatprep.subr.bf16.mxu0 0
    %2911 = vmatpush2.bf16.msra.mxu0 0
    %2912 = vmatprep.subr.bf16.mxu0 0
    %2913 = vmatpush2.bf16.msra.mxu0 0
    %2914 = vmatprep.mubr.bf16.mxu0 0
    %2915 = vmatmul.mubr.bf16.gmra.mxu0 %v2874
    %v2916 = vpop.f32.mrf.mxu0
    %v2917 = vadd.f32 0.0, %v2916
    %v2918 = vpop.f32.mrf.mxu0
    %v2919 = vpop.f32.mrf.mxu0
    %v2920 = vadd.f32 0.0, %v2919
    %v2921 = vpop.f32.mrf.mxu0
    %2922 = vmatprep.mubr.bf16.mxu0 0
    %2923 = vmatmul.mubr.bf16.gmra.mxu0 %v2877
    %v2924 = vpop.f32.mrf.mxu0
    %v2925 = vadd.f32 0.0, %v2924
    %v2926 = vpop.f32.mrf.mxu0
    %v2927 = vpop.f32.mrf.mxu0
    %v2928 = vadd.f32 0.0, %v2927
    %v2929 = vpop.f32.mrf.mxu0
    %2930 = vmatprep.mubr.bf16.mxu0 0
    %2931 = vmatmul.mubr.bf16.gmra.mxu0 %v2880
    %v2932 = vpop.f32.mrf.mxu0
    %v2933 = vadd.f32 0.0, %v2932
    %v2934 = vpop.f32.mrf.mxu0
    %v2935 = vpop.f32.mrf.mxu0
    %v2936 = vadd.f32 0.0, %v2935
    %v2937 = vpop.f32.mrf.mxu0
    %2938 = vdwg.mxu0
    %v2939 = vadd.f32 %v1763, %v2917
    %v2940 = vadd.f32 %v1764, %v2920
    %v2941 = vadd.f32 %v1765, %v2925
    %v2942 = vadd.f32 %v1766, %v2928
    %v2943 = vadd.f32 %v1767, %v2933
    %v2944 = vadd.f32 %v1768, %v2936
    %v2945 = vlaneseq
    %v2946 = vshrl.u32 %v2945, 7
    %v2947 = vsub.s32 0, %v2946
    %v2948 = vrot.slane %v1776, %v2947
    %v2949 = vadd.f32 %v2939, %v2948
    %v2950 = vadd.f32 %v2940, %v2948
    %v2951 = vadd.f32 %v2941, %v2948
    %v2952 = vadd.f32 %v2942, %v2948
    %v2953 = vadd.f32 %v2943, %v2948
    %v2954 = vadd.f32 %v2944, %v2948
    %v2955 = vsel %vm208, %v2949, 0.0
    %2956 = vadd.xlane.f32.xlu0 %v2955
    %v2957 = vpop.xlane.xlu0 %2956
    %v2958 = vsel %vm208, %v2950, 0.0
    %2959 = vadd.xlane.f32.xlu0 %v2958
    %v2960 = vpop.xlane.xlu0 %2959
    %v2961 = vsel %vm208, %v2951, 0.0
    %2962 = vadd.xlane.f32.xlu0 %v2961
    %v2963 = vpop.xlane.xlu0 %2962
    %v2964 = vsel %vm208, %v2952, 0.0
    %2965 = vadd.xlane.f32.xlu0 %v2964
    %v2966 = vpop.xlane.xlu0 %2965
    %v2967 = vsel %vm208, %v2953, 0.0
    %2968 = vadd.xlane.f32.xlu0 %v2967
    %v2969 = vpop.xlane.xlu0 %2968
    %v2970 = vsel %vm208, %v2954, 0.0
    %2971 = vadd.xlane.f32.xlu0 %v2970
    %v2972 = vpop.xlane.xlu0 %2971
    %v2973 = vmul.f32 %v2957, %v1393
    %v2974 = vmul.f32 %v2960, %v1393
    %v2975 = vmul.f32 %v2963, %v1393
    %v2976 = vmul.f32 %v2966, %v1393
    %v2977 = vmul.f32 %v2969, %v1393
    %v2978 = vmul.f32 %v2972, %v1393
    %v2979 = vsub.f32 %v2949, %v2973
    %v2980 = vsub.f32 %v2950, %v2974
    %v2981 = vsub.f32 %v2951, %v2975
    %v2982 = vsub.f32 %v2952, %v2976
    %v2983 = vsub.f32 %v2953, %v2977
    %v2984 = vsub.f32 %v2954, %v2978
    %v2985 = vmul.f32 %v2979, %v2979
    %v2986 = vmul.f32 %v2980, %v2980
    %v2987 = vmul.f32 %v2981, %v2981
    %v2988 = vmul.f32 %v2982, %v2982
    %v2989 = vmul.f32 %v2983, %v2983
    %v2990 = vmul.f32 %v2984, %v2984
    %v2991 = vsel %vm208, %v2985, 0.0
    %2992 = vadd.xlane.f32.xlu0 %v2991
    %v2993 = vpop.xlane.xlu0 %2992
    %v2994 = vsel %vm208, %v2986, 0.0
    %2995 = vadd.xlane.f32.xlu0 %v2994
    %v2996 = vpop.xlane.xlu0 %2995
    %v2997 = vsel %vm208, %v2987, 0.0
    %2998 = vadd.xlane.f32.xlu0 %v2997
    %v2999 = vpop.xlane.xlu0 %2998
    %v3000 = vsel %vm208, %v2988, 0.0
    %3001 = vadd.xlane.f32.xlu0 %v3000
    %v3002 = vpop.xlane.xlu0 %3001
    %v3003 = vsel %vm208, %v2989, 0.0
    %3004 = vadd.xlane.f32.xlu0 %v3003
    %v3005 = vpop.xlane.xlu0 %3004
    %v3006 = vsel %vm208, %v2990, 0.0
    %3007 = vadd.xlane.f32.xlu0 %v3006
    %v3008 = vpop.xlane.xlu0 %3007
    %v3009 = vmul.f32 %v2993, %v1393
    %v3010 = vmul.f32 %v2996, %v1393
    %v3011 = vmul.f32 %v2999, %v1393
    %v3012 = vmul.f32 %v3002, %v1393
    %v3013 = vmul.f32 %v3005, %v1393
    %v3014 = vmul.f32 %v3008, %v1393
    %v3015 = vadd.f32 %v3009, 1e-05
    %v3016 = vadd.f32 %v3010, 1e-05
    %v3017 = vadd.f32 %v3011, 1e-05
    %v3018 = vadd.f32 %v3012, 1e-05
    %v3019 = vadd.f32 %v3013, 1e-05
    %v3020 = vadd.f32 %v3014, 1e-05
    %v3021 = vrsqrt.pop %v3015
    %v3022 = vrsqrt.pop %v3016
    %v3023 = vrsqrt.pop %v3017
    %v3024 = vrsqrt.pop %v3018
    %v3025 = vrsqrt.pop %v3019
    %v3026 = vrsqrt.pop %v3020
    %v3027 = vmul.f32 %v2979, %v3021
    %v3028 = vmul.f32 %v2980, %v3022
    %v3029 = vmul.f32 %v2981, %v3023
    %v3030 = vmul.f32 %v2982, %v3024
    %v3031 = vmul.f32 %v2983, %v3025
    %v3032 = vmul.f32 %v2984, %v3026
    %v3033 = vlaneseq
    %v3034 = vshrl.u32 %v3033, 7
    %v3035 = vsub.s32 1, %v3034
    %v3036 = vrot.slane %v1776, %v3035
    %v3037 = vmul.f32 %v3027, %v3036
    %v3038 = vmul.f32 %v3028, %v3036
    %v3039 = vmul.f32 %v3029, %v3036
    %v3040 = vmul.f32 %v3030, %v3036
    %v3041 = vmul.f32 %v3031, %v3036
    %v3042 = vmul.f32 %v3032, %v3036
    %v3043 = vlaneseq
    %v3044 = vshrl.u32 %v3043, 7
    %v3045 = vsub.s32 2, %v3044
    %v3046 = vrot.slane %v1776, %v3045
    %v3047 = vadd.f32 %v3037, %v3046
    %v3048 = vadd.f32 %v3038, %v3046
    %v3049 = vadd.f32 %v3039, %v3046
    %v3050 = vadd.f32 %v3040, %v3046
    %v3051 = vadd.f32 %v3041, %v3046
    %v3052 = vadd.f32 %v3042, %v3046
    %s3053 = scalar_lea.vmem %s4, 20
    %v3054 = vld [vmem:[%s3053] sm:$0xf]
    %v3055 = vld [vmem:[%s3053 + $0x4] sm:$0xf]
    %v3056 = vld [vmem:[%s3053 + $0x8] sm:$0xf]
    %v3057 = vld [vmem:[%s3053 + $0xc] sm:$0xf]
    %v3058 = vld [vmem:[%s3053 + $0x10] sm:$0x1]
    %v3059 = vpack.c.bf16 %v3048, %v3047
    %v3060 = vpack.c.bf16 %v3050, %v3049
    %v3061 = vpack.c.bf16 %v3052, %v3051
    %v3062 = vunpack.c.l.bf16 %v3058
    %v3063 = vlaneseq
    %v3064 = vshrl.u32 %v3063, 7
    %v3065 = vsub.s32 0, %v3064
    %v3066 = vrot.slane %v3062, %v3065
    %v3071 = vunpack.c.l.b16 %v3054
    %v3072 = vunpack.c.l.b16 %v3055
    %v3073 = vunpack.c.l.b16 %v3056
    %v3074 = vunpack.c.l.b16 %v3057
    %v3075 = vpack.c.b16 %v3072, %v3071
    %v3076 = vpack.c.b16 %v3074, %v3073
    %v3080 = vsel %vm208, %v3059, 0
    %v3083 = vsel %vm208, %v3060, 0
    %v3086 = vsel %vm208, %v3061, 0
    %3088 = vmatprep.subr.bf16.mxu0 0
    %3089 = vmatpush1.bf16.msra.mxu0 0
    %3090 = vmatprep.subr.bf16.mxu0 0
    %3091 = vmatpush1.bf16.msra.mxu0 0
    %3092 = vmatprep.subr.bf16.mxu0 0
    %3093 = vmatpush1.bf16.msra.mxu0 0
    %3094 = vmatprep.subr.bf16.mxu0 0
    %3095 = vmatpush1.bf16.msra.mxu0 0
    %3096 = vmatprep.subr.bf16.mxu0 0
    %3097 = vmatpush1.bf16.msra.mxu0 0
    %3098 = vmatprep.subr.bf16.mxu0 0
    %3099 = vmatpush1.bf16.msra.mxu0 0
    %3100 = vmatprep.subr.bf16.mxu0 0
    %3101 = vmatpush1.bf16.msra.mxu0 %v3076
    %3102 = vmatprep.subr.bf16.mxu0 0
    %3103 = vmatpush1.bf16.msra.mxu0 %v3075
    %3104 = vmatprep.subr.bf16.mxu0 0
    %3105 = vmatpush2.bf16.msra.mxu0 0
    %3106 = vmatprep.subr.bf16.mxu0 0
    %3107 = vmatpush2.bf16.msra.mxu0 0
    %3108 = vmatprep.subr.bf16.mxu0 0
    %3109 = vmatpush2.bf16.msra.mxu0 0
    %3110 = vmatprep.subr.bf16.mxu0 0
    %3111 = vmatpush2.bf16.msra.mxu0 0
    %3112 = vmatprep.subr.bf16.mxu0 0
    %3113 = vmatpush2.bf16.msra.mxu0 0
    %3114 = vmatprep.subr.bf16.mxu0 0
    %3115 = vmatpush2.bf16.msra.mxu0 0
    %3116 = vmatprep.subr.bf16.mxu0 0
    %3117 = vmatpush2.bf16.msra.mxu0 0
    %3118 = vmatprep.subr.bf16.mxu0 0
    %3119 = vmatpush2.bf16.msra.mxu0 0
    %3120 = vmatprep.mubr.bf16.mxu0 0
    %3121 = vmatmul.mubr.bf16.gmra.mxu0 %v3080
    %v3122 = vpop.f32.mrf.mxu0
    %v3123 = vadd.f32 %v3066, %v3122
    %v3124 = vpop.f32.mrf.mxu0
    %v3125 = vpop.f32.mrf.mxu0
    %v3126 = vadd.f32 %v3066, %v3125
    %v3127 = vpop.f32.mrf.mxu0
    %3128 = vmatprep.mubr.bf16.mxu0 0
    %3129 = vmatmul.mubr.bf16.gmra.mxu0 %v3083
    %v3130 = vpop.f32.mrf.mxu0
    %v3131 = vadd.f32 %v3066, %v3130
    %v3132 = vpop.f32.mrf.mxu0
    %v3133 = vpop.f32.mrf.mxu0
    %v3134 = vadd.f32 %v3066, %v3133
    %v3135 = vpop.f32.mrf.mxu0
    %3136 = vmatprep.mubr.bf16.mxu0 0
    %3137 = vmatmul.mubr.bf16.gmra.mxu0 %v3086
    %v3138 = vpop.f32.mrf.mxu0
    %v3139 = vadd.f32 %v3066, %v3138
    %v3140 = vpop.f32.mrf.mxu0
    %v3141 = vpop.f32.mrf.mxu0
    %v3142 = vadd.f32 %v3066, %v3141
    %v3143 = vpop.f32.mrf.mxu0
    %3144 = vdwg.mxu0
    %v3145 = vmax.f32 %v3123, 0.0
    %v3146 = vmax.f32 %v3126, 0.0
    %v3147 = vmax.f32 %v3131, 0.0
    %v3148 = vmax.f32 %v3134, 0.0
    %v3149 = vmax.f32 %v3139, 0.0
    %v3150 = vmax.f32 %v3142, 0.0
    %v3151 = vpack.c.bf16 %v3146, %v3145
    %v3152 = vpack.c.bf16 %v3148, %v3147
    %v3153 = vpack.c.bf16 %v3150, %v3149
    %s3154 = scalar_lea.vmem %s5, 16
    %v3155 = vld [vmem:[%s3154] sm:$0xf]
    %v3156 = vld [vmem:[%s3154 + $0x4] sm:$0xf]
    %v3157 = vld [vmem:[%s3154 + $0x8] sm:$0xf]
    %v3158 = vld [vmem:[%s3154 + $0xc] sm:$0xf]
    %v3159 = vlaneseq
    %v3160 = vshrl.u32 %v3159, 7
    %v3161 = vsub.s32 5, %v3160
    %v3162 = vrot.slane %v1776, %v3161
    %v3167 = vunpack.c.l.b16 %v3155
    %v3168 = vunpack.c.l.b16 %v3156
    %v3169 = vunpack.c.l.b16 %v3157
    %v3170 = vunpack.c.l.b16 %v3158
    %v3171 = vpack.c.b16 %v3168, %v3167
    %v3172 = vpack.c.b16 %v3170, %v3169
    %v3174 = vsel %vm1592, %v3151, 0
    %v3177 = vsel %vm1592, %v3152, 0
    %v3180 = vsel %vm1592, %v3153, 0
    %v3183 = vsel %vm1592, %v3171, 0
    %v3186 = vsel %vm1592, %v3172, 0
    %3188 = vmatprep.subr.bf16.mxu0 0
    %3189 = vmatpush1.bf16.xpose.msra.mxu0 0
    %3190 = vmatprep.subr.bf16.mxu0 0
    %3191 = vmatpush1.bf16.xpose.msra.mxu0 0
    %3192 = vmatprep.subr.bf16.mxu0 0
    %3193 = vmatpush1.bf16.xpose.msra.mxu0 0
    %3194 = vmatprep.subr.bf16.mxu0 0
    %3195 = vmatpush1.bf16.xpose.msra.mxu0 0
    %3196 = vmatprep.subr.bf16.mxu0 0
    %3197 = vmatpush1.bf16.xpose.msra.mxu0 0
    %3198 = vmatprep.subr.bf16.mxu0 0
    %3199 = vmatpush1.bf16.xpose.msra.mxu0 0
    %3200 = vmatprep.subr.bf16.mxu0 0
    %3201 = vmatpush1.bf16.xpose.msra.mxu0 %v3186
    %3202 = vmatprep.subr.bf16.mxu0 0
    %3203 = vmatpush1.bf16.xpose.msra.mxu0 %v3183
    %3204 = vmatprep.subr.bf16.mxu0 0
    %3205 = vmatpush2.bf16.xpose.msra.mxu0 0
    %3206 = vmatprep.subr.bf16.mxu0 0
    %3207 = vmatpush2.bf16.xpose.msra.mxu0 0
    %3208 = vmatprep.subr.bf16.mxu0 0
    %3209 = vmatpush2.bf16.xpose.msra.mxu0 0
    %3210 = vmatprep.subr.bf16.mxu0 0
    %3211 = vmatpush2.bf16.xpose.msra.mxu0 0
    %3212 = vmatprep.subr.bf16.mxu0 0
    %3213 = vmatpush2.bf16.xpose.msra.mxu0 0
    %3214 = vmatprep.subr.bf16.mxu0 0
    %3215 = vmatpush2.bf16.xpose.msra.mxu0 0
    %3216 = vmatprep.subr.bf16.mxu0 0
    %3217 = vmatpush2.bf16.xpose.msra.mxu0 0
    %3218 = vmatprep.subr.bf16.mxu0 0
    %3219 = vmatpush2.bf16.xpose.msra.mxu0 0
    %3220 = vmatprep.mubr.bf16.mxu0 0
    %3221 = vmatmul.mubr.bf16.gmra.mxu0 %v3174
    %v3222 = vpop.f32.mrf.mxu0
    %v3223 = vadd.f32 %v3162, %v3222
    %v3224 = vpop.f32.mrf.mxu0
    %v3225 = vpop.f32.mrf.mxu0
    %v3226 = vadd.f32 %v3162, %v3225
    %v3227 = vpop.f32.mrf.mxu0
    %3228 = vmatprep.mubr.bf16.mxu0 0
    %3229 = vmatmul.mubr.bf16.gmra.mxu0 %v3177
    %v3230 = vpop.f32.mrf.mxu0
    %v3231 = vadd.f32 %v3162, %v3230
    %v3232 = vpop.f32.mrf.mxu0
    %v3233 = vpop.f32.mrf.mxu0
    %v3234 = vadd.f32 %v3162, %v3233
    %v3235 = vpop.f32.mrf.mxu0
    %3236 = vmatprep.mubr.bf16.mxu0 0
    %3237 = vmatmul.mubr.bf16.gmra.mxu0 %v3180
    %v3238 = vpop.f32.mrf.mxu0
    %v3239 = vadd.f32 %v3162, %v3238
    %v3240 = vpop.f32.mrf.mxu0
    %v3241 = vpop.f32.mrf.mxu0
    %v3242 = vadd.f32 %v3162, %v3241
    %v3243 = vpop.f32.mrf.mxu0
    %3244 = vdwg.mxu0
    %v3245 = vadd.f32 %v3047, %v3223
    %v3246 = vadd.f32 %v3048, %v3226
    %v3247 = vadd.f32 %v3049, %v3231
    %v3248 = vadd.f32 %v3050, %v3234
    %v3249 = vadd.f32 %v3051, %v3239
    %v3250 = vadd.f32 %v3052, %v3242
    %v3251 = vsel %vm208, %v3245, 0.0
    %3252 = vadd.xlane.f32.xlu0 %v3251
    %v3253 = vpop.xlane.xlu0 %3252
    %v3254 = vsel %vm208, %v3246, 0.0
    %3255 = vadd.xlane.f32.xlu0 %v3254
    %v3256 = vpop.xlane.xlu0 %3255
    %v3257 = vsel %vm208, %v3247, 0.0
    %3258 = vadd.xlane.f32.xlu0 %v3257
    %v3259 = vpop.xlane.xlu0 %3258
    %v3260 = vsel %vm208, %v3248, 0.0
    %3261 = vadd.xlane.f32.xlu0 %v3260
    %v3262 = vpop.xlane.xlu0 %3261
    %v3263 = vsel %vm208, %v3249, 0.0
    %3264 = vadd.xlane.f32.xlu0 %v3263
    %v3265 = vpop.xlane.xlu0 %3264
    %v3266 = vsel %vm208, %v3250, 0.0
    %3267 = vadd.xlane.f32.xlu0 %v3266
    %v3268 = vpop.xlane.xlu0 %3267
    %v3269 = vmul.f32 %v3253, %v1393
    %v3270 = vmul.f32 %v3256, %v1393
    %v3271 = vmul.f32 %v3259, %v1393
    %v3272 = vmul.f32 %v3262, %v1393
    %v3273 = vmul.f32 %v3265, %v1393
    %v3274 = vmul.f32 %v3268, %v1393
    %v3275 = vsub.f32 %v3245, %v3269
    %v3276 = vsub.f32 %v3246, %v3270
    %v3277 = vsub.f32 %v3247, %v3271
    %v3278 = vsub.f32 %v3248, %v3272
    %v3279 = vsub.f32 %v3249, %v3273
    %v3280 = vsub.f32 %v3250, %v3274
    %v3281 = vmul.f32 %v3275, %v3275
    %v3282 = vmul.f32 %v3276, %v3276
    %v3283 = vmul.f32 %v3277, %v3277
    %v3284 = vmul.f32 %v3278, %v3278
    %v3285 = vmul.f32 %v3279, %v3279
    %v3286 = vmul.f32 %v3280, %v3280
    %v3287 = vsel %vm208, %v3281, 0.0
    %3288 = vadd.xlane.f32.xlu0 %v3287
    %v3289 = vpop.xlane.xlu0 %3288
    %v3290 = vsel %vm208, %v3282, 0.0
    %3291 = vadd.xlane.f32.xlu0 %v3290
    %v3292 = vpop.xlane.xlu0 %3291
    %v3293 = vsel %vm208, %v3283, 0.0
    %3294 = vadd.xlane.f32.xlu0 %v3293
    %v3295 = vpop.xlane.xlu0 %3294
    %v3296 = vsel %vm208, %v3284, 0.0
    %3297 = vadd.xlane.f32.xlu0 %v3296
    %v3298 = vpop.xlane.xlu0 %3297
    %v3299 = vsel %vm208, %v3285, 0.0
    %3300 = vadd.xlane.f32.xlu0 %v3299
    %v3301 = vpop.xlane.xlu0 %3300
    %v3302 = vsel %vm208, %v3286, 0.0
    %3303 = vadd.xlane.f32.xlu0 %v3302
    %v3304 = vpop.xlane.xlu0 %3303
    %v3305 = vmul.f32 %v3289, %v1393
    %v3306 = vmul.f32 %v3292, %v1393
    %v3307 = vmul.f32 %v3295, %v1393
    %v3308 = vmul.f32 %v3298, %v1393
    %v3309 = vmul.f32 %v3301, %v1393
    %v3310 = vmul.f32 %v3304, %v1393
    %v3311 = vadd.f32 %v3305, 1e-05
    %v3312 = vadd.f32 %v3306, 1e-05
    %v3313 = vadd.f32 %v3307, 1e-05
    %v3314 = vadd.f32 %v3308, 1e-05
    %v3315 = vadd.f32 %v3309, 1e-05
    %v3316 = vadd.f32 %v3310, 1e-05
    %v3317 = vrsqrt.pop %v3311
    %v3318 = vrsqrt.pop %v3312
    %v3319 = vrsqrt.pop %v3313
    %v3320 = vrsqrt.pop %v3314
    %v3321 = vrsqrt.pop %v3315
    %v3322 = vrsqrt.pop %v3316
    %v3323 = vmul.f32 %v3275, %v3317
    %v3324 = vmul.f32 %v3276, %v3318
    %v3325 = vmul.f32 %v3277, %v3319
    %v3326 = vmul.f32 %v3278, %v3320
    %v3327 = vmul.f32 %v3279, %v3321
    %v3328 = vmul.f32 %v3280, %v3322
    %v3329 = vlaneseq
    %v3330 = vshrl.u32 %v3329, 7
    %v3331 = vsub.s32 3, %v3330
    %v3332 = vrot.slane %v1776, %v3331
    %v3333 = vmul.f32 %v3323, %v3332
    %v3334 = vmul.f32 %v3324, %v3332
    %v3335 = vmul.f32 %v3325, %v3332
    %v3336 = vmul.f32 %v3326, %v3332
    %v3337 = vmul.f32 %v3327, %v3332
    %v3338 = vmul.f32 %v3328, %v3332
    %v3339 = vlaneseq
    %v3340 = vshrl.u32 %v3339, 7
    %v3341 = vsub.s32 4, %v3340
    %v3342 = vrot.slane %v1776, %v3341
    %v3343 = vadd.f32 %v3333, %v3342
    %v3344 = vadd.f32 %v3334, %v3342
    %v3345 = vadd.f32 %v3335, %v3342
    %v3346 = vadd.f32 %v3336, %v3342
    %v3347 = vadd.f32 %v3337, %v3342
    %v3348 = vadd.f32 %v3338, %v3342
    %v3349 = vld [vmem:[%s7] sm:$0x3]
    %v3350 = vsel %vm208, %v3343, 0.0
    %3351 = vadd.xlane.f32.xlu0 %v3350
    %v3352 = vpop.xlane.xlu0 %3351
    %v3353 = vsel %vm208, %v3344, 0.0
    %3354 = vadd.xlane.f32.xlu0 %v3353
    %v3355 = vpop.xlane.xlu0 %3354
    %v3356 = vsel %vm208, %v3345, 0.0
    %3357 = vadd.xlane.f32.xlu0 %v3356
    %v3358 = vpop.xlane.xlu0 %3357
    %v3359 = vsel %vm208, %v3346, 0.0
    %3360 = vadd.xlane.f32.xlu0 %v3359
    %v3361 = vpop.xlane.xlu0 %3360
    %v3362 = vsel %vm208, %v3347, 0.0
    %3363 = vadd.xlane.f32.xlu0 %v3362
    %v3364 = vpop.xlane.xlu0 %3363
    %v3365 = vsel %vm208, %v3348, 0.0
    %3366 = vadd.xlane.f32.xlu0 %v3365
    %v3367 = vpop.xlane.xlu0 %3366
    %v3368 = vmul.f32 %v3352, %v1393
    %v3369 = vmul.f32 %v3355, %v1393
    %v3370 = vmul.f32 %v3358, %v1393
    %v3371 = vmul.f32 %v3361, %v1393
    %v3372 = vmul.f32 %v3364, %v1393
    %v3373 = vmul.f32 %v3367, %v1393
    %v3374 = vsub.f32 %v3343, %v3368
    %v3375 = vsub.f32 %v3344, %v3369
    %v3376 = vsub.f32 %v3345, %v3370
    %v3377 = vsub.f32 %v3346, %v3371
    %v3378 = vsub.f32 %v3347, %v3372
    %v3379 = vsub.f32 %v3348, %v3373
    %v3380 = vmul.f32 %v3374, %v3374
    %v3381 = vmul.f32 %v3375, %v3375
    %v3382 = vmul.f32 %v3376, %v3376
    %v3383 = vmul.f32 %v3377, %v3377
    %v3384 = vmul.f32 %v3378, %v3378
    %v3385 = vmul.f32 %v3379, %v3379
    %v3386 = vsel %vm208, %v3380, 0.0
    %3387 = vadd.xlane.f32.xlu0 %v3386
    %v3388 = vpop.xlane.xlu0 %3387
    %v3389 = vsel %vm208, %v3381, 0.0
    %3390 = vadd.xlane.f32.xlu0 %v3389
    %v3391 = vpop.xlane.xlu0 %3390
    %v3392 = vsel %vm208, %v3382, 0.0
    %3393 = vadd.xlane.f32.xlu0 %v3392
    %v3394 = vpop.xlane.xlu0 %3393
    %v3395 = vsel %vm208, %v3383, 0.0
    %3396 = vadd.xlane.f32.xlu0 %v3395
    %v3397 = vpop.xlane.xlu0 %3396
    %v3398 = vsel %vm208, %v3384, 0.0
    %3399 = vadd.xlane.f32.xlu0 %v3398
    %v3400 = vpop.xlane.xlu0 %3399
    %v3401 = vsel %vm208, %v3385, 0.0
    %3402 = vadd.xlane.f32.xlu0 %v3401
    %v3403 = vpop.xlane.xlu0 %3402
    %v3404 = vmul.f32 %v3388, %v1393
    %v3405 = vmul.f32 %v3391, %v1393
    %v3406 = vmul.f32 %v3394, %v1393
    %v3407 = vmul.f32 %v3397, %v1393
    %v3408 = vmul.f32 %v3400, %v1393
    %v3409 = vmul.f32 %v3403, %v1393
    %v3410 = vadd.f32 %v3404, 1e-05
    %v3411 = vadd.f32 %v3405, 1e-05
    %v3412 = vadd.f32 %v3406, 1e-05
    %v3413 = vadd.f32 %v3407, 1e-05
    %v3414 = vadd.f32 %v3408, 1e-05
    %v3415 = vadd.f32 %v3409, 1e-05
    %v3416 = vrsqrt.pop %v3410
    %v3417 = vrsqrt.pop %v3411
    %v3418 = vrsqrt.pop %v3412
    %v3419 = vrsqrt.pop %v3413
    %v3420 = vrsqrt.pop %v3414
    %v3421 = vrsqrt.pop %v3415
    %v3422 = vmul.f32 %v3374, %v3416
    %v3423 = vmul.f32 %v3375, %v3417
    %v3424 = vmul.f32 %v3376, %v3418
    %v3425 = vmul.f32 %v3377, %v3419
    %v3426 = vmul.f32 %v3378, %v3420
    %v3427 = vmul.f32 %v3379, %v3421
    %v3428 = vlaneseq
    %v3429 = vshrl.u32 %v3428, 7
    %v3430 = vsub.s32 0, %v3429
    %v3431 = vrot.slane %v3349, %v3430
    %v3432 = vmul.f32 %v3422, %v3431
    %v3433 = vmul.f32 %v3423, %v3431
    %v3434 = vmul.f32 %v3424, %v3431
    %v3435 = vmul.f32 %v3425, %v3431
    %v3436 = vmul.f32 %v3426, %v3431
    %v3437 = vmul.f32 %v3427, %v3431
    %v3438 = vlaneseq
    %v3439 = vshrl.u32 %v3438, 7
    %v3440 = vsub.s32 1, %v3439
    %v3441 = vrot.slane %v3349, %v3440
    %v3442 = vadd.f32 %v3432, %v3441
    %v3443 = vadd.f32 %v3433, %v3441
    %v3444 = vadd.f32 %v3434, %v3441
    %v3445 = vadd.f32 %v3435, %v3441
    %v3446 = vadd.f32 %v3436, %v3441
    %v3447 = vadd.f32 %v3437, %v3441
    %v3448 = vpack.c.bf16 %v3443, %v3442
    %v3449 = vpack.c.bf16 %v3445, %v3444
    %v3450 = vpack.c.bf16 %v3447, %v3446
    %v3451 = vld [vmem:[%s8] sm:$0xf]
    %v3452 = vld [vmem:[%s8 + $0x4] sm:$0xf]
    %v3453 = vld [vmem:[%s8 + $0x8] sm:$0xf]
    %v3454 = vld [vmem:[%s8 + $0xc] sm:$0xf]
    %v3459 = vunpack.c.l.b16 %v3451
    %v3460 = vunpack.c.l.b16 %v3452
    %v3461 = vunpack.c.l.b16 %v3453
    %v3462 = vunpack.c.l.b16 %v3454
    %v3463 = vpack.c.b16 %v3460, %v3459
    %v3464 = vpack.c.b16 %v3462, %v3461
    %v3468 = vsel %vm208, %v3448, 0
    %v3471 = vsel %vm208, %v3449, 0
    %v3474 = vsel %vm208, %v3450, 0
    %3476 = vmatprep.subr.bf16.mxu0 0
    %3477 = vmatpush1.bf16.msra.mxu0 0
    %3478 = vmatprep.subr.bf16.mxu0 0
    %3479 = vmatpush1.bf16.msra.mxu0 0
    %3480 = vmatprep.subr.bf16.mxu0 0
    %3481 = vmatpush1.bf16.msra.mxu0 0
    %3482 = vmatprep.subr.bf16.mxu0 0
    %3483 = vmatpush1.bf16.msra.mxu0 0
    %3484 = vmatprep.subr.bf16.mxu0 0
    %3485 = vmatpush1.bf16.msra.mxu0 0
    %3486 = vmatprep.subr.bf16.mxu0 0
    %3487 = vmatpush1.bf16.msra.mxu0 0
    %3488 = vmatprep.subr.bf16.mxu0 0
    %3489 = vmatpush1.bf16.msra.mxu0 %v3464
    %3490 = vmatprep.subr.bf16.mxu0 0
    %3491 = vmatpush1.bf16.msra.mxu0 %v3463
    %3492 = vmatprep.subr.bf16.mxu0 0
    %3493 = vmatpush2.bf16.msra.mxu0 0
    %3494 = vmatprep.subr.bf16.mxu0 0
    %3495 = vmatpush2.bf16.msra.mxu0 0
    %3496 = vmatprep.subr.bf16.mxu0 0
    %3497 = vmatpush2.bf16.msra.mxu0 0
    %3498 = vmatprep.subr.bf16.mxu0 0
    %3499 = vmatpush2.bf16.msra.mxu0 0
    %3500 = vmatprep.subr.bf16.mxu0 0
    %3501 = vmatpush2.bf16.msra.mxu0 0
    %3502 = vmatprep.subr.bf16.mxu0 0
    %3503 = vmatpush2.bf16.msra.mxu0 0
    %3504 = vmatprep.subr.bf16.mxu0 0
    %3505 = vmatpush2.bf16.msra.mxu0 0
    %3506 = vmatprep.subr.bf16.mxu0 0
    %3507 = vmatpush2.bf16.msra.mxu0 0
    %3508 = vmatprep.mubr.bf16.mxu0 0
    %3509 = vmatmul.mubr.bf16.gmra.mxu0 %v3468
    %v3510 = vpop.f32.mrf.mxu0
    %v3511 = vadd.f32 0.0, %v3510
    %v3512 = vpop.f32.mrf.mxu0
    %v3513 = vpop.f32.mrf.mxu0
    %v3514 = vadd.f32 0.0, %v3513
    %v3515 = vpop.f32.mrf.mxu0
    %3516 = vmatprep.mubr.bf16.mxu0 0
    %3517 = vmatmul.mubr.bf16.gmra.mxu0 %v3471
    %v3518 = vpop.f32.mrf.mxu0
    %v3519 = vadd.f32 0.0, %v3518
    %v3520 = vpop.f32.mrf.mxu0
    %v3521 = vpop.f32.mrf.mxu0
    %v3522 = vadd.f32 0.0, %v3521
    %v3523 = vpop.f32.mrf.mxu0
    %3524 = vmatprep.mubr.bf16.mxu0 0
    %3525 = vmatmul.mubr.bf16.gmra.mxu0 %v3474
    %v3526 = vpop.f32.mrf.mxu0
    %v3527 = vadd.f32 0.0, %v3526
    %v3528 = vpop.f32.mrf.mxu0
    %v3529 = vpop.f32.mrf.mxu0
    %v3530 = vadd.f32 0.0, %v3529
    %v3531 = vpop.f32.mrf.mxu0
    %3532 = vdwg.mxu0
    %v3533 = vld [vmem:[%s9] sm:$0xff]
    %v3534 = vld [vmem:[%s9 + $0x8] sm:$0xff]
    %v3535 = vld [vmem:[%s9 + $0x10] sm:$0xff]
    %v3536 = vld [vmem:[%s9 + $0x18] sm:$0xff]
    %v3537 = vld [vmem:[%s9 + $0x20] sm:$0xff]
    %v3538 = vld [vmem:[%s9 + $0x28] sm:$0xff]
    %3540 = vset.pattern.permute.xlu0 0
    %3541 = vperm.xlu0 %3540, %v3511
    %v3542 = vpop.permute.xlu0 %3541
    %3545 = vset.pattern.permute.xlu0 0
    %3546 = vperm.xlu0 %3545, %v3514
    %v3547 = vpop.permute.xlu0 %3546
    %3550 = vset.pattern.permute.xlu0 0
    %3551 = vperm.xlu0 %3550, %v3519
    %v3552 = vpop.permute.xlu0 %3551
    %3555 = vset.pattern.permute.xlu0 0
    %3556 = vperm.xlu0 %3555, %v3522
    %v3557 = vpop.permute.xlu0 %3556
    %3560 = vset.pattern.permute.xlu0 0
    %3561 = vperm.xlu0 %3560, %v3527
    %v3562 = vpop.permute.xlu0 %3561
    %3565 = vset.pattern.permute.xlu0 0
    %3566 = vperm.xlu0 %3565, %v3530
    %v3567 = vpop.permute.xlu0 %3566
    %v3569 = vmul.f32 %v3542, %v3533
    %v3570 = vmul.f32 %v3547, %v3534
    %v3571 = vmul.f32 %v3552, %v3535
    %v3572 = vmul.f32 %v3557, %v3536
    %v3573 = vmul.f32 %v3562, %v3537
    %v3574 = vmul.f32 %v3567, %v3538
    %s3575 = scalar_lea.vmem %s9, 48
    %v3576 = vld [vmem:[%s3575] sm:$0xff]
    %v3577 = vld [vmem:[%s3575 + $0x8] sm:$0xff]
    %v3578 = vld [vmem:[%s3575 + $0x10] sm:$0xff]
    %v3579 = vld [vmem:[%s3575 + $0x18] sm:$0xff]
    %v3580 = vld [vmem:[%s3575 + $0x20] sm:$0xff]
    %v3581 = vld [vmem:[%s3575 + $0x28] sm:$0xff]
    %3582 = vset.pattern.permute.xlu0 1
    %3583 = vperm.xlu0 %3582, %v3511
    %v3584 = vpop.permute.xlu0 %3583
    %3586 = vset.pattern.permute.xlu0 1
    %3587 = vperm.xlu0 %3586, %v3514
    %v3588 = vpop.permute.xlu0 %3587
    %3590 = vset.pattern.permute.xlu0 1
    %3591 = vperm.xlu0 %3590, %v3519
    %v3592 = vpop.permute.xlu0 %3591
    %3594 = vset.pattern.permute.xlu0 1
    %3595 = vperm.xlu0 %3594, %v3522
    %v3596 = vpop.permute.xlu0 %3595
    %3598 = vset.pattern.permute.xlu0 1
    %3599 = vperm.xlu0 %3598, %v3527
    %v3600 = vpop.permute.xlu0 %3599
    %3602 = vset.pattern.permute.xlu0 1
    %3603 = vperm.xlu0 %3602, %v3530
    %v3604 = vpop.permute.xlu0 %3603
    %v3606 = vmul.f32 %v3584, %v3576
    %v3607 = vmul.f32 %v3588, %v3577
    %v3608 = vmul.f32 %v3592, %v3578
    %v3609 = vmul.f32 %v3596, %v3579
    %v3610 = vmul.f32 %v3600, %v3580
    %v3611 = vmul.f32 %v3604, %v3581
    %v3612 = vadd.f32 %v3569, %v3606
    %v3613 = vadd.f32 %v3570, %v3607
    %v3614 = vadd.f32 %v3571, %v3608
    %v3615 = vadd.f32 %v3572, %v3609
    %v3616 = vadd.f32 %v3573, %v3610
    %v3617 = vadd.f32 %v3574, %v3611
    %s3618 = scalar_lea.vmem %s9, 96
    %v3619 = vld [vmem:[%s3618] sm:$0xff]
    %v3620 = vld [vmem:[%s3618 + $0x8] sm:$0xff]
    %v3621 = vld [vmem:[%s3618 + $0x10] sm:$0xff]
    %v3622 = vld [vmem:[%s3618 + $0x18] sm:$0xff]
    %v3623 = vld [vmem:[%s3618 + $0x20] sm:$0xff]
    %v3624 = vld [vmem:[%s3618 + $0x28] sm:$0xff]
    %3625 = vset.pattern.permute.xlu0 2
    %3626 = vperm.xlu0 %3625, %v3511
    %v3627 = vpop.permute.xlu0 %3626
    %3629 = vset.pattern.permute.xlu0 2
    %3630 = vperm.xlu0 %3629, %v3514
    %v3631 = vpop.permute.xlu0 %3630
    %3633 = vset.pattern.permute.xlu0 2
    %3634 = vperm.xlu0 %3633, %v3519
    %v3635 = vpop.permute.xlu0 %3634
    %3637 = vset.pattern.permute.xlu0 2
    %3638 = vperm.xlu0 %3637, %v3522
    %v3639 = vpop.permute.xlu0 %3638
    %3641 = vset.pattern.permute.xlu0 2
    %3642 = vperm.xlu0 %3641, %v3527
    %v3643 = vpop.permute.xlu0 %3642
    %3645 = vset.pattern.permute.xlu0 2
    %3646 = vperm.xlu0 %3645, %v3530
    %v3647 = vpop.permute.xlu0 %3646
    %v3649 = vmul.f32 %v3627, %v3619
    %v3650 = vmul.f32 %v3631, %v3620
    %v3651 = vmul.f32 %v3635, %v3621
    %v3652 = vmul.f32 %v3639, %v3622
    %v3653 = vmul.f32 %v3643, %v3623
    %v3654 = vmul.f32 %v3647, %v3624
    %v3655 = vadd.f32 %v3612, %v3649
    %v3656 = vadd.f32 %v3613, %v3650
    %v3657 = vadd.f32 %v3614, %v3651
    %v3658 = vadd.f32 %v3615, %v3652
    %v3659 = vadd.f32 %v3616, %v3653
    %v3660 = vadd.f32 %v3617, %v3654
    %s3661 = scalar_lea.vmem %s9, 144
    %v3662 = vld [vmem:[%s3661] sm:$0xff]
    %v3663 = vld [vmem:[%s3661 + $0x8] sm:$0xff]
    %v3664 = vld [vmem:[%s3661 + $0x10] sm:$0xff]
    %v3665 = vld [vmem:[%s3661 + $0x18] sm:$0xff]
    %v3666 = vld [vmem:[%s3661 + $0x20] sm:$0xff]
    %v3667 = vld [vmem:[%s3661 + $0x28] sm:$0xff]
    %3668 = vset.pattern.permute.xlu0 3
    %3669 = vperm.xlu0 %3668, %v3511
    %v3670 = vpop.permute.xlu0 %3669
    %3672 = vset.pattern.permute.xlu0 3
    %3673 = vperm.xlu0 %3672, %v3514
    %v3674 = vpop.permute.xlu0 %3673
    %3676 = vset.pattern.permute.xlu0 3
    %3677 = vperm.xlu0 %3676, %v3519
    %v3678 = vpop.permute.xlu0 %3677
    %3680 = vset.pattern.permute.xlu0 3
    %3681 = vperm.xlu0 %3680, %v3522
    %v3682 = vpop.permute.xlu0 %3681
    %3684 = vset.pattern.permute.xlu0 3
    %3685 = vperm.xlu0 %3684, %v3527
    %v3686 = vpop.permute.xlu0 %3685
    %3688 = vset.pattern.permute.xlu0 3
    %3689 = vperm.xlu0 %3688, %v3530
    %v3690 = vpop.permute.xlu0 %3689
    %v3692 = vmul.f32 %v3670, %v3662
    %v3693 = vmul.f32 %v3674, %v3663
    %v3694 = vmul.f32 %v3678, %v3664
    %v3695 = vmul.f32 %v3682, %v3665
    %v3696 = vmul.f32 %v3686, %v3666
    %v3697 = vmul.f32 %v3690, %v3667
    %v3698 = vadd.f32 %v3655, %v3692
    %v3699 = vadd.f32 %v3656, %v3693
    %v3700 = vadd.f32 %v3657, %v3694
    %v3701 = vadd.f32 %v3658, %v3695
    %v3702 = vadd.f32 %v3659, %v3696
    %v3703 = vadd.f32 %v3660, %v3697
    %s3704 = scalar_lea.vmem %s9, 192
    %v3705 = vld [vmem:[%s3704] sm:$0xff]
    %v3706 = vld [vmem:[%s3704 + $0x8] sm:$0xff]
    %v3707 = vld [vmem:[%s3704 + $0x10] sm:$0xff]
    %v3708 = vld [vmem:[%s3704 + $0x18] sm:$0xff]
    %v3709 = vld [vmem:[%s3704 + $0x20] sm:$0xff]
    %v3710 = vld [vmem:[%s3704 + $0x28] sm:$0xff]
    %3711 = vset.pattern.permute.xlu0 4
    %3712 = vperm.xlu0 %3711, %v3511
    %v3713 = vpop.permute.xlu0 %3712
    %3715 = vset.pattern.permute.xlu0 4
    %3716 = vperm.xlu0 %3715, %v3514
    %v3717 = vpop.permute.xlu0 %3716
    %3719 = vset.pattern.permute.xlu0 4
    %3720 = vperm.xlu0 %3719, %v3519
    %v3721 = vpop.permute.xlu0 %3720
    %3723 = vset.pattern.permute.xlu0 4
    %3724 = vperm.xlu0 %3723, %v3522
    %v3725 = vpop.permute.xlu0 %3724
    %3727 = vset.pattern.permute.xlu0 4
    %3728 = vperm.xlu0 %3727, %v3527
    %v3729 = vpop.permute.xlu0 %3728
    %3731 = vset.pattern.permute.xlu0 4
    %3732 = vperm.xlu0 %3731, %v3530
    %v3733 = vpop.permute.xlu0 %3732
    %v3735 = vmul.f32 %v3713, %v3705
    %v3736 = vmul.f32 %v3717, %v3706
    %v3737 = vmul.f32 %v3721, %v3707
    %v3738 = vmul.f32 %v3725, %v3708
    %v3739 = vmul.f32 %v3729, %v3709
    %v3740 = vmul.f32 %v3733, %v3710
    %v3741 = vadd.f32 %v3698, %v3735
    %v3742 = vadd.f32 %v3699, %v3736
    %v3743 = vadd.f32 %v3700, %v3737
    %v3744 = vadd.f32 %v3701, %v3738
    %v3745 = vadd.f32 %v3702, %v3739
    %v3746 = vadd.f32 %v3703, %v3740
    %s3747 = scalar_lea.vmem %s9, 240
    %v3748 = vld [vmem:[%s3747] sm:$0xff]
    %v3749 = vld [vmem:[%s3747 + $0x8] sm:$0xff]
    %v3750 = vld [vmem:[%s3747 + $0x10] sm:$0xff]
    %v3751 = vld [vmem:[%s3747 + $0x18] sm:$0xff]
    %v3752 = vld [vmem:[%s3747 + $0x20] sm:$0xff]
    %v3753 = vld [vmem:[%s3747 + $0x28] sm:$0xff]
    %3754 = vset.pattern.permute.xlu0 5
    %3755 = vperm.xlu0 %3754, %v3511
    %v3756 = vpop.permute.xlu0 %3755
    %3758 = vset.pattern.permute.xlu0 5
    %3759 = vperm.xlu0 %3758, %v3514
    %v3760 = vpop.permute.xlu0 %3759
    %3762 = vset.pattern.permute.xlu0 5
    %3763 = vperm.xlu0 %3762, %v3519
    %v3764 = vpop.permute.xlu0 %3763
    %3766 = vset.pattern.permute.xlu0 5
    %3767 = vperm.xlu0 %3766, %v3522
    %v3768 = vpop.permute.xlu0 %3767
    %3770 = vset.pattern.permute.xlu0 5
    %3771 = vperm.xlu0 %3770, %v3527
    %v3772 = vpop.permute.xlu0 %3771
    %3774 = vset.pattern.permute.xlu0 5
    %3775 = vperm.xlu0 %3774, %v3530
    %v3776 = vpop.permute.xlu0 %3775
    %v3778 = vmul.f32 %v3756, %v3748
    %v3779 = vmul.f32 %v3760, %v3749
    %v3780 = vmul.f32 %v3764, %v3750
    %v3781 = vmul.f32 %v3768, %v3751
    %v3782 = vmul.f32 %v3772, %v3752
    %v3783 = vmul.f32 %v3776, %v3753
    %v3784 = vadd.f32 %v3741, %v3778
    %v3785 = vadd.f32 %v3742, %v3779
    %v3786 = vadd.f32 %v3743, %v3780
    %v3787 = vadd.f32 %v3744, %v3781
    %v3788 = vadd.f32 %v3745, %v3782
    %v3789 = vadd.f32 %v3746, %v3783
    %s3790 = scalar_lea.vmem %s9, 288
    %v3791 = vld [vmem:[%s3790] sm:$0xff]
    %v3792 = vld [vmem:[%s3790 + $0x8] sm:$0xff]
    %v3793 = vld [vmem:[%s3790 + $0x10] sm:$0xff]
    %v3794 = vld [vmem:[%s3790 + $0x18] sm:$0xff]
    %v3795 = vld [vmem:[%s3790 + $0x20] sm:$0xff]
    %v3796 = vld [vmem:[%s3790 + $0x28] sm:$0xff]
    %3797 = vset.pattern.permute.xlu0 6
    %3798 = vperm.xlu0 %3797, %v3511
    %v3799 = vpop.permute.xlu0 %3798
    %3801 = vset.pattern.permute.xlu0 6
    %3802 = vperm.xlu0 %3801, %v3514
    %v3803 = vpop.permute.xlu0 %3802
    %3805 = vset.pattern.permute.xlu0 6
    %3806 = vperm.xlu0 %3805, %v3519
    %v3807 = vpop.permute.xlu0 %3806
    %3809 = vset.pattern.permute.xlu0 6
    %3810 = vperm.xlu0 %3809, %v3522
    %v3811 = vpop.permute.xlu0 %3810
    %3813 = vset.pattern.permute.xlu0 6
    %3814 = vperm.xlu0 %3813, %v3527
    %v3815 = vpop.permute.xlu0 %3814
    %3817 = vset.pattern.permute.xlu0 6
    %3818 = vperm.xlu0 %3817, %v3530
    %v3819 = vpop.permute.xlu0 %3818
    %v3821 = vmul.f32 %v3799, %v3791
    %v3822 = vmul.f32 %v3803, %v3792
    %v3823 = vmul.f32 %v3807, %v3793
    %v3824 = vmul.f32 %v3811, %v3794
    %v3825 = vmul.f32 %v3815, %v3795
    %v3826 = vmul.f32 %v3819, %v3796
    %v3827 = vadd.f32 %v3784, %v3821
    %v3828 = vadd.f32 %v3785, %v3822
    %v3829 = vadd.f32 %v3786, %v3823
    %v3830 = vadd.f32 %v3787, %v3824
    %v3831 = vadd.f32 %v3788, %v3825
    %v3832 = vadd.f32 %v3789, %v3826
    %s3833 = scalar_lea.vmem %s9, 336
    %v3834 = vld [vmem:[%s3833] sm:$0xff]
    %v3835 = vld [vmem:[%s3833 + $0x8] sm:$0xff]
    %v3836 = vld [vmem:[%s3833 + $0x10] sm:$0xff]
    %v3837 = vld [vmem:[%s3833 + $0x18] sm:$0xff]
    %v3838 = vld [vmem:[%s3833 + $0x20] sm:$0xff]
    %v3839 = vld [vmem:[%s3833 + $0x28] sm:$0xff]
    %3840 = vset.pattern.permute.xlu0 7
    %3841 = vperm.xlu0 %3840, %v3511
    %v3842 = vpop.permute.xlu0 %3841
    %3844 = vset.pattern.permute.xlu0 7
    %3845 = vperm.xlu0 %3844, %v3514
    %v3846 = vpop.permute.xlu0 %3845
    %3848 = vset.pattern.permute.xlu0 7
    %3849 = vperm.xlu0 %3848, %v3519
    %v3850 = vpop.permute.xlu0 %3849
    %3852 = vset.pattern.permute.xlu0 7
    %3853 = vperm.xlu0 %3852, %v3522
    %v3854 = vpop.permute.xlu0 %3853
    %3856 = vset.pattern.permute.xlu0 7
    %3857 = vperm.xlu0 %3856, %v3527
    %v3858 = vpop.permute.xlu0 %3857
    %3860 = vset.pattern.permute.xlu0 7
    %3861 = vperm.xlu0 %3860, %v3530
    %v3862 = vpop.permute.xlu0 %3861
    %v3864 = vmul.f32 %v3842, %v3834
    %v3865 = vmul.f32 %v3846, %v3835
    %v3866 = vmul.f32 %v3850, %v3836
    %v3867 = vmul.f32 %v3854, %v3837
    %v3868 = vmul.f32 %v3858, %v3838
    %v3869 = vmul.f32 %v3862, %v3839
    %v3870 = vadd.f32 %v3827, %v3864
    %v3871 = vadd.f32 %v3828, %v3865
    %v3872 = vadd.f32 %v3829, %v3866
    %v3873 = vadd.f32 %v3830, %v3867
    %v3874 = vadd.f32 %v3831, %v3868
    %v3875 = vadd.f32 %v3832, %v3869
    %vm3876 = vcmask 39936
    %v3877 = vsel %vm3876, %v3870, 0.0
    %v3878 = vsel %vm3876, %v3871, 0.0
    %v3879 = vadd.f32 %v3877, %v3878
    %v3880 = vsel %vm3876, %v3872, 0.0
    %v3881 = vadd.f32 %v3879, %v3880
    %v3882 = vrot.slane %v3881, 4
    %v3883 = vadd.f32 %v3881, %v3882
    %v3884 = vrot.slane %v3883, 2
    %v3885 = vadd.f32 %v3883, %v3884
    %v3886 = vrot.slane %v3885, 1
    %v3887 = vadd.f32 %v3885, %v3886
    %v3888 = vsel %vm3876, %v3873, 0.0
    %v3889 = vsel %vm3876, %v3874, 0.0
    %v3890 = vadd.f32 %v3888, %v3889
    %v3891 = vsel %vm3876, %v3875, 0.0
    %v3892 = vadd.f32 %v3890, %v3891
    %v3893 = vrot.slane %v3892, 4
    %v3894 = vadd.f32 %v3892, %v3893
    %v3895 = vrot.slane %v3894, 2
    %v3896 = vadd.f32 %v3894, %v3895
    %v3897 = vrot.slane %v3896, 1
    %v3898 = vadd.f32 %v3896, %v3897
    %vm3899 = vcmask 1040384
    %v3900 = vsel %vm3899, %v3887, %v3898
    %v3901 = vld [vmem:[%s10] sm:$0x1]
    %v3903 = vlaneseq
    %v3904 = vshrl.u32 %v3903, 7
    %v3905 = vsub.s32 0, %v3904
    %v3906 = vrot.slane %v3901, %v3905
    %v3908 = vadd.f32 %v3900, %v3906
    %vm3909 = vcmask 33792
    %3910 = vst.msk [vmem:[#allocation2] sm:$0x3] %vm3909, %v3908
    // Predicated region
    $region46: #{_forward_jit.1} parent=1 // pred_check
      _
    $region47: #{_forward_jit.1} parent=1 // pred_check_branch
      %3912 = sbr.rel (0) target = $region49
    $region48: #{_forward_jit.1} parent=1 // pred_region
      %s3914 = ssub.s32 32, 32
      %3915 = vsyncadd [#allocation3], %s3914
      %s3917 = sshll.u32 [#allocation2], 4
      %s3918 = int_to_ptr.vmem [resolvable:$true] %s3917
      %3920 = dma.vmem_to_hbm [thread:$0]  %s3918, 32, %s11, [#allocation3]
    $region49: #{_forward_jit.1} parent=1 // pred_fallthru
      _
    // Predicated region
    $region50: #{_forward_jit.1} parent=1 // pred_check
      _
    $region51: #{_forward_jit.1} parent=1 // pred_check_branch
      %3922 = sbr.rel (0) target = $region53
    $region52: #{_forward_jit.1} parent=1 // pred_region
      %3923 = dma.done [#allocation3], 32
    $region53: #{_forward_jit.1} parent=1 // pred_fallthru
      _
    %3924 = vsyncpa [#allocation3], 1

</llo_original>
